<compile_context>
chip_gen: v5e
topology: v5e:2x2
jax: 0.10.0
libtpu: 0.0.40
codegen_flags: <defaults>
</compile_context>

<pallas_src>
import functools

import jax
import jax.numpy as jnp
from jax.experimental import pallas as pl
from jax.experimental.pallas import tpu as pltpu


def _round_up(x, m):
    return ((x + m - 1) // m) * m


def _denoise_kernel(x_ref, w1, w2, w3, w4, w5, w6, w7, o_ref,
                    col, a1, a3, b0, b1, *, W, n):
    """One batch element on the padded common grid.

    x_ref : [1, C, L_pad]      zero-padded flattened input (NCHW, HW collapsed)
    w1..w6: [Cout, 9*S]        K-fused 3x3 weights, S = round_up(Cin, 8)
    w7    : [Cout7, Cin7]      1x1 conv weight
    o_ref : [1, Cout7, L_pad]  conv7 result on the common grid (valid window =
                               top-left (H-12, W-12) block, sliced by wrapper)
    col   : [9*S_max, n]       reused im2col scratch (RHS of the fused matmul)
    a1,a3 : [C, L_pad]         long-lived residual activations
    b0,b1 : [15, L_pad]        ping-pong activation slabs
    """
    L_pad = a1.shape[1]
    offs = [di * W + dj for di in range(3) for dj in range(3)]

    # Zero never-written-but-read regions once per grid step (cheap, full-lane
    # stores): im2col sublane-pad rows (their weights are zero, but 0*NaN=NaN)
    # and the slab tail columns [n:L_pad) touched by lane-shifted tap/residual
    # reads.  Keeps every read finite; those positions are don't-care anyway.
    col[...] = jnp.zeros_like(col)
    for a in (a1, a3, b0, b1):
        a[:, n:] = jnp.zeros((a.shape[0], L_pad - n), jnp.float32)

    def fill(read, cin):
        """im2col: 9 lane-shifted [cin, n] slices into sublane-aligned groups."""
        s = _round_up(cin, 8)
        for t, off in enumerate(offs):
            col[t * s:t * s + cin, :] = read(off)
        return 9 * s

    def fused(w_ref, k):
        # Single MXU matmul per layer: [Cout, k] @ [k, n]  (n lane-dense).
        return jnp.dot(w_ref[...], col[:k, :], preferred_element_type=jnp.float32)

    c1o, c2o, c3o, c4o, c5o, c6o = (w.shape[0] for w in (w1, w2, w3, w4, w5, w6))
    r3 = 2 * W + 2      # center-crop offset of the +x1 residual (conv3)
    r6 = 3 * W + 3      # center-crop offset of the +x3 residual (conv6)

    # conv1 + ReLU : x(Cin) -> a1
    k = fill(lambda off: x_ref[0, :, off:off + n], x_ref.shape[1])
    a1[:, :n] = jnp.maximum(fused(w1, k), 0.0)
    # conv2 + ReLU : a1 -> b0
    k = fill(lambda off: a1[:, off:off + n], c1o)
    b0[:c2o, :n] = jnp.maximum(fused(w2, k), 0.0)
    # conv3 (+ cropped x1 residual) + ReLU : b0 -> a3
    k = fill(lambda off: b0[:c2o, off:off + n], c2o)
    a3[:, :n] = jnp.maximum(fused(w3, k) + a1[:, r3:r3 + n], 0.0)
    # conv4 + ReLU : a3 -> b1
    k = fill(lambda off: a3[:, off:off + n], c3o)
    b1[:c4o, :n] = jnp.maximum(fused(w4, k), 0.0)
    # conv5 + ReLU : b1 -> b0[:c5o]   (b0's conv2 contents are dead now)
    k = fill(lambda off: b1[:c4o, off:off + n], c4o)
    b0[:c5o, :n] = jnp.maximum(fused(w5, k), 0.0)
    # conv6 (+ cropped x3 residual) + ReLU : b0[:c5o] -> b1[:c6o]
    k = fill(lambda off: b0[:c5o, off:off + n], c5o)
    b1[:c6o, :n] = jnp.maximum(fused(w6, k) + a3[:, r6:r6 + n], 0.0)
    # conv7 (1x1, no ReLU): one [3, 5] @ [5, n] matmul, lane-dense store.
    o_ref[0, :, :n] = jnp.dot(w7[...], b1[:c6o, :n],
                              preferred_element_type=jnp.float32)
    # Columns [n:L_pad) of o_ref are intentionally left unwritten; the wrapper
    # slices the valid (H-12, W-12) window out of the common grid.


def simple_denoising_net(x_nchw, weights):
    """x_nchw: [N, 3, H, W] float32.  weights: 7 HWIO conv kernels."""
    N, C, H, W = x_nchw.shape
    L = H * W
    Ho, Wo = H - 12, W - 12

    # Common-grid extent every layer computes (single n), rounded up to a
    # 128-lane multiple -> full vregs and unmasked stores everywhere.
    n_pad = _round_up(L - (2 * W + 2), 128)
    # Padded slab width: deepest read is the conv6 residual at offset 3W+3.
    L_pad = _round_up(max(L, n_pad + 3 * W + 3), 128)

    # Free contiguous collapse of H,W plus a small zero lane-pad; NCHW-native,
    # no transposes round-tripping HBM.
    x_flat = jnp.pad(x_nchw.reshape(N, C, L), ((0, 0), (0, 0), (0, L_pad - L)))

    def pack3x3(w):
        # HWIO [3,3,Cin,Cout] -> K-fused [Cout, 9*round_up(Cin,8)], taps along
        # K in the same (di,dj) order the kernel fills the im2col scratch,
        # zero rows in the sublane padding.
        kh, kw, cin, cout = w.shape
        s = _round_up(cin, 8)
        wt = jnp.transpose(w, (3, 0, 1, 2)).reshape(cout, kh * kw, cin)
        wt = jnp.pad(wt, ((0, 0), (0, 0), (0, s - cin)))
        return wt.reshape(cout, kh * kw * s)

    w_packed = [pack3x3(w) for w in weights[:6]]
    w_packed.append(jnp.transpose(weights[6][0, 0]))      # 1x1 -> [Cout, Cin]

    in_specs = [pl.BlockSpec((1, C, L_pad), lambda b: (b, 0, 0))]
    for w in w_packed:
        in_specs.append(pl.BlockSpec(w.shape, lambda b: (0, 0)))

    cins = [w.shape[2] for w in weights]
    couts = [w.shape[3] for w in weights]
    col_rows = max(9 * _round_up(c, 8) for c in cins[:6])

    scratch_shapes = [
        pltpu.VMEM((col_rows, n_pad), jnp.float32),                 # im2col RHS
        pltpu.VMEM((couts[0], L_pad), jnp.float32),                 # a1 (-> conv3)
        pltpu.VMEM((couts[2], L_pad), jnp.float32),                 # a3 (-> conv6)
        pltpu.VMEM((max(couts[1], couts[4]), L_pad), jnp.float32),  # b0 ping
        pltpu.VMEM((max(couts[3], couts[5]), L_pad), jnp.float32),  # b1 pong
    ]

    out_flat = pl.pallas_call(
        functools.partial(_denoise_kernel, W=W, n=n_pad),
        out_shape=jax.ShapeDtypeStruct((N, couts[6], L_pad), jnp.float32),
        grid_spec=pltpu.PrefetchScalarGridSpec(
            num_scalar_prefetch=0,
            grid=(N,),
            in_specs=in_specs,
            out_specs=pl.BlockSpec((1, couts[6], L_pad), lambda b: (b, 0, 0)),
            scratch_shapes=scratch_shapes,
        ),
        # Batch axis is embarrassingly parallel -> lets the 2 TensorCores on
        # v7x split it; a harmless serial loop on single-TC v5e/v6e.
        compiler_params=pltpu.CompilerParams(
            dimension_semantics=("parallel",)),
    )(x_flat, *w_packed)

    # Valid outputs: top-left (H-12, W-12) window of the common grid.
    return out_flat[:, :, :L].reshape(N, couts[6], H, W)[:, :, :Ho, :Wo]


def _ref_forward(x_nchw, weights):
    """Pure-JAX reference (NHWC internally), mirrors the PyTorch forward."""
    dn = ("NHWC", "HWIO", "NHWC")

    def conv(x, w):
        return jax.lax.conv_general_dilated(
            x, w, (1, 1), "VALID", dimension_numbers=dn,
            precision=jax.lax.Precision.HIGHEST)

    x = jnp.transpose(x_nchw, (0, 2, 3, 1))
    x = conv(x, weights[0]); x1 = jax.nn.relu(x)
    x = conv(x1, weights[1]); x = jax.nn.relu(x)
    x = conv(x, weights[2])
    x = x + x1[:, 2:-2, 2:-2, :]                    # center_pad_tensor_like (crop)
    x3 = jax.nn.relu(x)
    x = conv(x3, weights[3]); x = jax.nn.relu(x)
    x = conv(x, weights[4]); x = jax.nn.relu(x)
    x = conv(x, weights[5])
    x = x + x3[:, 3:-3, 3:-3, :]                    # center_pad_tensor_like (crop)
    x = jax.nn.relu(x)
    x = conv(x, weights[6])
    return jnp.transpose(x, (0, 3, 1, 2))


if __name__ == "__main__":
    key = jax.random.PRNGKey(0)
    kx, *kws = jax.random.split(key, 8)

    N, H, W = 2, 20, 20
    x = jax.random.normal(kx, (N, 3, H, W), dtype=jnp.float32)   # NCHW like PyTorch

    # Deterministic synthetic weights, HWIO layout (kh, kw, Cin, Cout).
    weight_shapes = [
        (3, 3, 3, 5),    # conv1
        (3, 3, 5, 15),   # conv2
        (3, 3, 15, 5),   # conv3
        (3, 3, 5, 15),   # conv4
        (3, 3, 15, 10),  # conv5
        (3, 3, 10, 5),   # conv6
        (1, 1, 5, 3),    # conv7
    ]
    weights = [0.1 * jax.random.normal(k, s, dtype=jnp.float32)
               for k, s in zip(kws, weight_shapes)]

    run = jax.jit(simple_denoising_net)
    out = jax.block_until_ready(run(x, weights))

    assert out.shape == (N, 3, H - 12, W - 12), out.shape

    ref = jax.block_until_ready(_ref_forward(x, weights))
    err = float(jnp.max(jnp.abs(out - ref)))
    assert err < 1e-2, f"max abs err too large: {err}"

    print("KERNEL_OK")
</pallas_src>

<mosaic_0001>
module attributes {stable_mosaic.version = 11 : i64} {
  func.func @_denoise_kernel(%arg0: i32, %arg1: memref<1x3x512xf32, #tpu.memory_space<vmem>>, %arg2: memref<5x72xf32, #tpu.memory_space<vmem>>, %arg3: memref<15x72xf32, #tpu.memory_space<vmem>>, %arg4: memref<5x144xf32, #tpu.memory_space<vmem>>, %arg5: memref<15x72xf32, #tpu.memory_space<vmem>>, %arg6: memref<10x144xf32, #tpu.memory_space<vmem>>, %arg7: memref<5x144xf32, #tpu.memory_space<vmem>>, %arg8: memref<3x5xf32, #tpu.memory_space<vmem>>, %arg9: memref<1x3x512xf32, #tpu.memory_space<vmem>>, %arg10: memref<144x384xf32, #tpu.memory_space<vmem>>, %arg11: memref<5x512xf32, #tpu.memory_space<vmem>>, %arg12: memref<5x512xf32, #tpu.memory_space<vmem>>, %arg13: memref<15x512xf32, #tpu.memory_space<vmem>>, %arg14: memref<15x512xf32, #tpu.memory_space<vmem>>) attributes {dimension_semantics = [#tpu.dimension_semantics<parallel>], iteration_bounds = array<i64: 2>, scalar_prefetch = 0 : i64, scratch_operands = 5 : i64, tpu.core_type = #tpu.core_type<tc>, window_params = [{transform_indices = @transform_0, window_bounds = array<i64: 1, 3, 512>}, {pipeline_mode = #tpu.pipeline_mode<synchronous>, transform_indices = @transform_1, window_bounds = array<i64: 5, 72>}, {pipeline_mode = #tpu.pipeline_mode<synchronous>, transform_indices = @transform_2, window_bounds = array<i64: 15, 72>}, {pipeline_mode = #tpu.pipeline_mode<synchronous>, transform_indices = @transform_3, window_bounds = array<i64: 5, 144>}, {pipeline_mode = #tpu.pipeline_mode<synchronous>, transform_indices = @transform_4, window_bounds = array<i64: 15, 72>}, {pipeline_mode = #tpu.pipeline_mode<synchronous>, transform_indices = @transform_5, window_bounds = array<i64: 10, 144>}, {pipeline_mode = #tpu.pipeline_mode<synchronous>, transform_indices = @transform_6, window_bounds = array<i64: 5, 144>}, {pipeline_mode = #tpu.pipeline_mode<synchronous>, transform_indices = @transform_7, window_bounds = array<i64: 3, 5>}, {transform_indices = @transform_8, window_bounds = array<i64: 1, 3, 512>}]} {
    %cst = arith.constant 0.000000e+00 : f32
    %0 = vector.broadcast %cst : f32 to vector<144x384xf32>
    %c0 = arith.constant 0 : index
    %c0_0 = arith.constant 0 : index
    %1 = vector.load %arg10[%c0, %c0_0] : memref<144x384xf32, #tpu.memory_space<vmem>>, vector<144x384xf32>
    tpu.vector_store %arg10[%c0, %c0_0], %0 {strides = array<i32>} : memref<144x384xf32, #tpu.memory_space<vmem>>, vector<144x384xf32>,
    %cst_1 = arith.constant 0.000000e+00 : f32
    %2 = vector.broadcast %cst_1 : f32 to vector<5x128xf32>
    %c0_2 = arith.constant 0 : index
    %c384 = arith.constant 384 : index
    %3 = vector.load %arg11[%c0_2, %c384] : memref<5x512xf32, #tpu.memory_space<vmem>>, vector<5x128xf32>
    tpu.vector_store %arg11[%c0_2, %c384], %2 {strides = array<i32>} : memref<5x512xf32, #tpu.memory_space<vmem>>, vector<5x128xf32>,
    %cst_3 = arith.constant 0.000000e+00 : f32
    %4 = vector.broadcast %cst_3 : f32 to vector<5x128xf32>
    %c0_4 = arith.constant 0 : index
    %c384_5 = arith.constant 384 : index
    %5 = vector.load %arg12[%c0_4, %c384_5] : memref<5x512xf32, #tpu.memory_space<vmem>>, vector<5x128xf32>
    tpu.vector_store %arg12[%c0_4, %c384_5], %4 {strides = array<i32>} : memref<5x512xf32, #tpu.memory_space<vmem>>, vector<5x128xf32>,
    %cst_6 = arith.constant 0.000000e+00 : f32
    %6 = vector.broadcast %cst_6 : f32 to vector<15x128xf32>
    %c0_7 = arith.constant 0 : index
    %c384_8 = arith.constant 384 : index
    %7 = vector.load %arg13[%c0_7, %c384_8] : memref<15x512xf32, #tpu.memory_space<vmem>>, vector<15x128xf32>
    tpu.vector_store %arg13[%c0_7, %c384_8], %6 {strides = array<i32>} : memref<15x512xf32, #tpu.memory_space<vmem>>, vector<15x128xf32>,
    %cst_9 = arith.constant 0.000000e+00 : f32
    %8 = vector.broadcast %cst_9 : f32 to vector<15x128xf32>
    %c0_10 = arith.constant 0 : index
    %c384_11 = arith.constant 384 : index
    %9 = vector.load %arg14[%c0_10, %c384_11] : memref<15x512xf32, #tpu.memory_space<vmem>>, vector<15x128xf32>
    tpu.vector_store %arg14[%c0_10, %c384_11], %8 {strides = array<i32>} : memref<15x512xf32, #tpu.memory_space<vmem>>, vector<15x128xf32>,
    %c0_12 = arith.constant 0 : index
    %c0_13 = arith.constant 0 : index
    %c0_14 = arith.constant 0 : index
    %10 = vector.load %arg1[%c0_12, %c0_13, %c0_14] : memref<1x3x512xf32, #tpu.memory_space<vmem>>, vector<1x3x384xf32>
    %11 = vector.shape_cast %10 : vector<1x3x384xf32> to vector<3x384xf32>
    %c0_15 = arith.constant 0 : index
    %c0_16 = arith.constant 0 : index
    %12 = vector.load %arg10[%c0_15, %c0_16] : memref<144x384xf32, #tpu.memory_space<vmem>>, vector<3x384xf32>
    tpu.vector_store %arg10[%c0_15, %c0_16], %11 {strides = array<i32>} : memref<144x384xf32, #tpu.memory_space<vmem>>, vector<3x384xf32>,
    %c0_17 = arith.constant 0 : index
    %c0_18 = arith.constant 0 : index
    %c1 = arith.constant 1 : index
    %13 = vector.load %arg1[%c0_17, %c0_18, %c1] : memref<1x3x512xf32, #tpu.memory_space<vmem>>, vector<1x3x384xf32>
    %14 = vector.shape_cast %13 : vector<1x3x384xf32> to vector<3x384xf32>
    %c8 = arith.constant 8 : index
    %c0_19 = arith.constant 0 : index
    %15 = vector.load %arg10[%c8, %c0_19] : memref<144x384xf32, #tpu.memory_space<vmem>>, vector<3x384xf32>
    tpu.vector_store %arg10[%c8, %c0_19], %14 {strides = array<i32>} : memref<144x384xf32, #tpu.memory_space<vmem>>, vector<3x384xf32>,
    %c0_20 = arith.constant 0 : index
    %c0_21 = arith.constant 0 : index
    %c2 = arith.constant 2 : index
    %16 = vector.load %arg1[%c0_20, %c0_21, %c2] : memref<1x3x512xf32, #tpu.memory_space<vmem>>, vector<1x3x384xf32>
    %17 = vector.shape_cast %16 : vector<1x3x384xf32> to vector<3x384xf32>
    %c16 = arith.constant 16 : index
    %c0_22 = arith.constant 0 : index
    %18 = vector.load %arg10[%c16, %c0_22] : memref<144x384xf32, #tpu.memory_space<vmem>>, vector<3x384xf32>
    tpu.vector_store %arg10[%c16, %c0_22], %17 {strides = array<i32>} : memref<144x384xf32, #tpu.memory_space<vmem>>, vector<3x384xf32>,
    %c0_23 = arith.constant 0 : index
    %c0_24 = arith.constant 0 : index
    %c20 = arith.constant 20 : index
    %19 = vector.load %arg1[%c0_23, %c0_24, %c20] : memref<1x3x512xf32, #tpu.memory_space<vmem>>, vector<1x3x384xf32>
    %20 = vector.shape_cast %19 : vector<1x3x384xf32> to vector<3x384xf32>
    %c24 = arith.constant 24 : index
    %c0_25 = arith.constant 0 : index
    %21 = vector.load %arg10[%c24, %c0_25] : memref<144x384xf32, #tpu.memory_space<vmem>>, vector<3x384xf32>
    tpu.vector_store %arg10[%c24, %c0_25], %20 {strides = array<i32>} : memref<144x384xf32, #tpu.memory_space<vmem>>, vector<3x384xf32>,
    %c0_26 = arith.constant 0 : index
    %c0_27 = arith.constant 0 : index
    %c21 = arith.constant 21 : index
    %22 = vector.load %arg1[%c0_26, %c0_27, %c21] : memref<1x3x512xf32, #tpu.memory_space<vmem>>, vector<1x3x384xf32>
    %23 = vector.shape_cast %22 : vector<1x3x384xf32> to vector<3x384xf32>
    %c32 = arith.constant 32 : index
    %c0_28 = arith.constant 0 : index
    %24 = vector.load %arg10[%c32, %c0_28] : memref<144x384xf32, #tpu.memory_space<vmem>>, vector<3x384xf32>
    tpu.vector_store %arg10[%c32, %c0_28], %23 {strides = array<i32>} : memref<144x384xf32, #tpu.memory_space<vmem>>, vector<3x384xf32>,
    %c0_29 = arith.constant 0 : index
    %c0_30 = arith.constant 0 : index
    %c22 = arith.constant 22 : index
    %25 = vector.load %arg1[%c0_29, %c0_30, %c22] : memref<1x3x512xf32, #tpu.memory_space<vmem>>, vector<1x3x384xf32>
    %26 = vector.shape_cast %25 : vector<1x3x384xf32> to vector<3x384xf32>
    %c40 = arith.constant 40 : index
    %c0_31 = arith.constant 0 : index
    %27 = vector.load %arg10[%c40, %c0_31] : memref<144x384xf32, #tpu.memory_space<vmem>>, vector<3x384xf32>
    tpu.vector_store %arg10[%c40, %c0_31], %26 {strides = array<i32>} : memref<144x384xf32, #tpu.memory_space<vmem>>, vector<3x384xf32>,
    %c0_32 = arith.constant 0 : index
    %c0_33 = arith.constant 0 : index
    %c40_34 = arith.constant 40 : index
    %28 = vector.load %arg1[%c0_32, %c0_33, %c40_34] : memref<1x3x512xf32, #tpu.memory_space<vmem>>, vector<1x3x384xf32>
    %29 = vector.shape_cast %28 : vector<1x3x384xf32> to vector<3x384xf32>
    %c48 = arith.constant 48 : index
    %c0_35 = arith.constant 0 : index
    %30 = vector.load %arg10[%c48, %c0_35] : memref<144x384xf32, #tpu.memory_space<vmem>>, vector<3x384xf32>
    tpu.vector_store %arg10[%c48, %c0_35], %29 {strides = array<i32>} : memref<144x384xf32, #tpu.memory_space<vmem>>, vector<3x384xf32>,
    %c0_36 = arith.constant 0 : index
    %c0_37 = arith.constant 0 : index
    %c41 = arith.constant 41 : index
    %31 = vector.load %arg1[%c0_36, %c0_37, %c41] : memref<1x3x512xf32, #tpu.memory_space<vmem>>, vector<1x3x384xf32>
    %32 = vector.shape_cast %31 : vector<1x3x384xf32> to vector<3x384xf32>
    %c56 = arith.constant 56 : index
    %c0_38 = arith.constant 0 : index
    %33 = vector.load %arg10[%c56, %c0_38] : memref<144x384xf32, #tpu.memory_space<vmem>>, vector<3x384xf32>
    tpu.vector_store %arg10[%c56, %c0_38], %32 {strides = array<i32>} : memref<144x384xf32, #tpu.memory_space<vmem>>, vector<3x384xf32>,
    %c0_39 = arith.constant 0 : index
    %c0_40 = arith.constant 0 : index
    %c42 = arith.constant 42 : index
    %34 = vector.load %arg1[%c0_39, %c0_40, %c42] : memref<1x3x512xf32, #tpu.memory_space<vmem>>, vector<1x3x384xf32>
    %35 = vector.shape_cast %34 : vector<1x3x384xf32> to vector<3x384xf32>
    %c64 = arith.constant 64 : index
    %c0_41 = arith.constant 0 : index
    %36 = vector.load %arg10[%c64, %c0_41] : memref<144x384xf32, #tpu.memory_space<vmem>>, vector<3x384xf32>
    tpu.vector_store %arg10[%c64, %c0_41], %35 {strides = array<i32>} : memref<144x384xf32, #tpu.memory_space<vmem>>, vector<3x384xf32>,
    %c0_42 = arith.constant 0 : index
    %c0_43 = arith.constant 0 : index
    %37 = vector.load %arg2[%c0_42, %c0_43] : memref<5x72xf32, #tpu.memory_space<vmem>>, vector<5x72xf32>
    %c0_44 = arith.constant 0 : index
    %c0_45 = arith.constant 0 : index
    %38 = vector.load %arg10[%c0_44, %c0_45] : memref<144x384xf32, #tpu.memory_space<vmem>>, vector<72x384xf32>
    %cst_46 = arith.constant dense<0.000000e+00> : vector<5x384xf32>
    %39 = tpu.matmul %37, %38, %cst_46 {dimension_numbers = #tpu.dot_dimension_numbers<[1], [0], [0], [1], [0, 0, 1, 1], [], []>} : vector<5x72xf32>, vector<72x384xf32>, vector<5x384xf32> -> vector<5x384xf32>
    %cst_47 = arith.constant 0.000000e+00 : f32
    %40 = vector.broadcast %cst_47 : f32 to vector<5x384xf32>
    %41 = arith.maximumf %39, %40 : vector<5x384xf32>
    %c0_48 = arith.constant 0 : index
    %c0_49 = arith.constant 0 : index
    %42 = vector.load %arg11[%c0_48, %c0_49] : memref<5x512xf32, #tpu.memory_space<vmem>>, vector<5x384xf32>
    tpu.vector_store %arg11[%c0_48, %c0_49], %41 {strides = array<i32>} : memref<5x512xf32, #tpu.memory_space<vmem>>, vector<5x384xf32>,
    %c0_50 = arith.constant 0 : index
    %c0_51 = arith.constant 0 : index
    %43 = vector.load %arg11[%c0_50, %c0_51] : memref<5x512xf32, #tpu.memory_space<vmem>>, vector<5x384xf32>
    %c0_52 = arith.constant 0 : index
    %c0_53 = arith.constant 0 : index
    %44 = vector.load %arg10[%c0_52, %c0_53] : memref<144x384xf32, #tpu.memory_space<vmem>>, vector<5x384xf32>
    tpu.vector_store %arg10[%c0_52, %c0_53], %43 {strides = array<i32>} : memref<144x384xf32, #tpu.memory_space<vmem>>, vector<5x384xf32>,
    %c0_54 = arith.constant 0 : index
    %c1_55 = arith.constant 1 : index
    %45 = vector.load %arg11[%c0_54, %c1_55] : memref<5x512xf32, #tpu.memory_space<vmem>>, vector<5x384xf32>
    %c8_56 = arith.constant 8 : index
    %c0_57 = arith.constant 0 : index
    %46 = vector.load %arg10[%c8_56, %c0_57] : memref<144x384xf32, #tpu.memory_space<vmem>>, vector<5x384xf32>
    tpu.vector_store %arg10[%c8_56, %c0_57], %45 {strides = array<i32>} : memref<144x384xf32, #tpu.memory_space<vmem>>, vector<5x384xf32>,
    %c0_58 = arith.constant 0 : index
    %c2_59 = arith.constant 2 : index
    %47 = vector.load %arg11[%c0_58, %c2_59] : memref<5x512xf32, #tpu.memory_space<vmem>>, vector<5x384xf32>
    %c16_60 = arith.constant 16 : index
    %c0_61 = arith.constant 0 : index
    %48 = vector.load %arg10[%c16_60, %c0_61] : memref<144x384xf32, #tpu.memory_space<vmem>>, vector<5x384xf32>
    tpu.vector_store %arg10[%c16_60, %c0_61], %47 {strides = array<i32>} : memref<144x384xf32, #tpu.memory_space<vmem>>, vector<5x384xf32>,
    %c0_62 = arith.constant 0 : index
    %c20_63 = arith.constant 20 : index
    %49 = vector.load %arg11[%c0_62, %c20_63] : memref<5x512xf32, #tpu.memory_space<vmem>>, vector<5x384xf32>
    %c24_64 = arith.constant 24 : index
    %c0_65 = arith.constant 0 : index
    %50 = vector.load %arg10[%c24_64, %c0_65] : memref<144x384xf32, #tpu.memory_space<vmem>>, vector<5x384xf32>
    tpu.vector_store %arg10[%c24_64, %c0_65], %49 {strides = array<i32>} : memref<144x384xf32, #tpu.memory_space<vmem>>, vector<5x384xf32>,
    %c0_66 = arith.constant 0 : index
    %c21_67 = arith.constant 21 : index
    %51 = vector.load %arg11[%c0_66, %c21_67] : memref<5x512xf32, #tpu.memory_space<vmem>>, vector<5x384xf32>
    %c32_68 = arith.constant 32 : index
    %c0_69 = arith.constant 0 : index
    %52 = vector.load %arg10[%c32_68, %c0_69] : memref<144x384xf32, #tpu.memory_space<vmem>>, vector<5x384xf32>
    tpu.vector_store %arg10[%c32_68, %c0_69], %51 {strides = array<i32>} : memref<144x384xf32, #tpu.memory_space<vmem>>, vector<5x384xf32>,
    %c0_70 = arith.constant 0 : index
    %c22_71 = arith.constant 22 : index
    %53 = vector.load %arg11[%c0_70, %c22_71] : memref<5x512xf32, #tpu.memory_space<vmem>>, vector<5x384xf32>
    %c40_72 = arith.constant 40 : index
    %c0_73 = arith.constant 0 : index
    %54 = vector.load %arg10[%c40_72, %c0_73] : memref<144x384xf32, #tpu.memory_space<vmem>>, vector<5x384xf32>
    tpu.vector_store %arg10[%c40_72, %c0_73], %53 {strides = array<i32>} : memref<144x384xf32, #tpu.memory_space<vmem>>, vector<5x384xf32>,
    %c0_74 = arith.constant 0 : index
    %c40_75 = arith.constant 40 : index
    %55 = vector.load %arg11[%c0_74, %c40_75] : memref<5x512xf32, #tpu.memory_space<vmem>>, vector<5x384xf32>
    %c48_76 = arith.constant 48 : index
    %c0_77 = arith.constant 0 : index
    %56 = vector.load %arg10[%c48_76, %c0_77] : memref<144x384xf32, #tpu.memory_space<vmem>>, vector<5x384xf32>
    tpu.vector_store %arg10[%c48_76, %c0_77], %55 {strides = array<i32>} : memref<144x384xf32, #tpu.memory_space<vmem>>, vector<5x384xf32>,
    %c0_78 = arith.constant 0 : index
    %c41_79 = arith.constant 41 : index
    %57 = vector.load %arg11[%c0_78, %c41_79] : memref<5x512xf32, #tpu.memory_space<vmem>>, vector<5x384xf32>
    %c56_80 = arith.constant 56 : index
    %c0_81 = arith.constant 0 : index
    %58 = vector.load %arg10[%c56_80, %c0_81] : memref<144x384xf32, #tpu.memory_space<vmem>>, vector<5x384xf32>
    tpu.vector_store %arg10[%c56_80, %c0_81], %57 {strides = array<i32>} : memref<144x384xf32, #tpu.memory_space<vmem>>, vector<5x384xf32>,
    %c0_82 = arith.constant 0 : index
    %c42_83 = arith.constant 42 : index
    %59 = vector.load %arg11[%c0_82, %c42_83] : memref<5x512xf32, #tpu.memory_space<vmem>>, vector<5x384xf32>
    %c64_84 = arith.constant 64 : index
    %c0_85 = arith.constant 0 : index
    %60 = vector.load %arg10[%c64_84, %c0_85] : memref<144x384xf32, #tpu.memory_space<vmem>>, vector<5x384xf32>
    tpu.vector_store %arg10[%c64_84, %c0_85], %59 {strides = array<i32>} : memref<144x384xf32, #tpu.memory_space<vmem>>, vector<5x384xf32>,
    %c0_86 = arith.constant 0 : index
    %c0_87 = arith.constant 0 : index
    %61 = vector.load %arg3[%c0_86, %c0_87] : memref<15x72xf32, #tpu.memory_space<vmem>>, vector<15x72xf32>
    %c0_88 = arith.constant 0 : index
    %c0_89 = arith.constant 0 : index
    %62 = vector.load %arg10[%c0_88, %c0_89] : memref<144x384xf32, #tpu.memory_space<vmem>>, vector<72x384xf32>
    %cst_90 = arith.constant dense<0.000000e+00> : vector<15x384xf32>
    %63 = tpu.matmul %61, %62, %cst_90 {dimension_numbers = #tpu.dot_dimension_numbers<[1], [0], [0], [1], [0, 0, 1, 1], [], []>} : vector<15x72xf32>, vector<72x384xf32>, vector<15x384xf32> -> vector<15x384xf32>
    %cst_91 = arith.constant 0.000000e+00 : f32
    %64 = vector.broadcast %cst_91 : f32 to vector<15x384xf32>
    %65 = arith.maximumf %63, %64 : vector<15x384xf32>
    %c0_92 = arith.constant 0 : index
    %c0_93 = arith.constant 0 : index
    %66 = vector.load %arg13[%c0_92, %c0_93] : memref<15x512xf32, #tpu.memory_space<vmem>>, vector<15x384xf32>
    tpu.vector_store %arg13[%c0_92, %c0_93], %65 {strides = array<i32>} : memref<15x512xf32, #tpu.memory_space<vmem>>, vector<15x384xf32>,
    %c0_94 = arith.constant 0 : index
    %c0_95 = arith.constant 0 : index
    %67 = vector.load %arg13[%c0_94, %c0_95] : memref<15x512xf32, #tpu.memory_space<vmem>>, vector<15x384xf32>
    %c0_96 = arith.constant 0 : index
    %c0_97 = arith.constant 0 : index
    %68 = vector.load %arg10[%c0_96, %c0_97] : memref<144x384xf32, #tpu.memory_space<vmem>>, vector<15x384xf32>
    tpu.vector_store %arg10[%c0_96, %c0_97], %67 {strides = array<i32>} : memref<144x384xf32, #tpu.memory_space<vmem>>, vector<15x384xf32>,
    %c0_98 = arith.constant 0 : index
    %c1_99 = arith.constant 1 : index
    %69 = vector.load %arg13[%c0_98, %c1_99] : memref<15x512xf32, #tpu.memory_space<vmem>>, vector<15x384xf32>
    %c16_100 = arith.constant 16 : index
    %c0_101 = arith.constant 0 : index
    %70 = vector.load %arg10[%c16_100, %c0_101] : memref<144x384xf32, #tpu.memory_space<vmem>>, vector<15x384xf32>
    tpu.vector_store %arg10[%c16_100, %c0_101], %69 {strides = array<i32>} : memref<144x384xf32, #tpu.memory_space<vmem>>, vector<15x384xf32>,
    %c0_102 = arith.constant 0 : index
    %c2_103 = arith.constant 2 : index
    %71 = vector.load %arg13[%c0_102, %c2_103] : memref<15x512xf32, #tpu.memory_space<vmem>>, vector<15x384xf32>
    %c32_104 = arith.constant 32 : index
    %c0_105 = arith.constant 0 : index
    %72 = vector.load %arg10[%c32_104, %c0_105] : memref<144x384xf32, #tpu.memory_space<vmem>>, vector<15x384xf32>
    tpu.vector_store %arg10[%c32_104, %c0_105], %71 {strides = array<i32>} : memref<144x384xf32, #tpu.memory_space<vmem>>, vector<15x384xf32>,
    %c0_106 = arith.constant 0 : index
    %c20_107 = arith.constant 20 : index
    %73 = vector.load %arg13[%c0_106, %c20_107] : memref<15x512xf32, #tpu.memory_space<vmem>>, vector<15x384xf32>
    %c48_108 = arith.constant 48 : index
    %c0_109 = arith.constant 0 : index
    %74 = vector.load %arg10[%c48_108, %c0_109] : memref<144x384xf32, #tpu.memory_space<vmem>>, vector<15x384xf32>
    tpu.vector_store %arg10[%c48_108, %c0_109], %73 {strides = array<i32>} : memref<144x384xf32, #tpu.memory_space<vmem>>, vector<15x384xf32>,
    %c0_110 = arith.constant 0 : index
    %c21_111 = arith.constant 21 : index
    %75 = vector.load %arg13[%c0_110, %c21_111] : memref<15x512xf32, #tpu.memory_space<vmem>>, vector<15x384xf32>
    %c64_112 = arith.constant 64 : index
    %c0_113 = arith.constant 0 : index
    %76 = vector.load %arg10[%c64_112, %c0_113] : memref<144x384xf32, #tpu.memory_space<vmem>>, vector<15x384xf32>
    tpu.vector_store %arg10[%c64_112, %c0_113], %75 {strides = array<i32>} : memref<144x384xf32, #tpu.memory_space<vmem>>, vector<15x384xf32>,
    %c0_114 = arith.constant 0 : index
    %c22_115 = arith.constant 22 : index
    %77 = vector.load %arg13[%c0_114, %c22_115] : memref<15x512xf32, #tpu.memory_space<vmem>>, vector<15x384xf32>
    %c80 = arith.constant 80 : index
    %c0_116 = arith.constant 0 : index
    %78 = vector.load %arg10[%c80, %c0_116] : memref<144x384xf32, #tpu.memory_space<vmem>>, vector<15x384xf32>
    tpu.vector_store %arg10[%c80, %c0_116], %77 {strides = array<i32>} : memref<144x384xf32, #tpu.memory_space<vmem>>, vector<15x384xf32>,
    %c0_117 = arith.constant 0 : index
    %c40_118 = arith.constant 40 : index
    %79 = vector.load %arg13[%c0_117, %c40_118] : memref<15x512xf32, #tpu.memory_space<vmem>>, vector<15x384xf32>
    %c96 = arith.constant 96 : index
    %c0_119 = arith.constant 0 : index
    %80 = vector.load %arg10[%c96, %c0_119] : memref<144x384xf32, #tpu.memory_space<vmem>>, vector<15x384xf32>
    tpu.vector_store %arg10[%c96, %c0_119], %79 {strides = array<i32>} : memref<144x384xf32, #tpu.memory_space<vmem>>, vector<15x384xf32>,
    %c0_120 = arith.constant 0 : index
    %c41_121 = arith.constant 41 : index
    %81 = vector.load %arg13[%c0_120, %c41_121] : memref<15x512xf32, #tpu.memory_space<vmem>>, vector<15x384xf32>
    %c112 = arith.constant 112 : index
    %c0_122 = arith.constant 0 : index
    %82 = vector.load %arg10[%c112, %c0_122] : memref<144x384xf32, #tpu.memory_space<vmem>>, vector<15x384xf32>
    tpu.vector_store %arg10[%c112, %c0_122], %81 {strides = array<i32>} : memref<144x384xf32, #tpu.memory_space<vmem>>, vector<15x384xf32>,
    %c0_123 = arith.constant 0 : index
    %c42_124 = arith.constant 42 : index
    %83 = vector.load %arg13[%c0_123, %c42_124] : memref<15x512xf32, #tpu.memory_space<vmem>>, vector<15x384xf32>
    %c128 = arith.constant 128 : index
    %c0_125 = arith.constant 0 : index
    %84 = vector.load %arg10[%c128, %c0_125] : memref<144x384xf32, #tpu.memory_space<vmem>>, vector<15x384xf32>
    tpu.vector_store %arg10[%c128, %c0_125], %83 {strides = array<i32>} : memref<144x384xf32, #tpu.memory_space<vmem>>, vector<15x384xf32>,
    %c0_126 = arith.constant 0 : index
    %c0_127 = arith.constant 0 : index
    %85 = vector.load %arg4[%c0_126, %c0_127] : memref<5x144xf32, #tpu.memory_space<vmem>>, vector<5x144xf32>
    %c0_128 = arith.constant 0 : index
    %c0_129 = arith.constant 0 : index
    %86 = vector.load %arg10[%c0_128, %c0_129] : memref<144x384xf32, #tpu.memory_space<vmem>>, vector<144x384xf32>
    %cst_130 = arith.constant dense<0.000000e+00> : vector<5x384xf32>
    %87 = tpu.matmul %85, %86, %cst_130 {dimension_numbers = #tpu.dot_dimension_numbers<[1], [0], [0], [1], [0, 0, 1, 1], [], []>} : vector<5x144xf32>, vector<144x384xf32>, vector<5x384xf32> -> vector<5x384xf32>
    %c0_131 = arith.constant 0 : index
    %c42_132 = arith.constant 42 : index
    %88 = vector.load %arg11[%c0_131, %c42_132] : memref<5x512xf32, #tpu.memory_space<vmem>>, vector<5x384xf32>
    %89 = arith.addf %87, %88 : vector<5x384xf32>
    %cst_133 = arith.constant 0.000000e+00 : f32
    %90 = vector.broadcast %cst_133 : f32 to vector<5x384xf32>
    %91 = arith.maximumf %89, %90 : vector<5x384xf32>
    %c0_134 = arith.constant 0 : index
    %c0_135 = arith.constant 0 : index
    %92 = vector.load %arg12[%c0_134, %c0_135] : memref<5x512xf32, #tpu.memory_space<vmem>>, vector<5x384xf32>
    tpu.vector_store %arg12[%c0_134, %c0_135], %91 {strides = array<i32>} : memref<5x512xf32, #tpu.memory_space<vmem>>, vector<5x384xf32>,
    %c0_136 = arith.constant 0 : index
    %c0_137 = arith.constant 0 : index
    %93 = vector.load %arg12[%c0_136, %c0_137] : memref<5x512xf32, #tpu.memory_space<vmem>>, vector<5x384xf32>
    %c0_138 = arith.constant 0 : index
    %c0_139 = arith.constant 0 : index
    %94 = vector.load %arg10[%c0_138, %c0_139] : memref<144x384xf32, #tpu.memory_space<vmem>>, vector<5x384xf32>
    tpu.vector_store %arg10[%c0_138, %c0_139], %93 {strides = array<i32>} : memref<144x384xf32, #tpu.memory_space<vmem>>, vector<5x384xf32>,
    %c0_140 = arith.constant 0 : index
    %c1_141 = arith.constant 1 : index
    %95 = vector.load %arg12[%c0_140, %c1_141] : memref<5x512xf32, #tpu.memory_space<vmem>>, vector<5x384xf32>
    %c8_142 = arith.constant 8 : index
    %c0_143 = arith.constant 0 : index
    %96 = vector.load %arg10[%c8_142, %c0_143] : memref<144x384xf32, #tpu.memory_space<vmem>>, vector<5x384xf32>
    tpu.vector_store %arg10[%c8_142, %c0_143], %95 {strides = array<i32>} : memref<144x384xf32, #tpu.memory_space<vmem>>, vector<5x384xf32>,
    %c0_144 = arith.constant 0 : index
    %c2_145 = arith.constant 2 : index
    %97 = vector.load %arg12[%c0_144, %c2_145] : memref<5x512xf32, #tpu.memory_space<vmem>>, vector<5x384xf32>
    %c16_146 = arith.constant 16 : index
    %c0_147 = arith.constant 0 : index
    %98 = vector.load %arg10[%c16_146, %c0_147] : memref<144x384xf32, #tpu.memory_space<vmem>>, vector<5x384xf32>
    tpu.vector_store %arg10[%c16_146, %c0_147], %97 {strides = array<i32>} : memref<144x384xf32, #tpu.memory_space<vmem>>, vector<5x384xf32>,
    %c0_148 = arith.constant 0 : index
    %c20_149 = arith.constant 20 : index
    %99 = vector.load %arg12[%c0_148, %c20_149] : memref<5x512xf32, #tpu.memory_space<vmem>>, vector<5x384xf32>
    %c24_150 = arith.constant 24 : index
    %c0_151 = arith.constant 0 : index
    %100 = vector.load %arg10[%c24_150, %c0_151] : memref<144x384xf32, #tpu.memory_space<vmem>>, vector<5x384xf32>
    tpu.vector_store %arg10[%c24_150, %c0_151], %99 {strides = array<i32>} : memref<144x384xf32, #tpu.memory_space<vmem>>, vector<5x384xf32>,
    %c0_152 = arith.constant 0 : index
    %c21_153 = arith.constant 21 : index
    %101 = vector.load %arg12[%c0_152, %c21_153] : memref<5x512xf32, #tpu.memory_space<vmem>>, vector<5x384xf32>
    %c32_154 = arith.constant 32 : index
    %c0_155 = arith.constant 0 : index
    %102 = vector.load %arg10[%c32_154, %c0_155] : memref<144x384xf32, #tpu.memory_space<vmem>>, vector<5x384xf32>
    tpu.vector_store %arg10[%c32_154, %c0_155], %101 {strides = array<i32>} : memref<144x384xf32, #tpu.memory_space<vmem>>, vector<5x384xf32>,
    %c0_156 = arith.constant 0 : index
    %c22_157 = arith.constant 22 : index
    %103 = vector.load %arg12[%c0_156, %c22_157] : memref<5x512xf32, #tpu.memory_space<vmem>>, vector<5x384xf32>
    %c40_158 = arith.constant 40 : index
    %c0_159 = arith.constant 0 : index
    %104 = vector.load %arg10[%c40_158, %c0_159] : memref<144x384xf32, #tpu.memory_space<vmem>>, vector<5x384xf32>
    tpu.vector_store %arg10[%c40_158, %c0_159], %103 {strides = array<i32>} : memref<144x384xf32, #tpu.memory_space<vmem>>, vector<5x384xf32>,
    %c0_160 = arith.constant 0 : index
    %c40_161 = arith.constant 40 : index
    %105 = vector.load %arg12[%c0_160, %c40_161] : memref<5x512xf32, #tpu.memory_space<vmem>>, vector<5x384xf32>
    %c48_162 = arith.constant 48 : index
    %c0_163 = arith.constant 0 : index
    %106 = vector.load %arg10[%c48_162, %c0_163] : memref<144x384xf32, #tpu.memory_space<vmem>>, vector<5x384xf32>
    tpu.vector_store %arg10[%c48_162, %c0_163], %105 {strides = array<i32>} : memref<144x384xf32, #tpu.memory_space<vmem>>, vector<5x384xf32>,
    %c0_164 = arith.constant 0 : index
    %c41_165 = arith.constant 41 : index
    %107 = vector.load %arg12[%c0_164, %c41_165] : memref<5x512xf32, #tpu.memory_space<vmem>>, vector<5x384xf32>
    %c56_166 = arith.constant 56 : index
    %c0_167 = arith.constant 0 : index
    %108 = vector.load %arg10[%c56_166, %c0_167] : memref<144x384xf32, #tpu.memory_space<vmem>>, vector<5x384xf32>
    tpu.vector_store %arg10[%c56_166, %c0_167], %107 {strides = array<i32>} : memref<144x384xf32, #tpu.memory_space<vmem>>, vector<5x384xf32>,
    %c0_168 = arith.constant 0 : index
    %c42_169 = arith.constant 42 : index
    %109 = vector.load %arg12[%c0_168, %c42_169] : memref<5x512xf32, #tpu.memory_space<vmem>>, vector<5x384xf32>
    %c64_170 = arith.constant 64 : index
    %c0_171 = arith.constant 0 : index
    %110 = vector.load %arg10[%c64_170, %c0_171] : memref<144x384xf32, #tpu.memory_space<vmem>>, vector<5x384xf32>
    tpu.vector_store %arg10[%c64_170, %c0_171], %109 {strides = array<i32>} : memref<144x384xf32, #tpu.memory_space<vmem>>, vector<5x384xf32>,
    %c0_172 = arith.constant 0 : index
    %c0_173 = arith.constant 0 : index
    %111 = vector.load %arg5[%c0_172, %c0_173] : memref<15x72xf32, #tpu.memory_space<vmem>>, vector<15x72xf32>
    %c0_174 = arith.constant 0 : index
    %c0_175 = arith.constant 0 : index
    %112 = vector.load %arg10[%c0_174, %c0_175] : memref<144x384xf32, #tpu.memory_space<vmem>>, vector<72x384xf32>
    %cst_176 = arith.constant dense<0.000000e+00> : vector<15x384xf32>
    %113 = tpu.matmul %111, %112, %cst_176 {dimension_numbers = #tpu.dot_dimension_numbers<[1], [0], [0], [1], [0, 0, 1, 1], [], []>} : vector<15x72xf32>, vector<72x384xf32>, vector<15x384xf32> -> vector<15x384xf32>
    %cst_177 = arith.constant 0.000000e+00 : f32
    %114 = vector.broadcast %cst_177 : f32 to vector<15x384xf32>
    %115 = arith.maximumf %113, %114 : vector<15x384xf32>
    %c0_178 = arith.constant 0 : index
    %c0_179 = arith.constant 0 : index
    %116 = vector.load %arg14[%c0_178, %c0_179] : memref<15x512xf32, #tpu.memory_space<vmem>>, vector<15x384xf32>
    tpu.vector_store %arg14[%c0_178, %c0_179], %115 {strides = array<i32>} : memref<15x512xf32, #tpu.memory_space<vmem>>, vector<15x384xf32>,
    %c0_180 = arith.constant 0 : index
    %c0_181 = arith.constant 0 : index
    %117 = vector.load %arg14[%c0_180, %c0_181] : memref<15x512xf32, #tpu.memory_space<vmem>>, vector<15x384xf32>
    %c0_182 = arith.constant 0 : index
    %c0_183 = arith.constant 0 : index
    %118 = vector.load %arg10[%c0_182, %c0_183] : memref<144x384xf32, #tpu.memory_space<vmem>>, vector<15x384xf32>
    tpu.vector_store %arg10[%c0_182, %c0_183], %117 {strides = array<i32>} : memref<144x384xf32, #tpu.memory_space<vmem>>, vector<15x384xf32>,
    %c0_184 = arith.constant 0 : index
    %c1_185 = arith.constant 1 : index
    %119 = vector.load %arg14[%c0_184, %c1_185] : memref<15x512xf32, #tpu.memory_space<vmem>>, vector<15x384xf32>
    %c16_186 = arith.constant 16 : index
    %c0_187 = arith.constant 0 : index
    %120 = vector.load %arg10[%c16_186, %c0_187] : memref<144x384xf32, #tpu.memory_space<vmem>>, vector<15x384xf32>
    tpu.vector_store %arg10[%c16_186, %c0_187], %119 {strides = array<i32>} : memref<144x384xf32, #tpu.memory_space<vmem>>, vector<15x384xf32>,
    %c0_188 = arith.constant 0 : index
    %c2_189 = arith.constant 2 : index
    %121 = vector.load %arg14[%c0_188, %c2_189] : memref<15x512xf32, #tpu.memory_space<vmem>>, vector<15x384xf32>
    %c32_190 = arith.constant 32 : index
    %c0_191 = arith.constant 0 : index
    %122 = vector.load %arg10[%c32_190, %c0_191] : memref<144x384xf32, #tpu.memory_space<vmem>>, vector<15x384xf32>
    tpu.vector_store %arg10[%c32_190, %c0_191], %121 {strides = array<i32>} : memref<144x384xf32, #tpu.memory_space<vmem>>, vector<15x384xf32>,
    %c0_192 = arith.constant 0 : index
    %c20_193 = arith.constant 20 : index
    %123 = vector.load %arg14[%c0_192, %c20_193] : memref<15x512xf32, #tpu.memory_space<vmem>>, vector<15x384xf32>
    %c48_194 = arith.constant 48 : index
    %c0_195 = arith.constant 0 : index
    %124 = vector.load %arg10[%c48_194, %c0_195] : memref<144x384xf32, #tpu.memory_space<vmem>>, vector<15x384xf32>
    tpu.vector_store %arg10[%c48_194, %c0_195], %123 {strides = array<i32>} : memref<144x384xf32, #tpu.memory_space<vmem>>, vector<15x384xf32>,
    %c0_196 = arith.constant 0 : index
    %c21_197 = arith.constant 21 : index
    %125 = vector.load %arg14[%c0_196, %c21_197] : memref<15x512xf32, #tpu.memory_space<vmem>>, vector<15x384xf32>
    %c64_198 = arith.constant 64 : index
    %c0_199 = arith.constant 0 : index
    %126 = vector.load %arg10[%c64_198, %c0_199] : memref<144x384xf32, #tpu.memory_space<vmem>>, vector<15x384xf32>
    tpu.vector_store %arg10[%c64_198, %c0_199], %125 {strides = array<i32>} : memref<144x384xf32, #tpu.memory_space<vmem>>, vector<15x384xf32>,
    %c0_200 = arith.constant 0 : index
    %c22_201 = arith.constant 22 : index
    %127 = vector.load %arg14[%c0_200, %c22_201] : memref<15x512xf32, #tpu.memory_space<vmem>>, vector<15x384xf32>
    %c80_202 = arith.constant 80 : index
    %c0_203 = arith.constant 0 : index
    %128 = vector.load %arg10[%c80_202, %c0_203] : memref<144x384xf32, #tpu.memory_space<vmem>>, vector<15x384xf32>
    tpu.vector_store %arg10[%c80_202, %c0_203], %127 {strides = array<i32>} : memref<144x384xf32, #tpu.memory_space<vmem>>, vector<15x384xf32>,
    %c0_204 = arith.constant 0 : index
    %c40_205 = arith.constant 40 : index
    %129 = vector.load %arg14[%c0_204, %c40_205] : memref<15x512xf32, #tpu.memory_space<vmem>>, vector<15x384xf32>
    %c96_206 = arith.constant 96 : index
    %c0_207 = arith.constant 0 : index
    %130 = vector.load %arg10[%c96_206, %c0_207] : memref<144x384xf32, #tpu.memory_space<vmem>>, vector<15x384xf32>
    tpu.vector_store %arg10[%c96_206, %c0_207], %129 {strides = array<i32>} : memref<144x384xf32, #tpu.memory_space<vmem>>, vector<15x384xf32>,
    %c0_208 = arith.constant 0 : index
    %c41_209 = arith.constant 41 : index
    %131 = vector.load %arg14[%c0_208, %c41_209] : memref<15x512xf32, #tpu.memory_space<vmem>>, vector<15x384xf32>
    %c112_210 = arith.constant 112 : index
    %c0_211 = arith.constant 0 : index
    %132 = vector.load %arg10[%c112_210, %c0_211] : memref<144x384xf32, #tpu.memory_space<vmem>>, vector<15x384xf32>
    tpu.vector_store %arg10[%c112_210, %c0_211], %131 {strides = array<i32>} : memref<144x384xf32, #tpu.memory_space<vmem>>, vector<15x384xf32>,
    %c0_212 = arith.constant 0 : index
    %c42_213 = arith.constant 42 : index
    %133 = vector.load %arg14[%c0_212, %c42_213] : memref<15x512xf32, #tpu.memory_space<vmem>>, vector<15x384xf32>
    %c128_214 = arith.constant 128 : index
    %c0_215 = arith.constant 0 : index
    %134 = vector.load %arg10[%c128_214, %c0_215] : memref<144x384xf32, #tpu.memory_space<vmem>>, vector<15x384xf32>
    tpu.vector_store %arg10[%c128_214, %c0_215], %133 {strides = array<i32>} : memref<144x384xf32, #tpu.memory_space<vmem>>, vector<15x384xf32>,
    %c0_216 = arith.constant 0 : index
    %c0_217 = arith.constant 0 : index
    %135 = vector.load %arg6[%c0_216, %c0_217] : memref<10x144xf32, #tpu.memory_space<vmem>>, vector<10x144xf32>
    %c0_218 = arith.constant 0 : index
    %c0_219 = arith.constant 0 : index
    %136 = vector.load %arg10[%c0_218, %c0_219] : memref<144x384xf32, #tpu.memory_space<vmem>>, vector<144x384xf32>
    %cst_220 = arith.constant dense<0.000000e+00> : vector<10x384xf32>
    %137 = tpu.matmul %135, %136, %cst_220 {dimension_numbers = #tpu.dot_dimension_numbers<[1], [0], [0], [1], [0, 0, 1, 1], [], []>} : vector<10x144xf32>, vector<144x384xf32>, vector<10x384xf32> -> vector<10x384xf32>
    %cst_221 = arith.constant 0.000000e+00 : f32
    %138 = vector.broadcast %cst_221 : f32 to vector<10x384xf32>
    %139 = arith.maximumf %137, %138 : vector<10x384xf32>
    %c0_222 = arith.constant 0 : index
    %c0_223 = arith.constant 0 : index
    %140 = vector.load %arg13[%c0_222, %c0_223] : memref<15x512xf32, #tpu.memory_space<vmem>>, vector<10x384xf32>
    tpu.vector_store %arg13[%c0_222, %c0_223], %139 {strides = array<i32>} : memref<15x512xf32, #tpu.memory_space<vmem>>, vector<10x384xf32>,
    %c0_224 = arith.constant 0 : index
    %c0_225 = arith.constant 0 : index
    %141 = vector.load %arg13[%c0_224, %c0_225] : memref<15x512xf32, #tpu.memory_space<vmem>>, vector<10x384xf32>
    %c0_226 = arith.constant 0 : index
    %c0_227 = arith.constant 0 : index
    %142 = vector.load %arg10[%c0_226, %c0_227] : memref<144x384xf32, #tpu.memory_space<vmem>>, vector<10x384xf32>
    tpu.vector_store %arg10[%c0_226, %c0_227], %141 {strides = array<i32>} : memref<144x384xf32, #tpu.memory_space<vmem>>, vector<10x384xf32>,
    %c0_228 = arith.constant 0 : index
    %c1_229 = arith.constant 1 : index
    %143 = vector.load %arg13[%c0_228, %c1_229] : memref<15x512xf32, #tpu.memory_space<vmem>>, vector<10x384xf32>
    %c16_230 = arith.constant 16 : index
    %c0_231 = arith.constant 0 : index
    %144 = vector.load %arg10[%c16_230, %c0_231] : memref<144x384xf32, #tpu.memory_space<vmem>>, vector<10x384xf32>
    tpu.vector_store %arg10[%c16_230, %c0_231], %143 {strides = array<i32>} : memref<144x384xf32, #tpu.memory_space<vmem>>, vector<10x384xf32>,
    %c0_232 = arith.constant 0 : index
    %c2_233 = arith.constant 2 : index
    %145 = vector.load %arg13[%c0_232, %c2_233] : memref<15x512xf32, #tpu.memory_space<vmem>>, vector<10x384xf32>
    %c32_234 = arith.constant 32 : index
    %c0_235 = arith.constant 0 : index
    %146 = vector.load %arg10[%c32_234, %c0_235] : memref<144x384xf32, #tpu.memory_space<vmem>>, vector<10x384xf32>
    tpu.vector_store %arg10[%c32_234, %c0_235], %145 {strides = array<i32>} : memref<144x384xf32, #tpu.memory_space<vmem>>, vector<10x384xf32>,
    %c0_236 = arith.constant 0 : index
    %c20_237 = arith.constant 20 : index
    %147 = vector.load %arg13[%c0_236, %c20_237] : memref<15x512xf32, #tpu.memory_space<vmem>>, vector<10x384xf32>
    %c48_238 = arith.constant 48 : index
    %c0_239 = arith.constant 0 : index
    %148 = vector.load %arg10[%c48_238, %c0_239] : memref<144x384xf32, #tpu.memory_space<vmem>>, vector<10x384xf32>
    tpu.vector_store %arg10[%c48_238, %c0_239], %147 {strides = array<i32>} : memref<144x384xf32, #tpu.memory_space<vmem>>, vector<10x384xf32>,
    %c0_240 = arith.constant 0 : index
    %c21_241 = arith.constant 21 : index
    %149 = vector.load %arg13[%c0_240, %c21_241] : memref<15x512xf32, #tpu.memory_space<vmem>>, vector<10x384xf32>
    %c64_242 = arith.constant 64 : index
    %c0_243 = arith.constant 0 : index
    %150 = vector.load %arg10[%c64_242, %c0_243] : memref<144x384xf32, #tpu.memory_space<vmem>>, vector<10x384xf32>
    tpu.vector_store %arg10[%c64_242, %c0_243], %149 {strides = array<i32>} : memref<144x384xf32, #tpu.memory_space<vmem>>, vector<10x384xf32>,
    %c0_244 = arith.constant 0 : index
    %c22_245 = arith.constant 22 : index
    %151 = vector.load %arg13[%c0_244, %c22_245] : memref<15x512xf32, #tpu.memory_space<vmem>>, vector<10x384xf32>
    %c80_246 = arith.constant 80 : index
    %c0_247 = arith.constant 0 : index
    %152 = vector.load %arg10[%c80_246, %c0_247] : memref<144x384xf32, #tpu.memory_space<vmem>>, vector<10x384xf32>
    tpu.vector_store %arg10[%c80_246, %c0_247], %151 {strides = array<i32>} : memref<144x384xf32, #tpu.memory_space<vmem>>, vector<10x384xf32>,
    %c0_248 = arith.constant 0 : index
    %c40_249 = arith.constant 40 : index
    %153 = vector.load %arg13[%c0_248, %c40_249] : memref<15x512xf32, #tpu.memory_space<vmem>>, vector<10x384xf32>
    %c96_250 = arith.constant 96 : index
    %c0_251 = arith.constant 0 : index
    %154 = vector.load %arg10[%c96_250, %c0_251] : memref<144x384xf32, #tpu.memory_space<vmem>>, vector<10x384xf32>
    tpu.vector_store %arg10[%c96_250, %c0_251], %153 {strides = array<i32>} : memref<144x384xf32, #tpu.memory_space<vmem>>, vector<10x384xf32>,
    %c0_252 = arith.constant 0 : index
    %c41_253 = arith.constant 41 : index
    %155 = vector.load %arg13[%c0_252, %c41_253] : memref<15x512xf32, #tpu.memory_space<vmem>>, vector<10x384xf32>
    %c112_254 = arith.constant 112 : index
    %c0_255 = arith.constant 0 : index
    %156 = vector.load %arg10[%c112_254, %c0_255] : memref<144x384xf32, #tpu.memory_space<vmem>>, vector<10x384xf32>
    tpu.vector_store %arg10[%c112_254, %c0_255], %155 {strides = array<i32>} : memref<144x384xf32, #tpu.memory_space<vmem>>, vector<10x384xf32>,
    %c0_256 = arith.constant 0 : index
    %c42_257 = arith.constant 42 : index
    %157 = vector.load %arg13[%c0_256, %c42_257] : memref<15x512xf32, #tpu.memory_space<vmem>>, vector<10x384xf32>
    %c128_258 = arith.constant 128 : index
    %c0_259 = arith.constant 0 : index
    %158 = vector.load %arg10[%c128_258, %c0_259] : memref<144x384xf32, #tpu.memory_space<vmem>>, vector<10x384xf32>
    tpu.vector_store %arg10[%c128_258, %c0_259], %157 {strides = array<i32>} : memref<144x384xf32, #tpu.memory_space<vmem>>, vector<10x384xf32>,
    %c0_260 = arith.constant 0 : index
    %c0_261 = arith.constant 0 : index
    %159 = vector.load %arg7[%c0_260, %c0_261] : memref<5x144xf32, #tpu.memory_space<vmem>>, vector<5x144xf32>
    %c0_262 = arith.constant 0 : index
    %c0_263 = arith.constant 0 : index
    %160 = vector.load %arg10[%c0_262, %c0_263] : memref<144x384xf32, #tpu.memory_space<vmem>>, vector<144x384xf32>
    %cst_264 = arith.constant dense<0.000000e+00> : vector<5x384xf32>
    %161 = tpu.matmul %159, %160, %cst_264 {dimension_numbers = #tpu.dot_dimension_numbers<[1], [0], [0], [1], [0, 0, 1, 1], [], []>} : vector<5x144xf32>, vector<144x384xf32>, vector<5x384xf32> -> vector<5x384xf32>
    %c0_265 = arith.constant 0 : index
    %c63 = arith.constant 63 : index
    %162 = vector.load %arg12[%c0_265, %c63] : memref<5x512xf32, #tpu.memory_space<vmem>>, vector<5x384xf32>
    %163 = arith.addf %161, %162 : vector<5x384xf32>
    %cst_266 = arith.constant 0.000000e+00 : f32
    %164 = vector.broadcast %cst_266 : f32 to vector<5x384xf32>
    %165 = arith.maximumf %163, %164 : vector<5x384xf32>
    %c0_267 = arith.constant 0 : index
    %c0_268 = arith.constant 0 : index
    %166 = vector.load %arg14[%c0_267, %c0_268] : memref<15x512xf32, #tpu.memory_space<vmem>>, vector<5x384xf32>
    tpu.vector_store %arg14[%c0_267, %c0_268], %165 {strides = array<i32>} : memref<15x512xf32, #tpu.memory_space<vmem>>, vector<5x384xf32>,
    %c0_269 = arith.constant 0 : index
    %c0_270 = arith.constant 0 : index
    %167 = vector.load %arg8[%c0_269, %c0_270] : memref<3x5xf32, #tpu.memory_space<vmem>>, vector<3x5xf32>
    %c0_271 = arith.constant 0 : index
    %c0_272 = arith.constant 0 : index
    %168 = vector.load %arg14[%c0_271, %c0_272] : memref<15x512xf32, #tpu.memory_space<vmem>>, vector<5x384xf32>
    %cst_273 = arith.constant dense<0.000000e+00> : vector<3x384xf32>
    %169 = tpu.matmul %167, %168, %cst_273 {dimension_numbers = #tpu.dot_dimension_numbers<[1], [0], [0], [1], [0, 0, 1, 1], [], []>} : vector<3x5xf32>, vector<5x384xf32>, vector<3x384xf32> -> vector<3x384xf32>
    %c0_274 = arith.constant 0 : index
    %c0_275 = arith.constant 0 : index
    %c0_276 = arith.constant 0 : index
    %170 = vector.load %arg9[%c0_274, %c0_275, %c0_276] : memref<1x3x512xf32, #tpu.memory_space<vmem>>, vector<1x3x384xf32>
    %171 = vector.shape_cast %170 : vector<1x3x384xf32> to vector<3x384xf32>
    %172 = vector.shape_cast %169 : vector<3x384xf32> to vector<1x3x384xf32>
    tpu.vector_store %arg9[%c0_274, %c0_275, %c0_276], %172 {strides = array<i32>} : memref<1x3x512xf32, #tpu.memory_space<vmem>>, vector<1x3x384xf32>,
    return
  }
  func.func @transform_0(%arg0: i32) -> (i32, i32, i32) {
    %c0_i32 = arith.constant 0 : i32
    %c0_i32_0 = arith.constant 0 : i32
    %c0_i32_1 = arith.constant 0 : i32
    return %arg0, %c0_i32, %c0_i32_0 : i32, i32, i32
  }
  func.func @transform_1(%arg0: i32) -> (i32, i32) {
    %c0_i32 = arith.constant 0 : i32
    %c0_i32_0 = arith.constant 0 : i32
    %c0_i32_1 = arith.constant 0 : i32
    return %c0_i32, %c0_i32_0 : i32, i32
  }
  func.func @transform_2(%arg0: i32) -> (i32, i32) {
    %c0_i32 = arith.constant 0 : i32
    %c0_i32_0 = arith.constant 0 : i32
    %c0_i32_1 = arith.constant 0 : i32
    return %c0_i32, %c0_i32_0 : i32, i32
  }
  func.func @transform_3(%arg0: i32) -> (i32, i32) {
    %c0_i32 = arith.constant 0 : i32
    %c0_i32_0 = arith.constant 0 : i32
    %c0_i32_1 = arith.constant 0 : i32
    return %c0_i32, %c0_i32_0 : i32, i32
  }
  func.func @transform_4(%arg0: i32) -> (i32, i32) {
    %c0_i32 = arith.constant 0 : i32
    %c0_i32_0 = arith.constant 0 : i32
    %c0_i32_1 = arith.constant 0 : i32
    return %c0_i32, %c0_i32_0 : i32, i32
  }
  func.func @transform_5(%arg0: i32) -> (i32, i32) {
    %c0_i32 = arith.constant 0 : i32
    %c0_i32_0 = arith.constant 0 : i32
    %c0_i32_1 = arith.constant 0 : i32
    return %c0_i32, %c0_i32_0 : i32, i32
  }
  func.func @transform_6(%arg0: i32) -> (i32, i32) {
    %c0_i32 = arith.constant 0 : i32
    %c0_i32_0 = arith.constant 0 : i32
    %c0_i32_1 = arith.constant 0 : i32
    return %c0_i32, %c0_i32_0 : i32, i32
  }
  func.func @transform_7(%arg0: i32) -> (i32, i32) {
    %c0_i32 = arith.constant 0 : i32
    %c0_i32_0 = arith.constant 0 : i32
    %c0_i32_1 = arith.constant 0 : i32
    return %c0_i32, %c0_i32_0 : i32, i32
  }
  func.func @transform_8(%arg0: i32) -> (i32, i32, i32) {
    %c0_i32 = arith.constant 0 : i32
    %c0_i32_0 = arith.constant 0 : i32
    %c0_i32_1 = arith.constant 0 : i32
    return %arg0, %c0_i32, %c0_i32_0 : i32, i32, i32
  }
}

</mosaic_0001>

<llo_original>
// kernel: simple_denoising_net.1
$region0: #{simple_denoising_net.1}
  #allocation0 [shape = 'u32[]', space=smem, size = 0x4, offset = 0x4, fixed_abs, tag = 'smem constant byte address 0x4 - core index']
  #allocation1 [shape = 'u32[72,128]{1,0:T(1,128)}', space=vmem, size = 0x9000, scoped, tag = 'internal scratch']
  #allocation2 [shape = 'f32[144,384]{1,0:T(8,128)}', space=vmem, size = 0x36000, scoped, tag = 'scratch operand']
  #allocation3 [shape = 'f32[5,512]{1,0:T(8,128)}', space=vmem, size = 0x4000, scoped, tag = 'scratch operand']
  #allocation4 [shape = 'f32[5,512]{1,0:T(8,128)}', space=vmem, size = 0x4000, scoped, tag = 'scratch operand']
  #allocation5 [shape = 'f32[15,512]{1,0:T(8,128)}', space=vmem, size = 0x8000, scoped, tag = 'scratch operand']
  #allocation6 [shape = 'f32[15,512]{1,0:T(8,128)}', space=vmem, size = 0x8000, scoped, tag = 'scratch operand']
  %s0 = inlined_call_operand.vmem [shape: f32[2,3,512], index: 0, kind: input, shape index: {}]
  %s1 = inlined_call_operand.vmem [shape: f32[5,72], index: 1, kind: input, shape index: {}]
  %s2 = inlined_call_operand.vmem [shape: f32[15,72], index: 2, kind: input, shape index: {}]
  %s3 = inlined_call_operand.vmem [shape: f32[5,144], index: 3, kind: input, shape index: {}]
  %s4 = inlined_call_operand.vmem [shape: f32[15,72], index: 4, kind: input, shape index: {}]
  %s5 = inlined_call_operand.vmem [shape: f32[10,144], index: 5, kind: input, shape index: {}]
  %s6 = inlined_call_operand.vmem [shape: f32[5,144], index: 6, kind: input, shape index: {}]
  %s7 = inlined_call_operand.vmem [shape: f32[3,5], index: 7, kind: input, shape index: {}]
  %s8 = inlined_call_operand.vmem [shape: f32[2,3,512], index: 8, kind: output, shape index: {}]
  %s9 = sld [smem:[#allocation0]]
  $region65: #{simple_denoising_net.1} parent=0
    _
  %s11 = ssub.s32 1, %s9
  %s12 = scalar_select 0, %s11, %s9
  loop: start=0, step=1, limit=4
  $region2: #{simple_denoising_net.1} parent=0 // loop_pre_header
    _
  $region3: #{simple_denoising_net.1} parent=0 // loop_header
    %s14 = sphi 0, %s18
    %p15 = scmp.ge.s32.totalorder %s14, 4
    %s24 = sphi 0, %s26
    %s27 = sphi 0, %s24
    %s28 = sphi 0, %s27
    %s44 = sphi 0, %s28
    %s48 = sphi 0, %s48
    %s50 = sphi 0, %s48
    %s51 = sphi 0, %s50
    %s65 = sphi 0, %s51
    %s69 = sphi 0, %s69
    %s71 = sphi 0, %s69
    %s72 = sphi 0, %s71
    %s86 = sphi 0, %s72
    %s90 = sphi 0, %s90
    %s92 = sphi 0, %s90
    %s93 = sphi 0, %s92
    %s107 = sphi 0, %s93
    %s111 = sphi 0, %s111
    %s113 = sphi 0, %s111
    %s114 = sphi 0, %s113
    %s128 = sphi 0, %s114
    %s132 = sphi 0, %s132
    %s134 = sphi 0, %s132
    %s135 = sphi 0, %s134
    %s149 = sphi 0, %s135
    %s153 = sphi 0, %s153
    %s155 = sphi 0, %s153
    %s156 = sphi 0, %s155
    %s170 = sphi 0, %s156
    %s174 = sphi 0, %s174
    %s176 = sphi 0, %s174
    %s177 = sphi 0, %s176
    %s191 = sphi 0, %s177
    %s197 = sphi 0, %s199
    %s200 = sphi 0, %s197
    %s201 = sphi 0, %s200
    %s217 = sphi 0, %s201
  $region4: #{simple_denoising_net.1} parent=0 // loop_header_branch
    %17 = sbr.rel (%p15) target = $region8
  $region5: #{simple_denoising_net.1} parent=0 // loop_body
    %s19 = ssub.s32 %s14, 1
    %s20 = ssub.s32 %s14, 2
    %s21 = sadd.s32 %s14, 1
    %s22 = ssub.s32 %s14, %s21
    %p23 = scmp.eq.s32.totalorder %s22, 0
    %s25 = sadd.s32 %s24, 1
    %s26 = scalar_select %p23, %s24, %s25
    %p29 = pneg %p23
    %p30 = scmp.eq.s32.totalorder %s14, 1
    %p31 = por %p29, %p30
    %p32 = scmp.ne.s32.totalorder %s24, %s27
    %p33 = scmp.eq.s32.totalorder %s14, 0
    %p34 = por %p32, %p33
    %p35 = scmp.ne.s32.totalorder %s24, %s27
    %p36 = scmp.eq.s32.totalorder %s19, 1
    %p37 = por %p35, %p36
    %p38 = scmp.ne.s32.totalorder %s27, %s28
    %p39 = scmp.eq.s32.totalorder %s19, 0
    %p40 = por %p38, %p39
    %p41 = scmp.ne.s32.totalorder %s27, %s28
    %p42 = scmp.eq.s32.totalorder %s20, 1
    %p43 = por %p41, %p42
    %p45 = scmp.ne.s32.totalorder %s28, %s44
    %p46 = scmp.eq.s32.totalorder %s20, 0
    %p47 = por %p45, %p46
    %s49 = sadd.s32 %s48, 1
    %p52 = scmp.eq.s32.totalorder %s14, 1
    %p53 = scmp.ne.s32.totalorder %s48, %s50
    %p54 = scmp.eq.s32.totalorder %s14, 0
    %p55 = por %p53, %p54
    %p56 = scmp.ne.s32.totalorder %s48, %s50
    %p57 = scmp.eq.s32.totalorder %s19, 1
    %p58 = por %p56, %p57
    %p59 = scmp.ne.s32.totalorder %s50, %s51
    %p60 = scmp.eq.s32.totalorder %s19, 0
    %p61 = por %p59, %p60
    %p62 = scmp.ne.s32.totalorder %s50, %s51
    %p63 = scmp.eq.s32.totalorder %s20, 1
    %p64 = por %p62, %p63
    %p66 = scmp.ne.s32.totalorder %s51, %s65
    %p67 = scmp.eq.s32.totalorder %s20, 0
    %p68 = por %p66, %p67
    %s70 = sadd.s32 %s69, 1
    %p73 = scmp.eq.s32.totalorder %s14, 1
    %p74 = scmp.ne.s32.totalorder %s69, %s71
    %p75 = scmp.eq.s32.totalorder %s14, 0
    %p76 = por %p74, %p75
    %p77 = scmp.ne.s32.totalorder %s69, %s71
    %p78 = scmp.eq.s32.totalorder %s19, 1
    %p79 = por %p77, %p78
    %p80 = scmp.ne.s32.totalorder %s71, %s72
    %p81 = scmp.eq.s32.totalorder %s19, 0
    %p82 = por %p80, %p81
    %p83 = scmp.ne.s32.totalorder %s71, %s72
    %p84 = scmp.eq.s32.totalorder %s20, 1
    %p85 = por %p83, %p84
    %p87 = scmp.ne.s32.totalorder %s72, %s86
    %p88 = scmp.eq.s32.totalorder %s20, 0
    %p89 = por %p87, %p88
    %s91 = sadd.s32 %s90, 1
    %p94 = scmp.eq.s32.totalorder %s14, 1
    %p95 = scmp.ne.s32.totalorder %s90, %s92
    %p96 = scmp.eq.s32.totalorder %s14, 0
    %p97 = por %p95, %p96
    %p98 = scmp.ne.s32.totalorder %s90, %s92
    %p99 = scmp.eq.s32.totalorder %s19, 1
    %p100 = por %p98, %p99
    %p101 = scmp.ne.s32.totalorder %s92, %s93
    %p102 = scmp.eq.s32.totalorder %s19, 0
    %p103 = por %p101, %p102
    %p104 = scmp.ne.s32.totalorder %s92, %s93
    %p105 = scmp.eq.s32.totalorder %s20, 1
    %p106 = por %p104, %p105
    %p108 = scmp.ne.s32.totalorder %s93, %s107
    %p109 = scmp.eq.s32.totalorder %s20, 0
    %p110 = por %p108, %p109
    %s112 = sadd.s32 %s111, 1
    %p115 = scmp.eq.s32.totalorder %s14, 1
    %p116 = scmp.ne.s32.totalorder %s111, %s113
    %p117 = scmp.eq.s32.totalorder %s14, 0
    %p118 = por %p116, %p117
    %p119 = scmp.ne.s32.totalorder %s111, %s113
    %p120 = scmp.eq.s32.totalorder %s19, 1
    %p121 = por %p119, %p120
    %p122 = scmp.ne.s32.totalorder %s113, %s114
    %p123 = scmp.eq.s32.totalorder %s19, 0
    %p124 = por %p122, %p123
    %p125 = scmp.ne.s32.totalorder %s113, %s114
    %p126 = scmp.eq.s32.totalorder %s20, 1
    %p127 = por %p125, %p126
    %p129 = scmp.ne.s32.totalorder %s114, %s128
    %p130 = scmp.eq.s32.totalorder %s20, 0
    %p131 = por %p129, %p130
    %s133 = sadd.s32 %s132, 1
    %p136 = scmp.eq.s32.totalorder %s14, 1
    %p137 = scmp.ne.s32.totalorder %s132, %s134
    %p138 = scmp.eq.s32.totalorder %s14, 0
    %p139 = por %p137, %p138
    %p140 = scmp.ne.s32.totalorder %s132, %s134
    %p141 = scmp.eq.s32.totalorder %s19, 1
    %p142 = por %p140, %p141
    %p143 = scmp.ne.s32.totalorder %s134, %s135
    %p144 = scmp.eq.s32.totalorder %s19, 0
    %p145 = por %p143, %p144
    %p146 = scmp.ne.s32.totalorder %s134, %s135
    %p147 = scmp.eq.s32.totalorder %s20, 1
    %p148 = por %p146, %p147
    %p150 = scmp.ne.s32.totalorder %s135, %s149
    %p151 = scmp.eq.s32.totalorder %s20, 0
    %p152 = por %p150, %p151
    %s154 = sadd.s32 %s153, 1
    %p157 = scmp.eq.s32.totalorder %s14, 1
    %p158 = scmp.ne.s32.totalorder %s153, %s155
    %p159 = scmp.eq.s32.totalorder %s14, 0
    %p160 = por %p158, %p159
    %p161 = scmp.ne.s32.totalorder %s153, %s155
    %p162 = scmp.eq.s32.totalorder %s19, 1
    %p163 = por %p161, %p162
    %p164 = scmp.ne.s32.totalorder %s155, %s156
    %p165 = scmp.eq.s32.totalorder %s19, 0
    %p166 = por %p164, %p165
    %p167 = scmp.ne.s32.totalorder %s155, %s156
    %p168 = scmp.eq.s32.totalorder %s20, 1
    %p169 = por %p167, %p168
    %p171 = scmp.ne.s32.totalorder %s156, %s170
    %p172 = scmp.eq.s32.totalorder %s20, 0
    %p173 = por %p171, %p172
    %s175 = sadd.s32 %s174, 1
    %p178 = scmp.eq.s32.totalorder %s14, 1
    %p179 = scmp.ne.s32.totalorder %s174, %s176
    %p180 = scmp.eq.s32.totalorder %s14, 0
    %p181 = por %p179, %p180
    %p182 = scmp.ne.s32.totalorder %s174, %s176
    %p183 = scmp.eq.s32.totalorder %s19, 1
    %p184 = por %p182, %p183
    %p185 = scmp.ne.s32.totalorder %s176, %s177
    %p186 = scmp.eq.s32.totalorder %s19, 0
    %p187 = por %p185, %p186
    %p188 = scmp.ne.s32.totalorder %s176, %s177
    %p189 = scmp.eq.s32.totalorder %s20, 1
    %p190 = por %p188, %p189
    %p192 = scmp.ne.s32.totalorder %s177, %s191
    %p193 = scmp.eq.s32.totalorder %s20, 0
    %p194 = por %p192, %p193
    %s195 = ssub.s32 %s14, %s21
    %p196 = scmp.eq.s32.totalorder %s195, 0
    %s198 = sadd.s32 %s197, 1
    %s199 = scalar_select %p196, %s197, %s198
    %p202 = pneg %p196
    %p203 = scmp.eq.s32.totalorder %s14, 1
    %p204 = por %p202, %p203
    %p205 = scmp.ne.s32.totalorder %s197, %s200
    %p206 = scmp.eq.s32.totalorder %s14, 0
    %p207 = por %p205, %p206
    %p208 = scmp.ne.s32.totalorder %s197, %s200
    %p209 = scmp.eq.s32.totalorder %s19, 1
    %p210 = por %p208, %p209
    %p211 = scmp.ne.s32.totalorder %s200, %s201
    %p212 = scmp.eq.s32.totalorder %s19, 0
    %p213 = por %p211, %p212
    %p214 = scmp.ne.s32.totalorder %s200, %s201
    %p215 = scmp.eq.s32.totalorder %s20, 1
    %p216 = por %p214, %p215
    %p218 = scmp.ne.s32.totalorder %s201, %s217
    %p219 = scmp.eq.s32.totalorder %s20, 0
    %p220 = por %p218, %p219
    %p221 = scmp.le.s32.totalorder 1, %s14
    %p222 = scmp.lt.s32.totalorder %s14, 3
    %p223 = pnand %p221, %p222
    %p224 = pneg %p223
    // Predicated region
    $region9: #{simple_denoising_net.1} parent=5 // pred_check
      _
    $region10: #{simple_denoising_net.1} parent=5 // pred_check_branch
      %226 = sbr.rel (%p223) target = $region12
    $region11: #{simple_denoising_net.1} parent=5 // pred_region
      %s227 = ssub.s32 %s14, 1
      // Predicated region
      $region13: #{simple_denoising_net.1} parent=11 // pred_check
        %p228 = pneg %p61
      $region14: #{simple_denoising_net.1} parent=11 // pred_check_branch
        %230 = sbr.rel (%p228) target = $region16
      $region15: #{simple_denoising_net.1} parent=11 // pred_region
        _
      $region16: #{simple_denoising_net.1} parent=11 // pred_fallthru
        _
      // Predicated region
      $region17: #{simple_denoising_net.1} parent=11 // pred_check
        %p231 = pneg %p82
      $region18: #{simple_denoising_net.1} parent=11 // pred_check_branch
        %233 = sbr.rel (%p231) target = $region20
      $region19: #{simple_denoising_net.1} parent=11 // pred_region
        _
      $region20: #{simple_denoising_net.1} parent=11 // pred_fallthru
        _
      // Predicated region
      $region21: #{simple_denoising_net.1} parent=11 // pred_check
        %p234 = pneg %p103
      $region22: #{simple_denoising_net.1} parent=11 // pred_check_branch
        %236 = sbr.rel (%p234) target = $region24
      $region23: #{simple_denoising_net.1} parent=11 // pred_region
        _
      $region24: #{simple_denoising_net.1} parent=11 // pred_fallthru
        _
      // Predicated region
      $region25: #{simple_denoising_net.1} parent=11 // pred_check
        %p237 = pneg %p124
      $region26: #{simple_denoising_net.1} parent=11 // pred_check_branch
        %239 = sbr.rel (%p237) target = $region28
      $region27: #{simple_denoising_net.1} parent=11 // pred_region
        _
      $region28: #{simple_denoising_net.1} parent=11 // pred_fallthru
        _
      // Predicated region
      $region29: #{simple_denoising_net.1} parent=11 // pred_check
        %p240 = pneg %p145
      $region30: #{simple_denoising_net.1} parent=11 // pred_check_branch
        %242 = sbr.rel (%p240) target = $region32
      $region31: #{simple_denoising_net.1} parent=11 // pred_region
        _
      $region32: #{simple_denoising_net.1} parent=11 // pred_fallthru
        _
      // Predicated region
      $region33: #{simple_denoising_net.1} parent=11 // pred_check
        %p243 = pneg %p166
      $region34: #{simple_denoising_net.1} parent=11 // pred_check_branch
        %245 = sbr.rel (%p243) target = $region36
      $region35: #{simple_denoising_net.1} parent=11 // pred_region
        _
      $region36: #{simple_denoising_net.1} parent=11 // pred_fallthru
        _
      // Predicated region
      $region37: #{simple_denoising_net.1} parent=11 // pred_check
        %p246 = pneg %p187
      $region38: #{simple_denoising_net.1} parent=11 // pred_check_branch
        %248 = sbr.rel (%p246) target = $region40
      $region39: #{simple_denoising_net.1} parent=11 // pred_region
        _
      $region40: #{simple_denoising_net.1} parent=11 // pred_fallthru
        _
    $region12: #{simple_denoising_net.1} parent=5 // pred_fallthru
      _
    %p249 = scmp.lt.s32.totalorder %s14, 2
    // Predicated region
    $region41: #{simple_denoising_net.1} parent=5 // pred_check
      %p250 = pneg %p249
    $region42: #{simple_denoising_net.1} parent=5 // pred_check_branch
      %252 = sbr.rel (%p250) target = $region44
    $region43: #{simple_denoising_net.1} parent=5 // pred_region
      // Predicated region
      $region45: #{simple_denoising_net.1} parent=43 // pred_check
        %p253 = pneg %p34
      $region46: #{simple_denoising_net.1} parent=43 // pred_check_branch
        %255 = sbr.rel (%p253) target = $region48
      $region47: #{simple_denoising_net.1} parent=43 // pred_region
        %p256 = scmp.lt.s32.totalorder %s14, 1
        %s257 = scalar_select %p256, %s14, 1
        %s258 = smul.addr %s257, 4
        %s259 = smul.addr %s258, 4
        %s260 = scalar_lea.vmem %s0, %s259
      $region48: #{simple_denoising_net.1} parent=43 // pred_fallthru
        _
    $region44: #{simple_denoising_net.1} parent=5 // pred_fallthru
      _
    %p261 = scmp.le.s32.totalorder 1, %s14
    %p262 = scmp.lt.s32.totalorder %s14, 3
    %p263 = pnand %p261, %p262
    %p264 = pneg %p263
    // Predicated region
    $region49: #{simple_denoising_net.1} parent=5 // pred_check
      _
    $region50: #{simple_denoising_net.1} parent=5 // pred_check_branch
      %266 = sbr.rel (%p263) target = $region52
    $region51: #{simple_denoising_net.1} parent=5 // pred_region
      %s267 = ssub.s32 %s14, 1
      %p268 = scmp.lt.s32.totalorder %s19, 1
      %s269 = scalar_select %p268, %s19, 1
      %s270 = smul.addr %s269, 4
      %s271 = smul.addr %s270, 4
      %s272 = scalar_lea.vmem %s0, %s271
      %p273 = pneg %p40
      %p274 = pneg %p37
      %p275 = pneg %p61
      %p276 = pneg %p58
      %p277 = pneg %p82
      %p278 = pneg %p79
      %p279 = pneg %p103
      %p280 = pneg %p100
      %p281 = pneg %p124
      %p282 = pneg %p121
      %p283 = pneg %p145
      %p284 = pneg %p142
      %p285 = pneg %p166
      %p286 = pneg %p163
      %p287 = pneg %p187
      %p288 = pneg %p184
      %p289 = pneg %p213
      %p290 = pneg %p210
      %p291 = scmp.lt.s32.totalorder %s19, 1
      %s292 = scalar_select %p291, %s19, 1
      %s293 = smul.addr %s292, 4
      %s294 = smul.addr %s293, 4
      %s295 = scalar_lea.vmem %s8, %s294
      %p296 = scmp.lt.s32.totalorder %s19, 1
      %s297 = scalar_select %p296, %s19, 1
      %s298 = smul.addr %s297, 4
      %s299 = smul.addr %s298, 4
      %s300 = scalar_lea.vmem %s0, %s299
      %p301 = scmp.lt.s32.totalorder %s19, 1
      %s302 = scalar_select %p301, %s19, 1
      %s303 = smul.addr %s302, 4
      %s304 = smul.addr %s303, 4
      %s305 = scalar_lea.vmem %s8, %s304
      %306 = vst [vmem:[#allocation2] sm:$0xff] 0.0
      %307 = vst [vmem:[#allocation2 + $0x8] sm:$0xff] 0.0
      %308 = vst [vmem:[#allocation2 + $0x10] sm:$0xff] 0.0
      %309 = vst [vmem:[#allocation2 + $0x18] sm:$0xff] 0.0
      %310 = vst [vmem:[#allocation2 + $0x20] sm:$0xff] 0.0
      %311 = vst [vmem:[#allocation2 + $0x28] sm:$0xff] 0.0
      %312 = vst [vmem:[#allocation2 + $0x30] sm:$0xff] 0.0
      %313 = vst [vmem:[#allocation2 + $0x38] sm:$0xff] 0.0
      %314 = vst [vmem:[#allocation2 + $0x40] sm:$0xff] 0.0
      %315 = vst [vmem:[#allocation2 + $0x48] sm:$0xff] 0.0
      %316 = vst [vmem:[#allocation2 + $0x50] sm:$0xff] 0.0
      %317 = vst [vmem:[#allocation2 + $0x58] sm:$0xff] 0.0
      %318 = vst [vmem:[#allocation2 + $0x60] sm:$0xff] 0.0
      %319 = vst [vmem:[#allocation2 + $0x68] sm:$0xff] 0.0
      %320 = vst [vmem:[#allocation2 + $0x70] sm:$0xff] 0.0
      %321 = vst [vmem:[#allocation2 + $0x78] sm:$0xff] 0.0
      %322 = vst [vmem:[#allocation2 + $0x80] sm:$0xff] 0.0
      %323 = vst [vmem:[#allocation2 + $0x88] sm:$0xff] 0.0
      %324 = vst [vmem:[#allocation2 + $0x90] sm:$0xff] 0.0
      %325 = vst [vmem:[#allocation2 + $0x98] sm:$0xff] 0.0
      %326 = vst [vmem:[#allocation2 + $0xa0] sm:$0xff] 0.0
      %327 = vst [vmem:[#allocation2 + $0xa8] sm:$0xff] 0.0
      %328 = vst [vmem:[#allocation2 + $0xb0] sm:$0xff] 0.0
      %329 = vst [vmem:[#allocation2 + $0xb8] sm:$0xff] 0.0
      %330 = vst [vmem:[#allocation2 + $0xc0] sm:$0xff] 0.0
      %331 = vst [vmem:[#allocation2 + $0xc8] sm:$0xff] 0.0
      %332 = vst [vmem:[#allocation2 + $0xd0] sm:$0xff] 0.0
      %333 = vst [vmem:[#allocation2 + $0xd8] sm:$0xff] 0.0
      %334 = vst [vmem:[#allocation2 + $0xe0] sm:$0xff] 0.0
      %335 = vst [vmem:[#allocation2 + $0xe8] sm:$0xff] 0.0
      %336 = vst [vmem:[#allocation2 + $0xf0] sm:$0xff] 0.0
      %337 = vst [vmem:[#allocation2 + $0xf8] sm:$0xff] 0.0
      %338 = vst [vmem:[#allocation2 + $0x100] sm:$0xff] 0.0
      %339 = vst [vmem:[#allocation2 + $0x108] sm:$0xff] 0.0
      %340 = vst [vmem:[#allocation2 + $0x110] sm:$0xff] 0.0
      %341 = vst [vmem:[#allocation2 + $0x118] sm:$0xff] 0.0
      %342 = vst [vmem:[#allocation2 + $0x120] sm:$0xff] 0.0
      %343 = vst [vmem:[#allocation2 + $0x128] sm:$0xff] 0.0
      %344 = vst [vmem:[#allocation2 + $0x130] sm:$0xff] 0.0
      %345 = vst [vmem:[#allocation2 + $0x138] sm:$0xff] 0.0
      %346 = vst [vmem:[#allocation2 + $0x140] sm:$0xff] 0.0
      %347 = vst [vmem:[#allocation2 + $0x148] sm:$0xff] 0.0
      %348 = vst [vmem:[#allocation2 + $0x150] sm:$0xff] 0.0
      %349 = vst [vmem:[#allocation2 + $0x158] sm:$0xff] 0.0
      %350 = vst [vmem:[#allocation2 + $0x160] sm:$0xff] 0.0
      %351 = vst [vmem:[#allocation2 + $0x168] sm:$0xff] 0.0
      %352 = vst [vmem:[#allocation2 + $0x170] sm:$0xff] 0.0
      %353 = vst [vmem:[#allocation2 + $0x178] sm:$0xff] 0.0
      %354 = vst [vmem:[#allocation2 + $0x180] sm:$0xff] 0.0
      %355 = vst [vmem:[#allocation2 + $0x188] sm:$0xff] 0.0
      %356 = vst [vmem:[#allocation2 + $0x190] sm:$0xff] 0.0
      %357 = vst [vmem:[#allocation2 + $0x198] sm:$0xff] 0.0
      %358 = vst [vmem:[#allocation2 + $0x1a0] sm:$0xff] 0.0
      %359 = vst [vmem:[#allocation2 + $0x1a8] sm:$0xff] 0.0
      %360 = vst [vmem:[#allocation3 + $0x18] sm:$0x1f] 0.0
      %361 = vst [vmem:[#allocation4 + $0x18] sm:$0x1f] 0.0
      %362 = vst [vmem:[#allocation5 + $0x18] sm:$0xff] 0.0
      %363 = vst [vmem:[#allocation5 + $0x38] sm:$0x7f] 0.0
      %364 = vst [vmem:[#allocation6 + $0x18] sm:$0xff] 0.0
      %365 = vst [vmem:[#allocation6 + $0x38] sm:$0x7f] 0.0
      %v366 = vld [vmem:[%s300] sm:$0x77]
      %v367 = vld [vmem:[%s300 + $0x8] sm:$0x7]
      %370 = vst [vmem:[#allocation1] ss:$2 sm:$0xff] %v366
      %s371 = scalar_lea.vmem [#allocation1], 16
      %372 = vst [vmem:[%s371] ss:$2 sm:$0xff] %v367
      %v373 = vld.sshfl [vmem:[#allocation1] sm:$0xff pattern:$0x75316420]
      %v374 = vld.sshfl [vmem:[#allocation1 + $0x8] sm:$0xff pattern:$0x75316420]
      %v375 = vld.sshfl [vmem:[#allocation1 + $0x10] sm:$0xff pattern:$0x75316420]
      %379 = vst [vmem:[#allocation2] sm:$0x7] %v373
      %380 = vst [vmem:[#allocation2 + $0x8] sm:$0x7] %v374
      %381 = vst [vmem:[#allocation2 + $0x10] sm:$0x7] %v375
      %v382 = vld [vmem:[%s300] sm:$0x77]
      %v383 = vld [vmem:[%s300 + $0x8] sm:$0x77]
      %386 = vst [vmem:[#allocation1] ss:$2 sm:$0xff] %v382
      %s387 = scalar_lea.vmem [#allocation1], 16
      %388 = vst [vmem:[%s387] ss:$2 sm:$0xff] %v383
      %v389 = vld.sshfl [vmem:[#allocation1] sm:$0xff pattern:$0x75316420]
      %v390 = vld.sshfl [vmem:[#allocation1 + $0x8] sm:$0xff pattern:$0x75316420]
      %v391 = vld.sshfl [vmem:[#allocation1 + $0x10] sm:$0xff pattern:$0x75316420]
      %v392 = vld.sshfl [vmem:[#allocation1 + $0x18] sm:$0xff pattern:$0x75316420]
      %393 = vrot.lane.b32.xlu0 %v389, 127
      %v394 = vpop.permute.xlu0 %393
      %395 = vrot.lane.b32.xlu0 %v390, 127
      %v396 = vpop.permute.xlu0 %395
      %397 = vrot.lane.b32.xlu0 %v391, 127
      %v398 = vpop.permute.xlu0 %397
      %399 = vrot.lane.b32.xlu0 %v392, 127
      %v400 = vpop.permute.xlu0 %399
      %vm401 = vcmask 1039360
      %v402 = vsel %vm401, %v394, %v396
      %v403 = vsel %vm401, %v396, %v398
      %v404 = vsel %vm401, %v398, %v400
      %408 = vst [vmem:[#allocation2 + $0x18] sm:$0x7] %v402
      %409 = vst [vmem:[#allocation2 + $0x20] sm:$0x7] %v403
      %410 = vst [vmem:[#allocation2 + $0x28] sm:$0x7] %v404
      %v411 = vld [vmem:[%s300] sm:$0x77]
      %v412 = vld [vmem:[%s300 + $0x8] sm:$0x77]
      %415 = vst [vmem:[#allocation1] ss:$2 sm:$0xff] %v411
      %s416 = scalar_lea.vmem [#allocation1], 16
      %417 = vst [vmem:[%s416] ss:$2 sm:$0xff] %v412
      %v418 = vld.sshfl [vmem:[#allocation1] sm:$0xff pattern:$0x75316420]
      %v419 = vld.sshfl [vmem:[#allocation1 + $0x8] sm:$0xff pattern:$0x75316420]
      %v420 = vld.sshfl [vmem:[#allocation1 + $0x10] sm:$0xff pattern:$0x75316420]
      %v421 = vld.sshfl [vmem:[#allocation1 + $0x18] sm:$0xff pattern:$0x75316420]
      %422 = vrot.lane.b32.xlu0 %v418, 126
      %v423 = vpop.permute.xlu0 %422
      %424 = vrot.lane.b32.xlu0 %v419, 126
      %v425 = vpop.permute.xlu0 %424
      %426 = vrot.lane.b32.xlu0 %v420, 126
      %v427 = vpop.permute.xlu0 %426
      %428 = vrot.lane.b32.xlu0 %v421, 126
      %v429 = vpop.permute.xlu0 %428
      %vm430 = vcmask 1031168
      %v431 = vsel %vm430, %v423, %v425
      %v432 = vsel %vm430, %v425, %v427
      %v433 = vsel %vm430, %v427, %v429
      %437 = vst [vmem:[#allocation2 + $0x30] sm:$0x7] %v431
      %438 = vst [vmem:[#allocation2 + $0x38] sm:$0x7] %v432
      %439 = vst [vmem:[#allocation2 + $0x40] sm:$0x7] %v433
      %v440 = vld [vmem:[%s300] sm:$0x77]
      %v441 = vld [vmem:[%s300 + $0x8] sm:$0x77]
      %444 = vst [vmem:[#allocation1] ss:$2 sm:$0xff] %v440
      %s445 = scalar_lea.vmem [#allocation1], 16
      %446 = vst [vmem:[%s445] ss:$2 sm:$0xff] %v441
      %v447 = vld.sshfl [vmem:[#allocation1] sm:$0xff pattern:$0x75316420]
      %v448 = vld.sshfl [vmem:[#allocation1 + $0x8] sm:$0xff pattern:$0x75316420]
      %v449 = vld.sshfl [vmem:[#allocation1 + $0x10] sm:$0xff pattern:$0x75316420]
      %v450 = vld.sshfl [vmem:[#allocation1 + $0x18] sm:$0xff pattern:$0x75316420]
      %451 = vrot.lane.b32.xlu0 %v447, 108
      %v452 = vpop.permute.xlu0 %451
      %453 = vrot.lane.b32.xlu0 %v448, 108
      %v454 = vpop.permute.xlu0 %453
      %455 = vrot.lane.b32.xlu0 %v449, 108
      %v456 = vpop.permute.xlu0 %455
      %457 = vrot.lane.b32.xlu0 %v450, 108
      %v458 = vpop.permute.xlu0 %457
      %vm459 = vcmask 883712
      %v460 = vsel %vm459, %v452, %v454
      %v461 = vsel %vm459, %v454, %v456
      %v462 = vsel %vm459, %v456, %v458
      %466 = vst [vmem:[#allocation2 + $0x48] sm:$0x7] %v460
      %467 = vst [vmem:[#allocation2 + $0x50] sm:$0x7] %v461
      %468 = vst [vmem:[#allocation2 + $0x58] sm:$0x7] %v462
      %v469 = vld [vmem:[%s300] sm:$0x77]
      %v470 = vld [vmem:[%s300 + $0x8] sm:$0x77]
      %473 = vst [vmem:[#allocation1] ss:$2 sm:$0xff] %v469
      %s474 = scalar_lea.vmem [#allocation1], 16
      %475 = vst [vmem:[%s474] ss:$2 sm:$0xff] %v470
      %v476 = vld.sshfl [vmem:[#allocation1] sm:$0xff pattern:$0x75316420]
      %v477 = vld.sshfl [vmem:[#allocation1 + $0x8] sm:$0xff pattern:$0x75316420]
      %v478 = vld.sshfl [vmem:[#allocation1 + $0x10] sm:$0xff pattern:$0x75316420]
      %v479 = vld.sshfl [vmem:[#allocation1 + $0x18] sm:$0xff pattern:$0x75316420]
      %480 = vrot.lane.b32.xlu0 %v476, 107
      %v481 = vpop.permute.xlu0 %480
      %482 = vrot.lane.b32.xlu0 %v477, 107
      %v483 = vpop.permute.xlu0 %482
      %484 = vrot.lane.b32.xlu0 %v478, 107
      %v485 = vpop.permute.xlu0 %484
      %486 = vrot.lane.b32.xlu0 %v479, 107
      %v487 = vpop.permute.xlu0 %486
      %vm488 = vcmask 875520
      %v489 = vsel %vm488, %v481, %v483
      %v490 = vsel %vm488, %v483, %v485
      %v491 = vsel %vm488, %v485, %v487
      %495 = vst [vmem:[#allocation2 + $0x60] sm:$0x7] %v489
      %496 = vst [vmem:[#allocation2 + $0x68] sm:$0x7] %v490
      %497 = vst [vmem:[#allocation2 + $0x70] sm:$0x7] %v491
      %v498 = vld [vmem:[%s300] sm:$0x77]
      %v499 = vld [vmem:[%s300 + $0x8] sm:$0x77]
      %502 = vst [vmem:[#allocation1] ss:$2 sm:$0xff] %v498
      %s503 = scalar_lea.vmem [#allocation1], 16
      %504 = vst [vmem:[%s503] ss:$2 sm:$0xff] %v499
      %v505 = vld.sshfl [vmem:[#allocation1] sm:$0xff pattern:$0x75316420]
      %v506 = vld.sshfl [vmem:[#allocation1 + $0x8] sm:$0xff pattern:$0x75316420]
      %v507 = vld.sshfl [vmem:[#allocation1 + $0x10] sm:$0xff pattern:$0x75316420]
      %v508 = vld.sshfl [vmem:[#allocation1 + $0x18] sm:$0xff pattern:$0x75316420]
      %509 = vrot.lane.b32.xlu0 %v505, 106
      %v510 = vpop.permute.xlu0 %509
      %511 = vrot.lane.b32.xlu0 %v506, 106
      %v512 = vpop.permute.xlu0 %511
      %513 = vrot.lane.b32.xlu0 %v507, 106
      %v514 = vpop.permute.xlu0 %513
      %515 = vrot.lane.b32.xlu0 %v508, 106
      %v516 = vpop.permute.xlu0 %515
      %vm517 = vcmask 867328
      %v518 = vsel %vm517, %v510, %v512
      %v519 = vsel %vm517, %v512, %v514
      %v520 = vsel %vm517, %v514, %v516
      %524 = vst [vmem:[#allocation2 + $0x78] sm:$0x7] %v518
      %525 = vst [vmem:[#allocation2 + $0x80] sm:$0x7] %v519
      %526 = vst [vmem:[#allocation2 + $0x88] sm:$0x7] %v520
      %v527 = vld [vmem:[%s300] sm:$0x77]
      %v528 = vld [vmem:[%s300 + $0x8] sm:$0x77]
      %531 = vst [vmem:[#allocation1] ss:$2 sm:$0xff] %v527
      %s532 = scalar_lea.vmem [#allocation1], 16
      %533 = vst [vmem:[%s532] ss:$2 sm:$0xff] %v528
      %v534 = vld.sshfl [vmem:[#allocation1] sm:$0xff pattern:$0x75316420]
      %v535 = vld.sshfl [vmem:[#allocation1 + $0x8] sm:$0xff pattern:$0x75316420]
      %v536 = vld.sshfl [vmem:[#allocation1 + $0x10] sm:$0xff pattern:$0x75316420]
      %v537 = vld.sshfl [vmem:[#allocation1 + $0x18] sm:$0xff pattern:$0x75316420]
      %538 = vrot.lane.b32.xlu0 %v534, 88
      %v539 = vpop.permute.xlu0 %538
      %540 = vrot.lane.b32.xlu0 %v535, 88
      %v541 = vpop.permute.xlu0 %540
      %542 = vrot.lane.b32.xlu0 %v536, 88
      %v543 = vpop.permute.xlu0 %542
      %544 = vrot.lane.b32.xlu0 %v537, 88
      %v545 = vpop.permute.xlu0 %544
      %vm546 = vcmask 719872
      %v547 = vsel %vm546, %v539, %v541
      %v548 = vsel %vm546, %v541, %v543
      %v549 = vsel %vm546, %v543, %v545
      %553 = vst [vmem:[#allocation2 + $0x90] sm:$0x7] %v547
      %554 = vst [vmem:[#allocation2 + $0x98] sm:$0x7] %v548
      %555 = vst [vmem:[#allocation2 + $0xa0] sm:$0x7] %v549
      %v556 = vld [vmem:[%s300] sm:$0x77]
      %v557 = vld [vmem:[%s300 + $0x8] sm:$0x77]
      %560 = vst [vmem:[#allocation1] ss:$2 sm:$0xff] %v556
      %s561 = scalar_lea.vmem [#allocation1], 16
      %562 = vst [vmem:[%s561] ss:$2 sm:$0xff] %v557
      %v563 = vld.sshfl [vmem:[#allocation1] sm:$0xff pattern:$0x75316420]
      %v564 = vld.sshfl [vmem:[#allocation1 + $0x8] sm:$0xff pattern:$0x75316420]
      %v565 = vld.sshfl [vmem:[#allocation1 + $0x10] sm:$0xff pattern:$0x75316420]
      %v566 = vld.sshfl [vmem:[#allocation1 + $0x18] sm:$0xff pattern:$0x75316420]
      %567 = vrot.lane.b32.xlu0 %v563, 87
      %v568 = vpop.permute.xlu0 %567
      %569 = vrot.lane.b32.xlu0 %v564, 87
      %v570 = vpop.permute.xlu0 %569
      %571 = vrot.lane.b32.xlu0 %v565, 87
      %v572 = vpop.permute.xlu0 %571
      %573 = vrot.lane.b32.xlu0 %v566, 87
      %v574 = vpop.permute.xlu0 %573
      %vm575 = vcmask 711680
      %v576 = vsel %vm575, %v568, %v570
      %v577 = vsel %vm575, %v570, %v572
      %v578 = vsel %vm575, %v572, %v574
      %582 = vst [vmem:[#allocation2 + $0xa8] sm:$0x7] %v576
      %583 = vst [vmem:[#allocation2 + $0xb0] sm:$0x7] %v577
      %584 = vst [vmem:[#allocation2 + $0xb8] sm:$0x7] %v578
      %v585 = vld [vmem:[%s300] sm:$0x77]
      %v586 = vld [vmem:[%s300 + $0x8] sm:$0x77]
      %589 = vst [vmem:[#allocation1] ss:$2 sm:$0xff] %v585
      %s590 = scalar_lea.vmem [#allocation1], 16
      %591 = vst [vmem:[%s590] ss:$2 sm:$0xff] %v586
      %v592 = vld.sshfl [vmem:[#allocation1] sm:$0xff pattern:$0x75316420]
      %v593 = vld.sshfl [vmem:[#allocation1 + $0x8] sm:$0xff pattern:$0x75316420]
      %v594 = vld.sshfl [vmem:[#allocation1 + $0x10] sm:$0xff pattern:$0x75316420]
      %v595 = vld.sshfl [vmem:[#allocation1 + $0x18] sm:$0xff pattern:$0x75316420]
      %596 = vrot.lane.b32.xlu0 %v592, 86
      %v597 = vpop.permute.xlu0 %596
      %598 = vrot.lane.b32.xlu0 %v593, 86
      %v599 = vpop.permute.xlu0 %598
      %600 = vrot.lane.b32.xlu0 %v594, 86
      %v601 = vpop.permute.xlu0 %600
      %602 = vrot.lane.b32.xlu0 %v595, 86
      %v603 = vpop.permute.xlu0 %602
      %vm604 = vcmask 703488
      %v605 = vsel %vm604, %v597, %v599
      %v606 = vsel %vm604, %v599, %v601
      %v607 = vsel %vm604, %v601, %v603
      %611 = vst [vmem:[#allocation2 + $0xc0] sm:$0x7] %v605
      %612 = vst [vmem:[#allocation2 + $0xc8] sm:$0x7] %v606
      %613 = vst [vmem:[#allocation2 + $0xd0] sm:$0x7] %v607
      %v614 = vld [vmem:[%s1] sm:$0x1f]
      %v615 = vld [vmem:[#allocation2] sm:$0xff]
      %v616 = vld [vmem:[#allocation2 + $0x8] sm:$0xff]
      %v617 = vld [vmem:[#allocation2 + $0x10] sm:$0xff]
      %v618 = vld [vmem:[#allocation2 + $0x18] sm:$0xff]
      %v619 = vld [vmem:[#allocation2 + $0x20] sm:$0xff]
      %v620 = vld [vmem:[#allocation2 + $0x28] sm:$0xff]
      %v621 = vld [vmem:[#allocation2 + $0x30] sm:$0xff]
      %v622 = vld [vmem:[#allocation2 + $0x38] sm:$0xff]
      %v623 = vld [vmem:[#allocation2 + $0x40] sm:$0xff]
      %v624 = vld [vmem:[#allocation2 + $0x48] sm:$0xff]
      %v625 = vld [vmem:[#allocation2 + $0x50] sm:$0xff]
      %v626 = vld [vmem:[#allocation2 + $0x58] sm:$0xff]
      %v627 = vld [vmem:[#allocation2 + $0x60] sm:$0xff]
      %v628 = vld [vmem:[#allocation2 + $0x68] sm:$0xff]
      %v629 = vld [vmem:[#allocation2 + $0x70] sm:$0xff]
      %v630 = vld [vmem:[#allocation2 + $0x78] sm:$0xff]
      %v631 = vld [vmem:[#allocation2 + $0x80] sm:$0xff]
      %v632 = vld [vmem:[#allocation2 + $0x88] sm:$0xff]
      %v633 = vld [vmem:[#allocation2 + $0x90] sm:$0xff]
      %v634 = vld [vmem:[#allocation2 + $0x98] sm:$0xff]
      %v635 = vld [vmem:[#allocation2 + $0xa0] sm:$0xff]
      %v636 = vld [vmem:[#allocation2 + $0xa8] sm:$0xff]
      %v637 = vld [vmem:[#allocation2 + $0xb0] sm:$0xff]
      %v638 = vld [vmem:[#allocation2 + $0xb8] sm:$0xff]
      %v639 = vld [vmem:[#allocation2 + $0xc0] sm:$0xff]
      %v640 = vld [vmem:[#allocation2 + $0xc8] sm:$0xff]
      %v641 = vld [vmem:[#allocation2 + $0xd0] sm:$0xff]
      %vm642 = vcmask 588800
      %v644 = vsel %vm642, %v614, 0
      %646 = vmatpush.msra.mxu0 0.0
      %647 = vmatpush.msra.mxu0 0.0
      %648 = vmatpush.msra.mxu0 0.0
      %649 = vmatpush.msra.mxu0 0.0
      %650 = vmatpush.msra.mxu0 0.0
      %651 = vmatpush.msra.mxu0 0.0
      %652 = vmatpush.msra.mxu0 0.0
      %653 = vmatpush.msra.mxu0 %v639
      %654 = vmatpush.msra.mxu0 %v636
      %655 = vmatpush.msra.mxu0 %v633
      %656 = vmatpush.msra.mxu0 %v630
      %657 = vmatpush.msra.mxu0 %v627
      %658 = vmatpush.msra.mxu0 %v624
      %659 = vmatpush.msra.mxu0 %v621
      %660 = vmatpush.msra.mxu0 %v618
      %661 = vmatpush.msra.mxu0 %v615
      %662 = vmatmul.f32.gmra.mxu0 %v644
      %v663 = vpop.f32.mrf.mxu0
      %v664 = vadd.f32 0.0, %v663
      %665 = vdwg.mxu0
      %666 = vmatpush.msra.mxu0 0.0
      %667 = vmatpush.msra.mxu0 0.0
      %668 = vmatpush.msra.mxu0 0.0
      %669 = vmatpush.msra.mxu0 0.0
      %670 = vmatpush.msra.mxu0 0.0
      %671 = vmatpush.msra.mxu0 0.0
      %672 = vmatpush.msra.mxu0 0.0
      %673 = vmatpush.msra.mxu0 %v640
      %674 = vmatpush.msra.mxu0 %v637
      %675 = vmatpush.msra.mxu0 %v634
      %676 = vmatpush.msra.mxu0 %v631
      %677 = vmatpush.msra.mxu0 %v628
      %678 = vmatpush.msra.mxu0 %v625
      %679 = vmatpush.msra.mxu0 %v622
      %680 = vmatpush.msra.mxu0 %v619
      %681 = vmatpush.msra.mxu0 %v616
      %682 = vmatmul.f32.gmra.mxu0 %v644
      %v683 = vpop.f32.mrf.mxu0
      %v684 = vadd.f32 0.0, %v683
      %685 = vdwg.mxu0
      %686 = vmatpush.msra.mxu0 0.0
      %687 = vmatpush.msra.mxu0 0.0
      %688 = vmatpush.msra.mxu0 0.0
      %689 = vmatpush.msra.mxu0 0.0
      %690 = vmatpush.msra.mxu0 0.0
      %691 = vmatpush.msra.mxu0 0.0
      %692 = vmatpush.msra.mxu0 0.0
      %693 = vmatpush.msra.mxu0 %v641
      %694 = vmatpush.msra.mxu0 %v638
      %695 = vmatpush.msra.mxu0 %v635
      %696 = vmatpush.msra.mxu0 %v632
      %697 = vmatpush.msra.mxu0 %v629
      %698 = vmatpush.msra.mxu0 %v626
      %699 = vmatpush.msra.mxu0 %v623
      %700 = vmatpush.msra.mxu0 %v620
      %701 = vmatpush.msra.mxu0 %v617
      %702 = vmatmul.f32.gmra.mxu0 %v644
      %v703 = vpop.f32.mrf.mxu0
      %v704 = vadd.f32 0.0, %v703
      %705 = vdwg.mxu0
      %v706 = vmax.f32 %v664, 0.0
      %v707 = vmax.f32 %v684, 0.0
      %v708 = vmax.f32 %v704, 0.0
      %709 = vst [vmem:[#allocation3] sm:$0x1f] %v706
      %710 = vst [vmem:[#allocation3 + $0x8] sm:$0x1f] %v707
      %711 = vst [vmem:[#allocation3 + $0x10] sm:$0x1f] %v708
      %v712 = vld [vmem:[#allocation3] sm:$0x1f]
      %v713 = vld [vmem:[#allocation3 + $0x8] sm:$0x1f]
      %v714 = vld [vmem:[#allocation3 + $0x10] sm:$0x1f]
      %715 = vst [vmem:[#allocation2] sm:$0x1f] %v712
      %716 = vst [vmem:[#allocation2 + $0x8] sm:$0x1f] %v713
      %717 = vst [vmem:[#allocation2 + $0x10] sm:$0x1f] %v714
      %v718 = vld [vmem:[#allocation3] sm:$0x1f]
      %v719 = vld [vmem:[#allocation3 + $0x8] sm:$0x1f]
      %v720 = vld [vmem:[#allocation3 + $0x10] sm:$0x1f]
      %v721 = vld [vmem:[#allocation3 + $0x18] sm:$0x1f]
      %726 = vrot.lane.b32.xlu0 %v718, 127
      %v727 = vpop.permute.xlu0 %726
      %728 = vrot.lane.b32.xlu0 %v719, 127
      %v729 = vpop.permute.xlu0 %728
      %730 = vrot.lane.b32.xlu0 %v720, 127
      %v731 = vpop.permute.xlu0 %730
      %732 = vrot.lane.b32.xlu0 %v721, 127
      %v733 = vpop.permute.xlu0 %732
      %v734 = vsel %vm401, %v727, %v729
      %v735 = vsel %vm401, %v729, %v731
      %v736 = vsel %vm401, %v731, %v733
      %740 = vst [vmem:[#allocation2 + $0x18] sm:$0x1f] %v734
      %741 = vst [vmem:[#allocation2 + $0x20] sm:$0x1f] %v735
      %742 = vst [vmem:[#allocation2 + $0x28] sm:$0x1f] %v736
      %v743 = vld [vmem:[#allocation3] sm:$0x1f]
      %v744 = vld [vmem:[#allocation3 + $0x8] sm:$0x1f]
      %v745 = vld [vmem:[#allocation3 + $0x10] sm:$0x1f]
      %v746 = vld [vmem:[#allocation3 + $0x18] sm:$0x1f]
      %751 = vrot.lane.b32.xlu0 %v743, 126
      %v752 = vpop.permute.xlu0 %751
      %753 = vrot.lane.b32.xlu0 %v744, 126
      %v754 = vpop.permute.xlu0 %753
      %755 = vrot.lane.b32.xlu0 %v745, 126
      %v756 = vpop.permute.xlu0 %755
      %757 = vrot.lane.b32.xlu0 %v746, 126
      %v758 = vpop.permute.xlu0 %757
      %v759 = vsel %vm430, %v752, %v754
      %v760 = vsel %vm430, %v754, %v756
      %v761 = vsel %vm430, %v756, %v758
      %765 = vst [vmem:[#allocation2 + $0x30] sm:$0x1f] %v759
      %766 = vst [vmem:[#allocation2 + $0x38] sm:$0x1f] %v760
      %767 = vst [vmem:[#allocation2 + $0x40] sm:$0x1f] %v761
      %v768 = vld [vmem:[#allocation3] sm:$0x1f]
      %v769 = vld [vmem:[#allocation3 + $0x8] sm:$0x1f]
      %v770 = vld [vmem:[#allocation3 + $0x10] sm:$0x1f]
      %v771 = vld [vmem:[#allocation3 + $0x18] sm:$0x1f]
      %776 = vrot.lane.b32.xlu0 %v768, 108
      %v777 = vpop.permute.xlu0 %776
      %778 = vrot.lane.b32.xlu0 %v769, 108
      %v779 = vpop.permute.xlu0 %778
      %780 = vrot.lane.b32.xlu0 %v770, 108
      %v781 = vpop.permute.xlu0 %780
      %782 = vrot.lane.b32.xlu0 %v771, 108
      %v783 = vpop.permute.xlu0 %782
      %v784 = vsel %vm459, %v777, %v779
      %v785 = vsel %vm459, %v779, %v781
      %v786 = vsel %vm459, %v781, %v783
      %790 = vst [vmem:[#allocation2 + $0x48] sm:$0x1f] %v784
      %791 = vst [vmem:[#allocation2 + $0x50] sm:$0x1f] %v785
      %792 = vst [vmem:[#allocation2 + $0x58] sm:$0x1f] %v786
      %v793 = vld [vmem:[#allocation3] sm:$0x1f]
      %v794 = vld [vmem:[#allocation3 + $0x8] sm:$0x1f]
      %v795 = vld [vmem:[#allocation3 + $0x10] sm:$0x1f]
      %v796 = vld [vmem:[#allocation3 + $0x18] sm:$0x1f]
      %801 = vrot.lane.b32.xlu0 %v793, 107
      %v802 = vpop.permute.xlu0 %801
      %803 = vrot.lane.b32.xlu0 %v794, 107
      %v804 = vpop.permute.xlu0 %803
      %805 = vrot.lane.b32.xlu0 %v795, 107
      %v806 = vpop.permute.xlu0 %805
      %807 = vrot.lane.b32.xlu0 %v796, 107
      %v808 = vpop.permute.xlu0 %807
      %v809 = vsel %vm488, %v802, %v804
      %v810 = vsel %vm488, %v804, %v806
      %v811 = vsel %vm488, %v806, %v808
      %815 = vst [vmem:[#allocation2 + $0x60] sm:$0x1f] %v809
      %816 = vst [vmem:[#allocation2 + $0x68] sm:$0x1f] %v810
      %817 = vst [vmem:[#allocation2 + $0x70] sm:$0x1f] %v811
      %v818 = vld [vmem:[#allocation3] sm:$0x1f]
      %v819 = vld [vmem:[#allocation3 + $0x8] sm:$0x1f]
      %v820 = vld [vmem:[#allocation3 + $0x10] sm:$0x1f]
      %v821 = vld [vmem:[#allocation3 + $0x18] sm:$0x1f]
      %826 = vrot.lane.b32.xlu0 %v818, 106
      %v827 = vpop.permute.xlu0 %826
      %828 = vrot.lane.b32.xlu0 %v819, 106
      %v829 = vpop.permute.xlu0 %828
      %830 = vrot.lane.b32.xlu0 %v820, 106
      %v831 = vpop.permute.xlu0 %830
      %832 = vrot.lane.b32.xlu0 %v821, 106
      %v833 = vpop.permute.xlu0 %832
      %v834 = vsel %vm517, %v827, %v829
      %v835 = vsel %vm517, %v829, %v831
      %v836 = vsel %vm517, %v831, %v833
      %840 = vst [vmem:[#allocation2 + $0x78] sm:$0x1f] %v834
      %841 = vst [vmem:[#allocation2 + $0x80] sm:$0x1f] %v835
      %842 = vst [vmem:[#allocation2 + $0x88] sm:$0x1f] %v836
      %v843 = vld [vmem:[#allocation3] sm:$0x1f]
      %v844 = vld [vmem:[#allocation3 + $0x8] sm:$0x1f]
      %v845 = vld [vmem:[#allocation3 + $0x10] sm:$0x1f]
      %v846 = vld [vmem:[#allocation3 + $0x18] sm:$0x1f]
      %851 = vrot.lane.b32.xlu0 %v843, 88
      %v852 = vpop.permute.xlu0 %851
      %853 = vrot.lane.b32.xlu0 %v844, 88
      %v854 = vpop.permute.xlu0 %853
      %855 = vrot.lane.b32.xlu0 %v845, 88
      %v856 = vpop.permute.xlu0 %855
      %857 = vrot.lane.b32.xlu0 %v846, 88
      %v858 = vpop.permute.xlu0 %857
      %v859 = vsel %vm546, %v852, %v854
      %v860 = vsel %vm546, %v854, %v856
      %v861 = vsel %vm546, %v856, %v858
      %865 = vst [vmem:[#allocation2 + $0x90] sm:$0x1f] %v859
      %866 = vst [vmem:[#allocation2 + $0x98] sm:$0x1f] %v860
      %867 = vst [vmem:[#allocation2 + $0xa0] sm:$0x1f] %v861
      %v868 = vld [vmem:[#allocation3] sm:$0x1f]
      %v869 = vld [vmem:[#allocation3 + $0x8] sm:$0x1f]
      %v870 = vld [vmem:[#allocation3 + $0x10] sm:$0x1f]
      %v871 = vld [vmem:[#allocation3 + $0x18] sm:$0x1f]
      %876 = vrot.lane.b32.xlu0 %v868, 87
      %v877 = vpop.permute.xlu0 %876
      %878 = vrot.lane.b32.xlu0 %v869, 87
      %v879 = vpop.permute.xlu0 %878
      %880 = vrot.lane.b32.xlu0 %v870, 87
      %v881 = vpop.permute.xlu0 %880
      %882 = vrot.lane.b32.xlu0 %v871, 87
      %v883 = vpop.permute.xlu0 %882
      %v884 = vsel %vm575, %v877, %v879
      %v885 = vsel %vm575, %v879, %v881
      %v886 = vsel %vm575, %v881, %v883
      %890 = vst [vmem:[#allocation2 + $0xa8] sm:$0x1f] %v884
      %891 = vst [vmem:[#allocation2 + $0xb0] sm:$0x1f] %v885
      %892 = vst [vmem:[#allocation2 + $0xb8] sm:$0x1f] %v886
      %v893 = vld [vmem:[#allocation3] sm:$0x1f]
      %v894 = vld [vmem:[#allocation3 + $0x8] sm:$0x1f]
      %v895 = vld [vmem:[#allocation3 + $0x10] sm:$0x1f]
      %v896 = vld [vmem:[#allocation3 + $0x18] sm:$0x1f]
      %901 = vrot.lane.b32.xlu0 %v893, 86
      %v902 = vpop.permute.xlu0 %901
      %903 = vrot.lane.b32.xlu0 %v894, 86
      %v904 = vpop.permute.xlu0 %903
      %905 = vrot.lane.b32.xlu0 %v895, 86
      %v906 = vpop.permute.xlu0 %905
      %907 = vrot.lane.b32.xlu0 %v896, 86
      %v908 = vpop.permute.xlu0 %907
      %v909 = vsel %vm604, %v902, %v904
      %v910 = vsel %vm604, %v904, %v906
      %v911 = vsel %vm604, %v906, %v908
      %915 = vst [vmem:[#allocation2 + $0xc0] sm:$0x1f] %v909
      %916 = vst [vmem:[#allocation2 + $0xc8] sm:$0x1f] %v910
      %917 = vst [vmem:[#allocation2 + $0xd0] sm:$0x1f] %v911
      %v918 = vld [vmem:[%s2] sm:$0xff]
      %v919 = vld [vmem:[%s2 + $0x8] sm:$0x7f]
      %v920 = vld [vmem:[#allocation2] sm:$0xff]
      %v921 = vld [vmem:[#allocation2 + $0x8] sm:$0xff]
      %v922 = vld [vmem:[#allocation2 + $0x10] sm:$0xff]
      %v923 = vld [vmem:[#allocation2 + $0x18] sm:$0xff]
      %v924 = vld [vmem:[#allocation2 + $0x20] sm:$0xff]
      %v925 = vld [vmem:[#allocation2 + $0x28] sm:$0xff]
      %v926 = vld [vmem:[#allocation2 + $0x30] sm:$0xff]
      %v927 = vld [vmem:[#allocation2 + $0x38] sm:$0xff]
      %v928 = vld [vmem:[#allocation2 + $0x40] sm:$0xff]
      %v929 = vld [vmem:[#allocation2 + $0x48] sm:$0xff]
      %v930 = vld [vmem:[#allocation2 + $0x50] sm:$0xff]
      %v931 = vld [vmem:[#allocation2 + $0x58] sm:$0xff]
      %v932 = vld [vmem:[#allocation2 + $0x60] sm:$0xff]
      %v933 = vld [vmem:[#allocation2 + $0x68] sm:$0xff]
      %v934 = vld [vmem:[#allocation2 + $0x70] sm:$0xff]
      %v935 = vld [vmem:[#allocation2 + $0x78] sm:$0xff]
      %v936 = vld [vmem:[#allocation2 + $0x80] sm:$0xff]
      %v937 = vld [vmem:[#allocation2 + $0x88] sm:$0xff]
      %v938 = vld [vmem:[#allocation2 + $0x90] sm:$0xff]
      %v939 = vld [vmem:[#allocation2 + $0x98] sm:$0xff]
      %v940 = vld [vmem:[#allocation2 + $0xa0] sm:$0xff]
      %v941 = vld [vmem:[#allocation2 + $0xa8] sm:$0xff]
      %v942 = vld [vmem:[#allocation2 + $0xb0] sm:$0xff]
      %v943 = vld [vmem:[#allocation2 + $0xb8] sm:$0xff]
      %v944 = vld [vmem:[#allocation2 + $0xc0] sm:$0xff]
      %v945 = vld [vmem:[#allocation2 + $0xc8] sm:$0xff]
      %v946 = vld [vmem:[#allocation2 + $0xd0] sm:$0xff]
      %v948 = vsel %vm642, %v918, 0
      %v951 = vsel %vm642, %v919, 0
      %953 = vmatpush.msra.mxu0 0.0
      %954 = vmatpush.msra.mxu0 0.0
      %955 = vmatpush.msra.mxu0 0.0
      %956 = vmatpush.msra.mxu0 0.0
      %957 = vmatpush.msra.mxu0 0.0
      %958 = vmatpush.msra.mxu0 0.0
      %959 = vmatpush.msra.mxu0 0.0
      %960 = vmatpush.msra.mxu0 %v944
      %961 = vmatpush.msra.mxu0 %v941
      %962 = vmatpush.msra.mxu0 %v938
      %963 = vmatpush.msra.mxu0 %v935
      %964 = vmatpush.msra.mxu0 %v932
      %965 = vmatpush.msra.mxu0 %v929
      %966 = vmatpush.msra.mxu0 %v926
      %967 = vmatpush.msra.mxu0 %v923
      %968 = vmatpush.msra.mxu0 %v920
      %969 = vmatmul.f32.gmra.mxu0 %v948
      %v970 = vpop.f32.mrf.mxu0
      %v971 = vadd.f32 0.0, %v970
      %972 = vmatmul.f32.gmra.mxu0 %v951
      %v973 = vpop.f32.mrf.mxu0
      %v974 = vadd.f32 0.0, %v973
      %975 = vdwg.mxu0
      %976 = vmatpush.msra.mxu0 0.0
      %977 = vmatpush.msra.mxu0 0.0
      %978 = vmatpush.msra.mxu0 0.0
      %979 = vmatpush.msra.mxu0 0.0
      %980 = vmatpush.msra.mxu0 0.0
      %981 = vmatpush.msra.mxu0 0.0
      %982 = vmatpush.msra.mxu0 0.0
      %983 = vmatpush.msra.mxu0 %v945
      %984 = vmatpush.msra.mxu0 %v942
      %985 = vmatpush.msra.mxu0 %v939
      %986 = vmatpush.msra.mxu0 %v936
      %987 = vmatpush.msra.mxu0 %v933
      %988 = vmatpush.msra.mxu0 %v930
      %989 = vmatpush.msra.mxu0 %v927
      %990 = vmatpush.msra.mxu0 %v924
      %991 = vmatpush.msra.mxu0 %v921
      %992 = vmatmul.f32.gmra.mxu0 %v948
      %v993 = vpop.f32.mrf.mxu0
      %v994 = vadd.f32 0.0, %v993
      %995 = vmatmul.f32.gmra.mxu0 %v951
      %v996 = vpop.f32.mrf.mxu0
      %v997 = vadd.f32 0.0, %v996
      %998 = vdwg.mxu0
      %999 = vmatpush.msra.mxu0 0.0
      %1000 = vmatpush.msra.mxu0 0.0
      %1001 = vmatpush.msra.mxu0 0.0
      %1002 = vmatpush.msra.mxu0 0.0
      %1003 = vmatpush.msra.mxu0 0.0
      %1004 = vmatpush.msra.mxu0 0.0
      %1005 = vmatpush.msra.mxu0 0.0
      %1006 = vmatpush.msra.mxu0 %v946
      %1007 = vmatpush.msra.mxu0 %v943
      %1008 = vmatpush.msra.mxu0 %v940
      %1009 = vmatpush.msra.mxu0 %v937
      %1010 = vmatpush.msra.mxu0 %v934
      %1011 = vmatpush.msra.mxu0 %v931
      %1012 = vmatpush.msra.mxu0 %v928
      %1013 = vmatpush.msra.mxu0 %v925
      %1014 = vmatpush.msra.mxu0 %v922
      %1015 = vmatmul.f32.gmra.mxu0 %v948
      %v1016 = vpop.f32.mrf.mxu0
      %v1017 = vadd.f32 0.0, %v1016
      %1018 = vmatmul.f32.gmra.mxu0 %v951
      %v1019 = vpop.f32.mrf.mxu0
      %v1020 = vadd.f32 0.0, %v1019
      %1021 = vdwg.mxu0
      %v1022 = vmax.f32 %v971, 0.0
      %v1023 = vmax.f32 %v994, 0.0
      %v1024 = vmax.f32 %v1017, 0.0
      %v1025 = vmax.f32 %v974, 0.0
      %v1026 = vmax.f32 %v997, 0.0
      %v1027 = vmax.f32 %v1020, 0.0
      %1028 = vst [vmem:[#allocation5] sm:$0xff] %v1022
      %1029 = vst [vmem:[#allocation5 + $0x8] sm:$0xff] %v1023
      %1030 = vst [vmem:[#allocation5 + $0x10] sm:$0xff] %v1024
      %1031 = vst [vmem:[#allocation5 + $0x20] sm:$0x7f] %v1025
      %1032 = vst [vmem:[#allocation5 + $0x28] sm:$0x7f] %v1026
      %1033 = vst [vmem:[#allocation5 + $0x30] sm:$0x7f] %v1027
      %v1034 = vld [vmem:[#allocation5] sm:$0xff]
      %v1035 = vld [vmem:[#allocation5 + $0x8] sm:$0xff]
      %v1036 = vld [vmem:[#allocation5 + $0x10] sm:$0xff]
      %v1037 = vld [vmem:[#allocation5 + $0x20] sm:$0x7f]
      %v1038 = vld [vmem:[#allocation5 + $0x28] sm:$0x7f]
      %v1039 = vld [vmem:[#allocation5 + $0x30] sm:$0x7f]
      %1040 = vst [vmem:[#allocation2] sm:$0xff] %v1034
      %1041 = vst [vmem:[#allocation2 + $0x8] sm:$0xff] %v1035
      %1042 = vst [vmem:[#allocation2 + $0x10] sm:$0xff] %v1036
      %1043 = vst [vmem:[#allocation2 + $0x18] sm:$0x7f] %v1037
      %1044 = vst [vmem:[#allocation2 + $0x20] sm:$0x7f] %v1038
      %1045 = vst [vmem:[#allocation2 + $0x28] sm:$0x7f] %v1039
      %v1046 = vld [vmem:[#allocation5] sm:$0xff]
      %v1047 = vld [vmem:[#allocation5 + $0x8] sm:$0xff]
      %v1048 = vld [vmem:[#allocation5 + $0x10] sm:$0xff]
      %v1049 = vld [vmem:[#allocation5 + $0x18] sm:$0xff]
      %v1050 = vld [vmem:[#allocation5 + $0x20] sm:$0x7f]
      %v1051 = vld [vmem:[#allocation5 + $0x28] sm:$0x7f]
      %v1052 = vld [vmem:[#allocation5 + $0x30] sm:$0x7f]
      %v1053 = vld [vmem:[#allocation5 + $0x38] sm:$0x7f]
      %1062 = vrot.lane.b32.xlu0 %v1046, 127
      %v1063 = vpop.permute.xlu0 %1062
      %1064 = vrot.lane.b32.xlu0 %v1047, 127
      %v1065 = vpop.permute.xlu0 %1064
      %1066 = vrot.lane.b32.xlu0 %v1048, 127
      %v1067 = vpop.permute.xlu0 %1066
      %1068 = vrot.lane.b32.xlu0 %v1049, 127
      %v1069 = vpop.permute.xlu0 %1068
      %1070 = vrot.lane.b32.xlu0 %v1050, 127
      %v1071 = vpop.permute.xlu0 %1070
      %1072 = vrot.lane.b32.xlu0 %v1051, 127
      %v1073 = vpop.permute.xlu0 %1072
      %1074 = vrot.lane.b32.xlu0 %v1052, 127
      %v1075 = vpop.permute.xlu0 %1074
      %1076 = vrot.lane.b32.xlu0 %v1053, 127
      %v1077 = vpop.permute.xlu0 %1076
      %v1078 = vsel %vm401, %v1063, %v1065
      %v1079 = vsel %vm401, %v1065, %v1067
      %v1080 = vsel %vm401, %v1067, %v1069
      %v1081 = vsel %vm401, %v1071, %v1073
      %v1082 = vsel %vm401, %v1073, %v1075
      %v1083 = vsel %vm401, %v1075, %v1077
      %1090 = vst [vmem:[#allocation2 + $0x30] sm:$0xff] %v1078
      %1091 = vst [vmem:[#allocation2 + $0x38] sm:$0xff] %v1079
      %1092 = vst [vmem:[#allocation2 + $0x40] sm:$0xff] %v1080
      %1093 = vst [vmem:[#allocation2 + $0x48] sm:$0x7f] %v1081
      %1094 = vst [vmem:[#allocation2 + $0x50] sm:$0x7f] %v1082
      %1095 = vst [vmem:[#allocation2 + $0x58] sm:$0x7f] %v1083
      %v1096 = vld [vmem:[#allocation5] sm:$0xff]
      %v1097 = vld [vmem:[#allocation5 + $0x8] sm:$0xff]
      %v1098 = vld [vmem:[#allocation5 + $0x10] sm:$0xff]
      %v1099 = vld [vmem:[#allocation5 + $0x18] sm:$0xff]
      %v1100 = vld [vmem:[#allocation5 + $0x20] sm:$0x7f]
      %v1101 = vld [vmem:[#allocation5 + $0x28] sm:$0x7f]
      %v1102 = vld [vmem:[#allocation5 + $0x30] sm:$0x7f]
      %v1103 = vld [vmem:[#allocation5 + $0x38] sm:$0x7f]
      %1112 = vrot.lane.b32.xlu0 %v1096, 126
      %v1113 = vpop.permute.xlu0 %1112
      %1114 = vrot.lane.b32.xlu0 %v1097, 126
      %v1115 = vpop.permute.xlu0 %1114
      %1116 = vrot.lane.b32.xlu0 %v1098, 126
      %v1117 = vpop.permute.xlu0 %1116
      %1118 = vrot.lane.b32.xlu0 %v1099, 126
      %v1119 = vpop.permute.xlu0 %1118
      %1120 = vrot.lane.b32.xlu0 %v1100, 126
      %v1121 = vpop.permute.xlu0 %1120
      %1122 = vrot.lane.b32.xlu0 %v1101, 126
      %v1123 = vpop.permute.xlu0 %1122
      %1124 = vrot.lane.b32.xlu0 %v1102, 126
      %v1125 = vpop.permute.xlu0 %1124
      %1126 = vrot.lane.b32.xlu0 %v1103, 126
      %v1127 = vpop.permute.xlu0 %1126
      %v1128 = vsel %vm430, %v1113, %v1115
      %v1129 = vsel %vm430, %v1115, %v1117
      %v1130 = vsel %vm430, %v1117, %v1119
      %v1131 = vsel %vm430, %v1121, %v1123
      %v1132 = vsel %vm430, %v1123, %v1125
      %v1133 = vsel %vm430, %v1125, %v1127
      %1140 = vst [vmem:[#allocation2 + $0x60] sm:$0xff] %v1128
      %1141 = vst [vmem:[#allocation2 + $0x68] sm:$0xff] %v1129
      %1142 = vst [vmem:[#allocation2 + $0x70] sm:$0xff] %v1130
      %1143 = vst [vmem:[#allocation2 + $0x78] sm:$0x7f] %v1131
      %1144 = vst [vmem:[#allocation2 + $0x80] sm:$0x7f] %v1132
      %1145 = vst [vmem:[#allocation2 + $0x88] sm:$0x7f] %v1133
      %v1146 = vld [vmem:[#allocation5] sm:$0xff]
      %v1147 = vld [vmem:[#allocation5 + $0x8] sm:$0xff]
      %v1148 = vld [vmem:[#allocation5 + $0x10] sm:$0xff]
      %v1149 = vld [vmem:[#allocation5 + $0x18] sm:$0xff]
      %v1150 = vld [vmem:[#allocation5 + $0x20] sm:$0x7f]
      %v1151 = vld [vmem:[#allocation5 + $0x28] sm:$0x7f]
      %v1152 = vld [vmem:[#allocation5 + $0x30] sm:$0x7f]
      %v1153 = vld [vmem:[#allocation5 + $0x38] sm:$0x7f]
      %1162 = vrot.lane.b32.xlu0 %v1146, 108
      %v1163 = vpop.permute.xlu0 %1162
      %1164 = vrot.lane.b32.xlu0 %v1147, 108
      %v1165 = vpop.permute.xlu0 %1164
      %1166 = vrot.lane.b32.xlu0 %v1148, 108
      %v1167 = vpop.permute.xlu0 %1166
      %1168 = vrot.lane.b32.xlu0 %v1149, 108
      %v1169 = vpop.permute.xlu0 %1168
      %1170 = vrot.lane.b32.xlu0 %v1150, 108
      %v1171 = vpop.permute.xlu0 %1170
      %1172 = vrot.lane.b32.xlu0 %v1151, 108
      %v1173 = vpop.permute.xlu0 %1172
      %1174 = vrot.lane.b32.xlu0 %v1152, 108
      %v1175 = vpop.permute.xlu0 %1174
      %1176 = vrot.lane.b32.xlu0 %v1153, 108
      %v1177 = vpop.permute.xlu0 %1176
      %v1178 = vsel %vm459, %v1163, %v1165
      %v1179 = vsel %vm459, %v1165, %v1167
      %v1180 = vsel %vm459, %v1167, %v1169
      %v1181 = vsel %vm459, %v1171, %v1173
      %v1182 = vsel %vm459, %v1173, %v1175
      %v1183 = vsel %vm459, %v1175, %v1177
      %1190 = vst [vmem:[#allocation2 + $0x90] sm:$0xff] %v1178
      %1191 = vst [vmem:[#allocation2 + $0x98] sm:$0xff] %v1179
      %1192 = vst [vmem:[#allocation2 + $0xa0] sm:$0xff] %v1180
      %1193 = vst [vmem:[#allocation2 + $0xa8] sm:$0x7f] %v1181
      %1194 = vst [vmem:[#allocation2 + $0xb0] sm:$0x7f] %v1182
      %1195 = vst [vmem:[#allocation2 + $0xb8] sm:$0x7f] %v1183
      %v1196 = vld [vmem:[#allocation5] sm:$0xff]
      %v1197 = vld [vmem:[#allocation5 + $0x8] sm:$0xff]
      %v1198 = vld [vmem:[#allocation5 + $0x10] sm:$0xff]
      %v1199 = vld [vmem:[#allocation5 + $0x18] sm:$0xff]
      %v1200 = vld [vmem:[#allocation5 + $0x20] sm:$0x7f]
      %v1201 = vld [vmem:[#allocation5 + $0x28] sm:$0x7f]
      %v1202 = vld [vmem:[#allocation5 + $0x30] sm:$0x7f]
      %v1203 = vld [vmem:[#allocation5 + $0x38] sm:$0x7f]
      %1212 = vrot.lane.b32.xlu0 %v1196, 107
      %v1213 = vpop.permute.xlu0 %1212
      %1214 = vrot.lane.b32.xlu0 %v1197, 107
      %v1215 = vpop.permute.xlu0 %1214
      %1216 = vrot.lane.b32.xlu0 %v1198, 107
      %v1217 = vpop.permute.xlu0 %1216
      %1218 = vrot.lane.b32.xlu0 %v1199, 107
      %v1219 = vpop.permute.xlu0 %1218
      %1220 = vrot.lane.b32.xlu0 %v1200, 107
      %v1221 = vpop.permute.xlu0 %1220
      %1222 = vrot.lane.b32.xlu0 %v1201, 107
      %v1223 = vpop.permute.xlu0 %1222
      %1224 = vrot.lane.b32.xlu0 %v1202, 107
      %v1225 = vpop.permute.xlu0 %1224
      %1226 = vrot.lane.b32.xlu0 %v1203, 107
      %v1227 = vpop.permute.xlu0 %1226
      %v1228 = vsel %vm488, %v1213, %v1215
      %v1229 = vsel %vm488, %v1215, %v1217
      %v1230 = vsel %vm488, %v1217, %v1219
      %v1231 = vsel %vm488, %v1221, %v1223
      %v1232 = vsel %vm488, %v1223, %v1225
      %v1233 = vsel %vm488, %v1225, %v1227
      %1240 = vst [vmem:[#allocation2 + $0xc0] sm:$0xff] %v1228
      %1241 = vst [vmem:[#allocation2 + $0xc8] sm:$0xff] %v1229
      %1242 = vst [vmem:[#allocation2 + $0xd0] sm:$0xff] %v1230
      %1243 = vst [vmem:[#allocation2 + $0xd8] sm:$0x7f] %v1231
      %1244 = vst [vmem:[#allocation2 + $0xe0] sm:$0x7f] %v1232
      %1245 = vst [vmem:[#allocation2 + $0xe8] sm:$0x7f] %v1233
      %v1246 = vld [vmem:[#allocation5] sm:$0xff]
      %v1247 = vld [vmem:[#allocation5 + $0x8] sm:$0xff]
      %v1248 = vld [vmem:[#allocation5 + $0x10] sm:$0xff]
      %v1249 = vld [vmem:[#allocation5 + $0x18] sm:$0xff]
      %v1250 = vld [vmem:[#allocation5 + $0x20] sm:$0x7f]
      %v1251 = vld [vmem:[#allocation5 + $0x28] sm:$0x7f]
      %v1252 = vld [vmem:[#allocation5 + $0x30] sm:$0x7f]
      %v1253 = vld [vmem:[#allocation5 + $0x38] sm:$0x7f]
      %1262 = vrot.lane.b32.xlu0 %v1246, 106
      %v1263 = vpop.permute.xlu0 %1262
      %1264 = vrot.lane.b32.xlu0 %v1247, 106
      %v1265 = vpop.permute.xlu0 %1264
      %1266 = vrot.lane.b32.xlu0 %v1248, 106
      %v1267 = vpop.permute.xlu0 %1266
      %1268 = vrot.lane.b32.xlu0 %v1249, 106
      %v1269 = vpop.permute.xlu0 %1268
      %1270 = vrot.lane.b32.xlu0 %v1250, 106
      %v1271 = vpop.permute.xlu0 %1270
      %1272 = vrot.lane.b32.xlu0 %v1251, 106
      %v1273 = vpop.permute.xlu0 %1272
      %1274 = vrot.lane.b32.xlu0 %v1252, 106
      %v1275 = vpop.permute.xlu0 %1274
      %1276 = vrot.lane.b32.xlu0 %v1253, 106
      %v1277 = vpop.permute.xlu0 %1276
      %v1278 = vsel %vm517, %v1263, %v1265
      %v1279 = vsel %vm517, %v1265, %v1267
      %v1280 = vsel %vm517, %v1267, %v1269
      %v1281 = vsel %vm517, %v1271, %v1273
      %v1282 = vsel %vm517, %v1273, %v1275
      %v1283 = vsel %vm517, %v1275, %v1277
      %1290 = vst [vmem:[#allocation2 + $0xf0] sm:$0xff] %v1278
      %1291 = vst [vmem:[#allocation2 + $0xf8] sm:$0xff] %v1279
      %1292 = vst [vmem:[#allocation2 + $0x100] sm:$0xff] %v1280
      %1293 = vst [vmem:[#allocation2 + $0x108] sm:$0x7f] %v1281
      %1294 = vst [vmem:[#allocation2 + $0x110] sm:$0x7f] %v1282
      %1295 = vst [vmem:[#allocation2 + $0x118] sm:$0x7f] %v1283
      %v1296 = vld [vmem:[#allocation5] sm:$0xff]
      %v1297 = vld [vmem:[#allocation5 + $0x8] sm:$0xff]
      %v1298 = vld [vmem:[#allocation5 + $0x10] sm:$0xff]
      %v1299 = vld [vmem:[#allocation5 + $0x18] sm:$0xff]
      %v1300 = vld [vmem:[#allocation5 + $0x20] sm:$0x7f]
      %v1301 = vld [vmem:[#allocation5 + $0x28] sm:$0x7f]
      %v1302 = vld [vmem:[#allocation5 + $0x30] sm:$0x7f]
      %v1303 = vld [vmem:[#allocation5 + $0x38] sm:$0x7f]
      %1312 = vrot.lane.b32.xlu0 %v1296, 88
      %v1313 = vpop.permute.xlu0 %1312
      %1314 = vrot.lane.b32.xlu0 %v1297, 88
      %v1315 = vpop.permute.xlu0 %1314
      %1316 = vrot.lane.b32.xlu0 %v1298, 88
      %v1317 = vpop.permute.xlu0 %1316
      %1318 = vrot.lane.b32.xlu0 %v1299, 88
      %v1319 = vpop.permute.xlu0 %1318
      %1320 = vrot.lane.b32.xlu0 %v1300, 88
      %v1321 = vpop.permute.xlu0 %1320
      %1322 = vrot.lane.b32.xlu0 %v1301, 88
      %v1323 = vpop.permute.xlu0 %1322
      %1324 = vrot.lane.b32.xlu0 %v1302, 88
      %v1325 = vpop.permute.xlu0 %1324
      %1326 = vrot.lane.b32.xlu0 %v1303, 88
      %v1327 = vpop.permute.xlu0 %1326
      %v1328 = vsel %vm546, %v1313, %v1315
      %v1329 = vsel %vm546, %v1315, %v1317
      %v1330 = vsel %vm546, %v1317, %v1319
      %v1331 = vsel %vm546, %v1321, %v1323
      %v1332 = vsel %vm546, %v1323, %v1325
      %v1333 = vsel %vm546, %v1325, %v1327
      %1340 = vst [vmem:[#allocation2 + $0x120] sm:$0xff] %v1328
      %1341 = vst [vmem:[#allocation2 + $0x128] sm:$0xff] %v1329
      %1342 = vst [vmem:[#allocation2 + $0x130] sm:$0xff] %v1330
      %1343 = vst [vmem:[#allocation2 + $0x138] sm:$0x7f] %v1331
      %1344 = vst [vmem:[#allocation2 + $0x140] sm:$0x7f] %v1332
      %1345 = vst [vmem:[#allocation2 + $0x148] sm:$0x7f] %v1333
      %v1346 = vld [vmem:[#allocation5] sm:$0xff]
      %v1347 = vld [vmem:[#allocation5 + $0x8] sm:$0xff]
      %v1348 = vld [vmem:[#allocation5 + $0x10] sm:$0xff]
      %v1349 = vld [vmem:[#allocation5 + $0x18] sm:$0xff]
      %v1350 = vld [vmem:[#allocation5 + $0x20] sm:$0x7f]
      %v1351 = vld [vmem:[#allocation5 + $0x28] sm:$0x7f]
      %v1352 = vld [vmem:[#allocation5 + $0x30] sm:$0x7f]
      %v1353 = vld [vmem:[#allocation5 + $0x38] sm:$0x7f]
      %1362 = vrot.lane.b32.xlu0 %v1346, 87
      %v1363 = vpop.permute.xlu0 %1362
      %1364 = vrot.lane.b32.xlu0 %v1347, 87
      %v1365 = vpop.permute.xlu0 %1364
      %1366 = vrot.lane.b32.xlu0 %v1348, 87
      %v1367 = vpop.permute.xlu0 %1366
      %1368 = vrot.lane.b32.xlu0 %v1349, 87
      %v1369 = vpop.permute.xlu0 %1368
      %1370 = vrot.lane.b32.xlu0 %v1350, 87
      %v1371 = vpop.permute.xlu0 %1370
      %1372 = vrot.lane.b32.xlu0 %v1351, 87
      %v1373 = vpop.permute.xlu0 %1372
      %1374 = vrot.lane.b32.xlu0 %v1352, 87
      %v1375 = vpop.permute.xlu0 %1374
      %1376 = vrot.lane.b32.xlu0 %v1353, 87
      %v1377 = vpop.permute.xlu0 %1376
      %v1378 = vsel %vm575, %v1363, %v1365
      %v1379 = vsel %vm575, %v1365, %v1367
      %v1380 = vsel %vm575, %v1367, %v1369
      %v1381 = vsel %vm575, %v1371, %v1373
      %v1382 = vsel %vm575, %v1373, %v1375
      %v1383 = vsel %vm575, %v1375, %v1377
      %1390 = vst [vmem:[#allocation2 + $0x150] sm:$0xff] %v1378
      %1391 = vst [vmem:[#allocation2 + $0x158] sm:$0xff] %v1379
      %1392 = vst [vmem:[#allocation2 + $0x160] sm:$0xff] %v1380
      %1393 = vst [vmem:[#allocation2 + $0x168] sm:$0x7f] %v1381
      %1394 = vst [vmem:[#allocation2 + $0x170] sm:$0x7f] %v1382
      %1395 = vst [vmem:[#allocation2 + $0x178] sm:$0x7f] %v1383
      %v1396 = vld [vmem:[#allocation5] sm:$0xff]
      %v1397 = vld [vmem:[#allocation5 + $0x8] sm:$0xff]
      %v1398 = vld [vmem:[#allocation5 + $0x10] sm:$0xff]
      %v1399 = vld [vmem:[#allocation5 + $0x18] sm:$0xff]
      %v1400 = vld [vmem:[#allocation5 + $0x20] sm:$0x7f]
      %v1401 = vld [vmem:[#allocation5 + $0x28] sm:$0x7f]
      %v1402 = vld [vmem:[#allocation5 + $0x30] sm:$0x7f]
      %v1403 = vld [vmem:[#allocation5 + $0x38] sm:$0x7f]
      %1412 = vrot.lane.b32.xlu0 %v1396, 86
      %v1413 = vpop.permute.xlu0 %1412
      %1414 = vrot.lane.b32.xlu0 %v1397, 86
      %v1415 = vpop.permute.xlu0 %1414
      %1416 = vrot.lane.b32.xlu0 %v1398, 86
      %v1417 = vpop.permute.xlu0 %1416
      %1418 = vrot.lane.b32.xlu0 %v1399, 86
      %v1419 = vpop.permute.xlu0 %1418
      %1420 = vrot.lane.b32.xlu0 %v1400, 86
      %v1421 = vpop.permute.xlu0 %1420
      %1422 = vrot.lane.b32.xlu0 %v1401, 86
      %v1423 = vpop.permute.xlu0 %1422
      %1424 = vrot.lane.b32.xlu0 %v1402, 86
      %v1425 = vpop.permute.xlu0 %1424
      %1426 = vrot.lane.b32.xlu0 %v1403, 86
      %v1427 = vpop.permute.xlu0 %1426
      %v1428 = vsel %vm604, %v1413, %v1415
      %v1429 = vsel %vm604, %v1415, %v1417
      %v1430 = vsel %vm604, %v1417, %v1419
      %v1431 = vsel %vm604, %v1421, %v1423
      %v1432 = vsel %vm604, %v1423, %v1425
      %v1433 = vsel %vm604, %v1425, %v1427
      %1440 = vst [vmem:[#allocation2 + $0x180] sm:$0xff] %v1428
      %1441 = vst [vmem:[#allocation2 + $0x188] sm:$0xff] %v1429
      %1442 = vst [vmem:[#allocation2 + $0x190] sm:$0xff] %v1430
      %1443 = vst [vmem:[#allocation2 + $0x198] sm:$0x7f] %v1431
      %1444 = vst [vmem:[#allocation2 + $0x1a0] sm:$0x7f] %v1432
      %1445 = vst [vmem:[#allocation2 + $0x1a8] sm:$0x7f] %v1433
      %v1446 = vld [vmem:[%s3] sm:$0x1f]
      %v1447 = vld [vmem:[%s3 + $0x8] sm:$0x1f]
      %v1448 = vld [vmem:[#allocation2] sm:$0xff]
      %v1449 = vld [vmem:[#allocation2 + $0x8] sm:$0xff]
      %v1450 = vld [vmem:[#allocation2 + $0x10] sm:$0xff]
      %v1451 = vld [vmem:[#allocation2 + $0x18] sm:$0xff]
      %v1452 = vld [vmem:[#allocation2 + $0x20] sm:$0xff]
      %v1453 = vld [vmem:[#allocation2 + $0x28] sm:$0xff]
      %v1454 = vld [vmem:[#allocation2 + $0x30] sm:$0xff]
      %v1455 = vld [vmem:[#allocation2 + $0x38] sm:$0xff]
      %v1456 = vld [vmem:[#allocation2 + $0x40] sm:$0xff]
      %v1457 = vld [vmem:[#allocation2 + $0x48] sm:$0xff]
      %v1458 = vld [vmem:[#allocation2 + $0x50] sm:$0xff]
      %v1459 = vld [vmem:[#allocation2 + $0x58] sm:$0xff]
      %v1460 = vld [vmem:[#allocation2 + $0x60] sm:$0xff]
      %v1461 = vld [vmem:[#allocation2 + $0x68] sm:$0xff]
      %v1462 = vld [vmem:[#allocation2 + $0x70] sm:$0xff]
      %v1463 = vld [vmem:[#allocation2 + $0x78] sm:$0xff]
      %v1464 = vld [vmem:[#allocation2 + $0x80] sm:$0xff]
      %v1465 = vld [vmem:[#allocation2 + $0x88] sm:$0xff]
      %v1466 = vld [vmem:[#allocation2 + $0x90] sm:$0xff]
      %v1467 = vld [vmem:[#allocation2 + $0x98] sm:$0xff]
      %v1468 = vld [vmem:[#allocation2 + $0xa0] sm:$0xff]
      %v1469 = vld [vmem:[#allocation2 + $0xa8] sm:$0xff]
      %v1470 = vld [vmem:[#allocation2 + $0xb0] sm:$0xff]
      %v1471 = vld [vmem:[#allocation2 + $0xb8] sm:$0xff]
      %v1472 = vld [vmem:[#allocation2 + $0xc0] sm:$0xff]
      %v1473 = vld [vmem:[#allocation2 + $0xc8] sm:$0xff]
      %v1474 = vld [vmem:[#allocation2 + $0xd0] sm:$0xff]
      %v1475 = vld [vmem:[#allocation2 + $0xd8] sm:$0xff]
      %v1476 = vld [vmem:[#allocation2 + $0xe0] sm:$0xff]
      %v1477 = vld [vmem:[#allocation2 + $0xe8] sm:$0xff]
      %v1478 = vld [vmem:[#allocation2 + $0xf0] sm:$0xff]
      %v1479 = vld [vmem:[#allocation2 + $0xf8] sm:$0xff]
      %v1480 = vld [vmem:[#allocation2 + $0x100] sm:$0xff]
      %v1481 = vld [vmem:[#allocation2 + $0x108] sm:$0xff]
      %v1482 = vld [vmem:[#allocation2 + $0x110] sm:$0xff]
      %v1483 = vld [vmem:[#allocation2 + $0x118] sm:$0xff]
      %v1484 = vld [vmem:[#allocation2 + $0x120] sm:$0xff]
      %v1485 = vld [vmem:[#allocation2 + $0x128] sm:$0xff]
      %v1486 = vld [vmem:[#allocation2 + $0x130] sm:$0xff]
      %v1487 = vld [vmem:[#allocation2 + $0x138] sm:$0xff]
      %v1488 = vld [vmem:[#allocation2 + $0x140] sm:$0xff]
      %v1489 = vld [vmem:[#allocation2 + $0x148] sm:$0xff]
      %v1490 = vld [vmem:[#allocation2 + $0x150] sm:$0xff]
      %v1491 = vld [vmem:[#allocation2 + $0x158] sm:$0xff]
      %v1492 = vld [vmem:[#allocation2 + $0x160] sm:$0xff]
      %v1493 = vld [vmem:[#allocation2 + $0x168] sm:$0xff]
      %v1494 = vld [vmem:[#allocation2 + $0x170] sm:$0xff]
      %v1495 = vld [vmem:[#allocation2 + $0x178] sm:$0xff]
      %v1496 = vld [vmem:[#allocation2 + $0x180] sm:$0xff]
      %v1497 = vld [vmem:[#allocation2 + $0x188] sm:$0xff]
      %v1498 = vld [vmem:[#allocation2 + $0x190] sm:$0xff]
      %v1499 = vld [vmem:[#allocation2 + $0x198] sm:$0xff]
      %v1500 = vld [vmem:[#allocation2 + $0x1a0] sm:$0xff]
      %v1501 = vld [vmem:[#allocation2 + $0x1a8] sm:$0xff]
      %v1502 = vld [vmem:[#allocation3] sm:$0x1f]
      %v1503 = vld [vmem:[#allocation3 + $0x8] sm:$0x1f]
      %v1504 = vld [vmem:[#allocation3 + $0x10] sm:$0x1f]
      %v1505 = vld [vmem:[#allocation3 + $0x18] sm:$0x1f]
      %1510 = vrot.lane.b32.xlu0 %v1502, 86
      %v1511 = vpop.permute.xlu0 %1510
      %1512 = vrot.lane.b32.xlu0 %v1503, 86
      %v1513 = vpop.permute.xlu0 %1512
      %1514 = vrot.lane.b32.xlu0 %v1504, 86
      %v1515 = vpop.permute.xlu0 %1514
      %1516 = vrot.lane.b32.xlu0 %v1505, 86
      %v1517 = vpop.permute.xlu0 %1516
      %v1518 = vsel %vm604, %v1511, %v1513
      %v1519 = vsel %vm604, %v1513, %v1515
      %v1520 = vsel %vm604, %v1515, %v1517
      %vm1524 = vcmask 130048
      %v1526 = vsel %vm1524, %v1447, 0
      %1528 = vmatpush.msra.mxu0 %v1493
      %1529 = vmatpush.msra.mxu0 %v1490
      %1530 = vmatpush.msra.mxu0 %v1487
      %1531 = vmatpush.msra.mxu0 %v1484
      %1532 = vmatpush.msra.mxu0 %v1481
      %1533 = vmatpush.msra.mxu0 %v1478
      %1534 = vmatpush.msra.mxu0 %v1475
      %1535 = vmatpush.msra.mxu0 %v1472
      %1536 = vmatpush.msra.mxu0 %v1469
      %1537 = vmatpush.msra.mxu0 %v1466
      %1538 = vmatpush.msra.mxu0 %v1463
      %1539 = vmatpush.msra.mxu0 %v1460
      %1540 = vmatpush.msra.mxu0 %v1457
      %1541 = vmatpush.msra.mxu0 %v1454
      %1542 = vmatpush.msra.mxu0 %v1451
      %1543 = vmatpush.msra.mxu0 %v1448
      %1544 = vmatmul.f32.gmra.mxu0 %v1446
      %v1545 = vpop.f32.mrf.mxu0
      %v1546 = vadd.f32 %v1518, %v1545
      %1547 = vdwg.mxu0
      %1548 = vmatpush.msra.mxu0 0.0
      %1549 = vmatpush.msra.mxu0 0.0
      %1550 = vmatpush.msra.mxu0 0.0
      %1551 = vmatpush.msra.mxu0 0.0
      %1552 = vmatpush.msra.mxu0 0.0
      %1553 = vmatpush.msra.mxu0 0.0
      %1554 = vmatpush.msra.mxu0 0.0
      %1555 = vmatpush.msra.mxu0 0.0
      %1556 = vmatpush.msra.mxu0 0.0
      %1557 = vmatpush.msra.mxu0 0.0
      %1558 = vmatpush.msra.mxu0 0.0
      %1559 = vmatpush.msra.mxu0 0.0
      %1560 = vmatpush.msra.mxu0 0.0
      %1561 = vmatpush.msra.mxu0 0.0
      %1562 = vmatpush.msra.mxu0 %v1499
      %1563 = vmatpush.msra.mxu0 %v1496
      %1564 = vmatmul.f32.gmra.mxu0 %v1526
      %v1565 = vpop.f32.mrf.mxu0
      %v1566 = vadd.f32 %v1546, %v1565
      %1567 = vdwg.mxu0
      %1568 = vmatpush.msra.mxu0 %v1494
      %1569 = vmatpush.msra.mxu0 %v1491
      %1570 = vmatpush.msra.mxu0 %v1488
      %1571 = vmatpush.msra.mxu0 %v1485
      %1572 = vmatpush.msra.mxu0 %v1482
      %1573 = vmatpush.msra.mxu0 %v1479
      %1574 = vmatpush.msra.mxu0 %v1476
      %1575 = vmatpush.msra.mxu0 %v1473
      %1576 = vmatpush.msra.mxu0 %v1470
      %1577 = vmatpush.msra.mxu0 %v1467
      %1578 = vmatpush.msra.mxu0 %v1464
      %1579 = vmatpush.msra.mxu0 %v1461
      %1580 = vmatpush.msra.mxu0 %v1458
      %1581 = vmatpush.msra.mxu0 %v1455
      %1582 = vmatpush.msra.mxu0 %v1452
      %1583 = vmatpush.msra.mxu0 %v1449
      %1584 = vmatmul.f32.gmra.mxu0 %v1446
      %v1585 = vpop.f32.mrf.mxu0
      %v1586 = vadd.f32 %v1519, %v1585
      %1587 = vdwg.mxu0
      %1588 = vmatpush.msra.mxu0 0.0
      %1589 = vmatpush.msra.mxu0 0.0
      %1590 = vmatpush.msra.mxu0 0.0
      %1591 = vmatpush.msra.mxu0 0.0
      %1592 = vmatpush.msra.mxu0 0.0
      %1593 = vmatpush.msra.mxu0 0.0
      %1594 = vmatpush.msra.mxu0 0.0
      %1595 = vmatpush.msra.mxu0 0.0
      %1596 = vmatpush.msra.mxu0 0.0
      %1597 = vmatpush.msra.mxu0 0.0
      %1598 = vmatpush.msra.mxu0 0.0
      %1599 = vmatpush.msra.mxu0 0.0
      %1600 = vmatpush.msra.mxu0 0.0
      %1601 = vmatpush.msra.mxu0 0.0
      %1602 = vmatpush.msra.mxu0 %v1500
      %1603 = vmatpush.msra.mxu0 %v1497
      %1604 = vmatmul.f32.gmra.mxu0 %v1526
      %v1605 = vpop.f32.mrf.mxu0
      %v1606 = vadd.f32 %v1586, %v1605
      %1607 = vdwg.mxu0
      %1608 = vmatpush.msra.mxu0 %v1495
      %1609 = vmatpush.msra.mxu0 %v1492
      %1610 = vmatpush.msra.mxu0 %v1489
      %1611 = vmatpush.msra.mxu0 %v1486
      %1612 = vmatpush.msra.mxu0 %v1483
      %1613 = vmatpush.msra.mxu0 %v1480
      %1614 = vmatpush.msra.mxu0 %v1477
      %1615 = vmatpush.msra.mxu0 %v1474
      %1616 = vmatpush.msra.mxu0 %v1471
      %1617 = vmatpush.msra.mxu0 %v1468
      %1618 = vmatpush.msra.mxu0 %v1465
      %1619 = vmatpush.msra.mxu0 %v1462
      %1620 = vmatpush.msra.mxu0 %v1459
      %1621 = vmatpush.msra.mxu0 %v1456
      %1622 = vmatpush.msra.mxu0 %v1453
      %1623 = vmatpush.msra.mxu0 %v1450
      %1624 = vmatmul.f32.gmra.mxu0 %v1446
      %v1625 = vpop.f32.mrf.mxu0
      %v1626 = vadd.f32 %v1520, %v1625
      %1627 = vdwg.mxu0
      %1628 = vmatpush.msra.mxu0 0.0
      %1629 = vmatpush.msra.mxu0 0.0
      %1630 = vmatpush.msra.mxu0 0.0
      %1631 = vmatpush.msra.mxu0 0.0
      %1632 = vmatpush.msra.mxu0 0.0
      %1633 = vmatpush.msra.mxu0 0.0
      %1634 = vmatpush.msra.mxu0 0.0
      %1635 = vmatpush.msra.mxu0 0.0
      %1636 = vmatpush.msra.mxu0 0.0
      %1637 = vmatpush.msra.mxu0 0.0
      %1638 = vmatpush.msra.mxu0 0.0
      %1639 = vmatpush.msra.mxu0 0.0
      %1640 = vmatpush.msra.mxu0 0.0
      %1641 = vmatpush.msra.mxu0 0.0
      %1642 = vmatpush.msra.mxu0 %v1501
      %1643 = vmatpush.msra.mxu0 %v1498
      %1644 = vmatmul.f32.gmra.mxu0 %v1526
      %v1645 = vpop.f32.mrf.mxu0
      %v1646 = vadd.f32 %v1626, %v1645
      %1647 = vdwg.mxu0
      %v1648 = vmax.f32 %v1566, 0.0
      %v1649 = vmax.f32 %v1606, 0.0
      %v1650 = vmax.f32 %v1646, 0.0
      %1651 = vst [vmem:[#allocation4] sm:$0x1f] %v1648
      %1652 = vst [vmem:[#allocation4 + $0x8] sm:$0x1f] %v1649
      %1653 = vst [vmem:[#allocation4 + $0x10] sm:$0x1f] %v1650
      %v1654 = vld [vmem:[#allocation4] sm:$0x1f]
      %v1655 = vld [vmem:[#allocation4 + $0x8] sm:$0x1f]
      %v1656 = vld [vmem:[#allocation4 + $0x10] sm:$0x1f]
      %1657 = vst [vmem:[#allocation2] sm:$0x1f] %v1654
      %1658 = vst [vmem:[#allocation2 + $0x8] sm:$0x1f] %v1655
      %1659 = vst [vmem:[#allocation2 + $0x10] sm:$0x1f] %v1656
      %v1660 = vld [vmem:[#allocation4] sm:$0x1f]
      %v1661 = vld [vmem:[#allocation4 + $0x8] sm:$0x1f]
      %v1662 = vld [vmem:[#allocation4 + $0x10] sm:$0x1f]
      %v1663 = vld [vmem:[#allocation4 + $0x18] sm:$0x1f]
      %1668 = vrot.lane.b32.xlu0 %v1660, 127
      %v1669 = vpop.permute.xlu0 %1668
      %1670 = vrot.lane.b32.xlu0 %v1661, 127
      %v1671 = vpop.permute.xlu0 %1670
      %1672 = vrot.lane.b32.xlu0 %v1662, 127
      %v1673 = vpop.permute.xlu0 %1672
      %1674 = vrot.lane.b32.xlu0 %v1663, 127
      %v1675 = vpop.permute.xlu0 %1674
      %v1676 = vsel %vm401, %v1669, %v1671
      %v1677 = vsel %vm401, %v1671, %v1673
      %v1678 = vsel %vm401, %v1673, %v1675
      %1682 = vst [vmem:[#allocation2 + $0x18] sm:$0x1f] %v1676
      %1683 = vst [vmem:[#allocation2 + $0x20] sm:$0x1f] %v1677
      %1684 = vst [vmem:[#allocation2 + $0x28] sm:$0x1f] %v1678
      %v1685 = vld [vmem:[#allocation4] sm:$0x1f]
      %v1686 = vld [vmem:[#allocation4 + $0x8] sm:$0x1f]
      %v1687 = vld [vmem:[#allocation4 + $0x10] sm:$0x1f]
      %v1688 = vld [vmem:[#allocation4 + $0x18] sm:$0x1f]
      %1693 = vrot.lane.b32.xlu0 %v1685, 126
      %v1694 = vpop.permute.xlu0 %1693
      %1695 = vrot.lane.b32.xlu0 %v1686, 126
      %v1696 = vpop.permute.xlu0 %1695
      %1697 = vrot.lane.b32.xlu0 %v1687, 126
      %v1698 = vpop.permute.xlu0 %1697
      %1699 = vrot.lane.b32.xlu0 %v1688, 126
      %v1700 = vpop.permute.xlu0 %1699
      %v1701 = vsel %vm430, %v1694, %v1696
      %v1702 = vsel %vm430, %v1696, %v1698
      %v1703 = vsel %vm430, %v1698, %v1700
      %1707 = vst [vmem:[#allocation2 + $0x30] sm:$0x1f] %v1701
      %1708 = vst [vmem:[#allocation2 + $0x38] sm:$0x1f] %v1702
      %1709 = vst [vmem:[#allocation2 + $0x40] sm:$0x1f] %v1703
      %v1710 = vld [vmem:[#allocation4] sm:$0x1f]
      %v1711 = vld [vmem:[#allocation4 + $0x8] sm:$0x1f]
      %v1712 = vld [vmem:[#allocation4 + $0x10] sm:$0x1f]
      %v1713 = vld [vmem:[#allocation4 + $0x18] sm:$0x1f]
      %1718 = vrot.lane.b32.xlu0 %v1710, 108
      %v1719 = vpop.permute.xlu0 %1718
      %1720 = vrot.lane.b32.xlu0 %v1711, 108
      %v1721 = vpop.permute.xlu0 %1720
      %1722 = vrot.lane.b32.xlu0 %v1712, 108
      %v1723 = vpop.permute.xlu0 %1722
      %1724 = vrot.lane.b32.xlu0 %v1713, 108
      %v1725 = vpop.permute.xlu0 %1724
      %v1726 = vsel %vm459, %v1719, %v1721
      %v1727 = vsel %vm459, %v1721, %v1723
      %v1728 = vsel %vm459, %v1723, %v1725
      %1732 = vst [vmem:[#allocation2 + $0x48] sm:$0x1f] %v1726
      %1733 = vst [vmem:[#allocation2 + $0x50] sm:$0x1f] %v1727
      %1734 = vst [vmem:[#allocation2 + $0x58] sm:$0x1f] %v1728
      %v1735 = vld [vmem:[#allocation4] sm:$0x1f]
      %v1736 = vld [vmem:[#allocation4 + $0x8] sm:$0x1f]
      %v1737 = vld [vmem:[#allocation4 + $0x10] sm:$0x1f]
      %v1738 = vld [vmem:[#allocation4 + $0x18] sm:$0x1f]
      %1743 = vrot.lane.b32.xlu0 %v1735, 107
      %v1744 = vpop.permute.xlu0 %1743
      %1745 = vrot.lane.b32.xlu0 %v1736, 107
      %v1746 = vpop.permute.xlu0 %1745
      %1747 = vrot.lane.b32.xlu0 %v1737, 107
      %v1748 = vpop.permute.xlu0 %1747
      %1749 = vrot.lane.b32.xlu0 %v1738, 107
      %v1750 = vpop.permute.xlu0 %1749
      %v1751 = vsel %vm488, %v1744, %v1746
      %v1752 = vsel %vm488, %v1746, %v1748
      %v1753 = vsel %vm488, %v1748, %v1750
      %1757 = vst [vmem:[#allocation2 + $0x60] sm:$0x1f] %v1751
      %1758 = vst [vmem:[#allocation2 + $0x68] sm:$0x1f] %v1752
      %1759 = vst [vmem:[#allocation2 + $0x70] sm:$0x1f] %v1753
      %v1760 = vld [vmem:[#allocation4] sm:$0x1f]
      %v1761 = vld [vmem:[#allocation4 + $0x8] sm:$0x1f]
      %v1762 = vld [vmem:[#allocation4 + $0x10] sm:$0x1f]
      %v1763 = vld [vmem:[#allocation4 + $0x18] sm:$0x1f]
      %1768 = vrot.lane.b32.xlu0 %v1760, 106
      %v1769 = vpop.permute.xlu0 %1768
      %1770 = vrot.lane.b32.xlu0 %v1761, 106
      %v1771 = vpop.permute.xlu0 %1770
      %1772 = vrot.lane.b32.xlu0 %v1762, 106
      %v1773 = vpop.permute.xlu0 %1772
      %1774 = vrot.lane.b32.xlu0 %v1763, 106
      %v1775 = vpop.permute.xlu0 %1774
      %v1776 = vsel %vm517, %v1769, %v1771
      %v1777 = vsel %vm517, %v1771, %v1773
      %v1778 = vsel %vm517, %v1773, %v1775
      %1782 = vst [vmem:[#allocation2 + $0x78] sm:$0x1f] %v1776
      %1783 = vst [vmem:[#allocation2 + $0x80] sm:$0x1f] %v1777
      %1784 = vst [vmem:[#allocation2 + $0x88] sm:$0x1f] %v1778
      %v1785 = vld [vmem:[#allocation4] sm:$0x1f]
      %v1786 = vld [vmem:[#allocation4 + $0x8] sm:$0x1f]
      %v1787 = vld [vmem:[#allocation4 + $0x10] sm:$0x1f]
      %v1788 = vld [vmem:[#allocation4 + $0x18] sm:$0x1f]
      %1793 = vrot.lane.b32.xlu0 %v1785, 88
      %v1794 = vpop.permute.xlu0 %1793
      %1795 = vrot.lane.b32.xlu0 %v1786, 88
      %v1796 = vpop.permute.xlu0 %1795
      %1797 = vrot.lane.b32.xlu0 %v1787, 88
      %v1798 = vpop.permute.xlu0 %1797
      %1799 = vrot.lane.b32.xlu0 %v1788, 88
      %v1800 = vpop.permute.xlu0 %1799
      %v1801 = vsel %vm546, %v1794, %v1796
      %v1802 = vsel %vm546, %v1796, %v1798
      %v1803 = vsel %vm546, %v1798, %v1800
      %1807 = vst [vmem:[#allocation2 + $0x90] sm:$0x1f] %v1801
      %1808 = vst [vmem:[#allocation2 + $0x98] sm:$0x1f] %v1802
      %1809 = vst [vmem:[#allocation2 + $0xa0] sm:$0x1f] %v1803
      %v1810 = vld [vmem:[#allocation4] sm:$0x1f]
      %v1811 = vld [vmem:[#allocation4 + $0x8] sm:$0x1f]
      %v1812 = vld [vmem:[#allocation4 + $0x10] sm:$0x1f]
      %v1813 = vld [vmem:[#allocation4 + $0x18] sm:$0x1f]
      %1818 = vrot.lane.b32.xlu0 %v1810, 87
      %v1819 = vpop.permute.xlu0 %1818
      %1820 = vrot.lane.b32.xlu0 %v1811, 87
      %v1821 = vpop.permute.xlu0 %1820
      %1822 = vrot.lane.b32.xlu0 %v1812, 87
      %v1823 = vpop.permute.xlu0 %1822
      %1824 = vrot.lane.b32.xlu0 %v1813, 87
      %v1825 = vpop.permute.xlu0 %1824
      %v1826 = vsel %vm575, %v1819, %v1821
      %v1827 = vsel %vm575, %v1821, %v1823
      %v1828 = vsel %vm575, %v1823, %v1825
      %1832 = vst [vmem:[#allocation2 + $0xa8] sm:$0x1f] %v1826
      %1833 = vst [vmem:[#allocation2 + $0xb0] sm:$0x1f] %v1827
      %1834 = vst [vmem:[#allocation2 + $0xb8] sm:$0x1f] %v1828
      %v1835 = vld [vmem:[#allocation4] sm:$0x1f]
      %v1836 = vld [vmem:[#allocation4 + $0x8] sm:$0x1f]
      %v1837 = vld [vmem:[#allocation4 + $0x10] sm:$0x1f]
      %v1838 = vld [vmem:[#allocation4 + $0x18] sm:$0x1f]
      %1843 = vrot.lane.b32.xlu0 %v1835, 86
      %v1844 = vpop.permute.xlu0 %1843
      %1845 = vrot.lane.b32.xlu0 %v1836, 86
      %v1846 = vpop.permute.xlu0 %1845
      %1847 = vrot.lane.b32.xlu0 %v1837, 86
      %v1848 = vpop.permute.xlu0 %1847
      %1849 = vrot.lane.b32.xlu0 %v1838, 86
      %v1850 = vpop.permute.xlu0 %1849
      %v1851 = vsel %vm604, %v1844, %v1846
      %v1852 = vsel %vm604, %v1846, %v1848
      %v1853 = vsel %vm604, %v1848, %v1850
      %1857 = vst [vmem:[#allocation2 + $0xc0] sm:$0x1f] %v1851
      %1858 = vst [vmem:[#allocation2 + $0xc8] sm:$0x1f] %v1852
      %1859 = vst [vmem:[#allocation2 + $0xd0] sm:$0x1f] %v1853
      %v1860 = vld [vmem:[%s4] sm:$0xff]
      %v1861 = vld [vmem:[%s4 + $0x8] sm:$0x7f]
      %v1862 = vld [vmem:[#allocation2] sm:$0xff]
      %v1863 = vld [vmem:[#allocation2 + $0x8] sm:$0xff]
      %v1864 = vld [vmem:[#allocation2 + $0x10] sm:$0xff]
      %v1865 = vld [vmem:[#allocation2 + $0x18] sm:$0xff]
      %v1866 = vld [vmem:[#allocation2 + $0x20] sm:$0xff]
      %v1867 = vld [vmem:[#allocation2 + $0x28] sm:$0xff]
      %v1868 = vld [vmem:[#allocation2 + $0x30] sm:$0xff]
      %v1869 = vld [vmem:[#allocation2 + $0x38] sm:$0xff]
      %v1870 = vld [vmem:[#allocation2 + $0x40] sm:$0xff]
      %v1871 = vld [vmem:[#allocation2 + $0x48] sm:$0xff]
      %v1872 = vld [vmem:[#allocation2 + $0x50] sm:$0xff]
      %v1873 = vld [vmem:[#allocation2 + $0x58] sm:$0xff]
      %v1874 = vld [vmem:[#allocation2 + $0x60] sm:$0xff]
      %v1875 = vld [vmem:[#allocation2 + $0x68] sm:$0xff]
      %v1876 = vld [vmem:[#allocation2 + $0x70] sm:$0xff]
      %v1877 = vld [vmem:[#allocation2 + $0x78] sm:$0xff]
      %v1878 = vld [vmem:[#allocation2 + $0x80] sm:$0xff]
      %v1879 = vld [vmem:[#allocation2 + $0x88] sm:$0xff]
      %v1880 = vld [vmem:[#allocation2 + $0x90] sm:$0xff]
      %v1881 = vld [vmem:[#allocation2 + $0x98] sm:$0xff]
      %v1882 = vld [vmem:[#allocation2 + $0xa0] sm:$0xff]
      %v1883 = vld [vmem:[#allocation2 + $0xa8] sm:$0xff]
      %v1884 = vld [vmem:[#allocation2 + $0xb0] sm:$0xff]
      %v1885 = vld [vmem:[#allocation2 + $0xb8] sm:$0xff]
      %v1886 = vld [vmem:[#allocation2 + $0xc0] sm:$0xff]
      %v1887 = vld [vmem:[#allocation2 + $0xc8] sm:$0xff]
      %v1888 = vld [vmem:[#allocation2 + $0xd0] sm:$0xff]
      %v1890 = vsel %vm642, %v1860, 0
      %v1893 = vsel %vm642, %v1861, 0
      %1895 = vmatpush.msra.mxu0 0.0
      %1896 = vmatpush.msra.mxu0 0.0
      %1897 = vmatpush.msra.mxu0 0.0
      %1898 = vmatpush.msra.mxu0 0.0
      %1899 = vmatpush.msra.mxu0 0.0
      %1900 = vmatpush.msra.mxu0 0.0
      %1901 = vmatpush.msra.mxu0 0.0
      %1902 = vmatpush.msra.mxu0 %v1886
      %1903 = vmatpush.msra.mxu0 %v1883
      %1904 = vmatpush.msra.mxu0 %v1880
      %1905 = vmatpush.msra.mxu0 %v1877
      %1906 = vmatpush.msra.mxu0 %v1874
      %1907 = vmatpush.msra.mxu0 %v1871
      %1908 = vmatpush.msra.mxu0 %v1868
      %1909 = vmatpush.msra.mxu0 %v1865
      %1910 = vmatpush.msra.mxu0 %v1862
      %1911 = vmatmul.f32.gmra.mxu0 %v1890
      %v1912 = vpop.f32.mrf.mxu0
      %v1913 = vadd.f32 0.0, %v1912
      %1914 = vmatmul.f32.gmra.mxu0 %v1893
      %v1915 = vpop.f32.mrf.mxu0
      %v1916 = vadd.f32 0.0, %v1915
      %1917 = vdwg.mxu0
      %1918 = vmatpush.msra.mxu0 0.0
      %1919 = vmatpush.msra.mxu0 0.0
      %1920 = vmatpush.msra.mxu0 0.0
      %1921 = vmatpush.msra.mxu0 0.0
      %1922 = vmatpush.msra.mxu0 0.0
      %1923 = vmatpush.msra.mxu0 0.0
      %1924 = vmatpush.msra.mxu0 0.0
      %1925 = vmatpush.msra.mxu0 %v1887
      %1926 = vmatpush.msra.mxu0 %v1884
      %1927 = vmatpush.msra.mxu0 %v1881
      %1928 = vmatpush.msra.mxu0 %v1878
      %1929 = vmatpush.msra.mxu0 %v1875
      %1930 = vmatpush.msra.mxu0 %v1872
      %1931 = vmatpush.msra.mxu0 %v1869
      %1932 = vmatpush.msra.mxu0 %v1866
      %1933 = vmatpush.msra.mxu0 %v1863
      %1934 = vmatmul.f32.gmra.mxu0 %v1890
      %v1935 = vpop.f32.mrf.mxu0
      %v1936 = vadd.f32 0.0, %v1935
      %1937 = vmatmul.f32.gmra.mxu0 %v1893
      %v1938 = vpop.f32.mrf.mxu0
      %v1939 = vadd.f32 0.0, %v1938
      %1940 = vdwg.mxu0
      %1941 = vmatpush.msra.mxu0 0.0
      %1942 = vmatpush.msra.mxu0 0.0
      %1943 = vmatpush.msra.mxu0 0.0
      %1944 = vmatpush.msra.mxu0 0.0
      %1945 = vmatpush.msra.mxu0 0.0
      %1946 = vmatpush.msra.mxu0 0.0
      %1947 = vmatpush.msra.mxu0 0.0
      %1948 = vmatpush.msra.mxu0 %v1888
      %1949 = vmatpush.msra.mxu0 %v1885
      %1950 = vmatpush.msra.mxu0 %v1882
      %1951 = vmatpush.msra.mxu0 %v1879
      %1952 = vmatpush.msra.mxu0 %v1876
      %1953 = vmatpush.msra.mxu0 %v1873
      %1954 = vmatpush.msra.mxu0 %v1870
      %1955 = vmatpush.msra.mxu0 %v1867
      %1956 = vmatpush.msra.mxu0 %v1864
      %1957 = vmatmul.f32.gmra.mxu0 %v1890
      %v1958 = vpop.f32.mrf.mxu0
      %v1959 = vadd.f32 0.0, %v1958
      %1960 = vmatmul.f32.gmra.mxu0 %v1893
      %v1961 = vpop.f32.mrf.mxu0
      %v1962 = vadd.f32 0.0, %v1961
      %1963 = vdwg.mxu0
      %v1964 = vmax.f32 %v1913, 0.0
      %v1965 = vmax.f32 %v1936, 0.0
      %v1966 = vmax.f32 %v1959, 0.0
      %v1967 = vmax.f32 %v1916, 0.0
      %v1968 = vmax.f32 %v1939, 0.0
      %v1969 = vmax.f32 %v1962, 0.0
      %1970 = vst [vmem:[#allocation6] sm:$0xff] %v1964
      %1971 = vst [vmem:[#allocation6 + $0x8] sm:$0xff] %v1965
      %1972 = vst [vmem:[#allocation6 + $0x10] sm:$0xff] %v1966
      %1973 = vst [vmem:[#allocation6 + $0x20] sm:$0x7f] %v1967
      %1974 = vst [vmem:[#allocation6 + $0x28] sm:$0x7f] %v1968
      %1975 = vst [vmem:[#allocation6 + $0x30] sm:$0x7f] %v1969
      %v1976 = vld [vmem:[#allocation6] sm:$0xff]
      %v1977 = vld [vmem:[#allocation6 + $0x8] sm:$0xff]
      %v1978 = vld [vmem:[#allocation6 + $0x10] sm:$0xff]
      %v1979 = vld [vmem:[#allocation6 + $0x20] sm:$0x7f]
      %v1980 = vld [vmem:[#allocation6 + $0x28] sm:$0x7f]
      %v1981 = vld [vmem:[#allocation6 + $0x30] sm:$0x7f]
      %1982 = vst [vmem:[#allocation2] sm:$0xff] %v1976
      %1983 = vst [vmem:[#allocation2 + $0x8] sm:$0xff] %v1977
      %1984 = vst [vmem:[#allocation2 + $0x10] sm:$0xff] %v1978
      %1985 = vst [vmem:[#allocation2 + $0x18] sm:$0x7f] %v1979
      %1986 = vst [vmem:[#allocation2 + $0x20] sm:$0x7f] %v1980
      %1987 = vst [vmem:[#allocation2 + $0x28] sm:$0x7f] %v1981
      %v1988 = vld [vmem:[#allocation6] sm:$0xff]
      %v1989 = vld [vmem:[#allocation6 + $0x8] sm:$0xff]
      %v1990 = vld [vmem:[#allocation6 + $0x10] sm:$0xff]
      %v1991 = vld [vmem:[#allocation6 + $0x18] sm:$0xff]
      %v1992 = vld [vmem:[#allocation6 + $0x20] sm:$0x7f]
      %v1993 = vld [vmem:[#allocation6 + $0x28] sm:$0x7f]
      %v1994 = vld [vmem:[#allocation6 + $0x30] sm:$0x7f]
      %v1995 = vld [vmem:[#allocation6 + $0x38] sm:$0x7f]
      %2004 = vrot.lane.b32.xlu0 %v1988, 127
      %v2005 = vpop.permute.xlu0 %2004
      %2006 = vrot.lane.b32.xlu0 %v1989, 127
      %v2007 = vpop.permute.xlu0 %2006
      %2008 = vrot.lane.b32.xlu0 %v1990, 127
      %v2009 = vpop.permute.xlu0 %2008
      %2010 = vrot.lane.b32.xlu0 %v1991, 127
      %v2011 = vpop.permute.xlu0 %2010
      %2012 = vrot.lane.b32.xlu0 %v1992, 127
      %v2013 = vpop.permute.xlu0 %2012
      %2014 = vrot.lane.b32.xlu0 %v1993, 127
      %v2015 = vpop.permute.xlu0 %2014
      %2016 = vrot.lane.b32.xlu0 %v1994, 127
      %v2017 = vpop.permute.xlu0 %2016
      %2018 = vrot.lane.b32.xlu0 %v1995, 127
      %v2019 = vpop.permute.xlu0 %2018
      %v2020 = vsel %vm401, %v2005, %v2007
      %v2021 = vsel %vm401, %v2007, %v2009
      %v2022 = vsel %vm401, %v2009, %v2011
      %v2023 = vsel %vm401, %v2013, %v2015
      %v2024 = vsel %vm401, %v2015, %v2017
      %v2025 = vsel %vm401, %v2017, %v2019
      %2032 = vst [vmem:[#allocation2 + $0x30] sm:$0xff] %v2020
      %2033 = vst [vmem:[#allocation2 + $0x38] sm:$0xff] %v2021
      %2034 = vst [vmem:[#allocation2 + $0x40] sm:$0xff] %v2022
      %2035 = vst [vmem:[#allocation2 + $0x48] sm:$0x7f] %v2023
      %2036 = vst [vmem:[#allocation2 + $0x50] sm:$0x7f] %v2024
      %2037 = vst [vmem:[#allocation2 + $0x58] sm:$0x7f] %v2025
      %v2038 = vld [vmem:[#allocation6] sm:$0xff]
      %v2039 = vld [vmem:[#allocation6 + $0x8] sm:$0xff]
      %v2040 = vld [vmem:[#allocation6 + $0x10] sm:$0xff]
      %v2041 = vld [vmem:[#allocation6 + $0x18] sm:$0xff]
      %v2042 = vld [vmem:[#allocation6 + $0x20] sm:$0x7f]
      %v2043 = vld [vmem:[#allocation6 + $0x28] sm:$0x7f]
      %v2044 = vld [vmem:[#allocation6 + $0x30] sm:$0x7f]
      %v2045 = vld [vmem:[#allocation6 + $0x38] sm:$0x7f]
      %2054 = vrot.lane.b32.xlu0 %v2038, 126
      %v2055 = vpop.permute.xlu0 %2054
      %2056 = vrot.lane.b32.xlu0 %v2039, 126
      %v2057 = vpop.permute.xlu0 %2056
      %2058 = vrot.lane.b32.xlu0 %v2040, 126
      %v2059 = vpop.permute.xlu0 %2058
      %2060 = vrot.lane.b32.xlu0 %v2041, 126
      %v2061 = vpop.permute.xlu0 %2060
      %2062 = vrot.lane.b32.xlu0 %v2042, 126
      %v2063 = vpop.permute.xlu0 %2062
      %2064 = vrot.lane.b32.xlu0 %v2043, 126
      %v2065 = vpop.permute.xlu0 %2064
      %2066 = vrot.lane.b32.xlu0 %v2044, 126
      %v2067 = vpop.permute.xlu0 %2066
      %2068 = vrot.lane.b32.xlu0 %v2045, 126
      %v2069 = vpop.permute.xlu0 %2068
      %v2070 = vsel %vm430, %v2055, %v2057
      %v2071 = vsel %vm430, %v2057, %v2059
      %v2072 = vsel %vm430, %v2059, %v2061
      %v2073 = vsel %vm430, %v2063, %v2065
      %v2074 = vsel %vm430, %v2065, %v2067
      %v2075 = vsel %vm430, %v2067, %v2069
      %2082 = vst [vmem:[#allocation2 + $0x60] sm:$0xff] %v2070
      %2083 = vst [vmem:[#allocation2 + $0x68] sm:$0xff] %v2071
      %2084 = vst [vmem:[#allocation2 + $0x70] sm:$0xff] %v2072
      %2085 = vst [vmem:[#allocation2 + $0x78] sm:$0x7f] %v2073
      %2086 = vst [vmem:[#allocation2 + $0x80] sm:$0x7f] %v2074
      %2087 = vst [vmem:[#allocation2 + $0x88] sm:$0x7f] %v2075
      %v2088 = vld [vmem:[#allocation6] sm:$0xff]
      %v2089 = vld [vmem:[#allocation6 + $0x8] sm:$0xff]
      %v2090 = vld [vmem:[#allocation6 + $0x10] sm:$0xff]
      %v2091 = vld [vmem:[#allocation6 + $0x18] sm:$0xff]
      %v2092 = vld [vmem:[#allocation6 + $0x20] sm:$0x7f]
      %v2093 = vld [vmem:[#allocation6 + $0x28] sm:$0x7f]
      %v2094 = vld [vmem:[#allocation6 + $0x30] sm:$0x7f]
      %v2095 = vld [vmem:[#allocation6 + $0x38] sm:$0x7f]
      %2104 = vrot.lane.b32.xlu0 %v2088, 108
      %v2105 = vpop.permute.xlu0 %2104
      %2106 = vrot.lane.b32.xlu0 %v2089, 108
      %v2107 = vpop.permute.xlu0 %2106
      %2108 = vrot.lane.b32.xlu0 %v2090, 108
      %v2109 = vpop.permute.xlu0 %2108
      %2110 = vrot.lane.b32.xlu0 %v2091, 108
      %v2111 = vpop.permute.xlu0 %2110
      %2112 = vrot.lane.b32.xlu0 %v2092, 108
      %v2113 = vpop.permute.xlu0 %2112
      %2114 = vrot.lane.b32.xlu0 %v2093, 108
      %v2115 = vpop.permute.xlu0 %2114
      %2116 = vrot.lane.b32.xlu0 %v2094, 108
      %v2117 = vpop.permute.xlu0 %2116
      %2118 = vrot.lane.b32.xlu0 %v2095, 108
      %v2119 = vpop.permute.xlu0 %2118
      %v2120 = vsel %vm459, %v2105, %v2107
      %v2121 = vsel %vm459, %v2107, %v2109
      %v2122 = vsel %vm459, %v2109, %v2111
      %v2123 = vsel %vm459, %v2113, %v2115
      %v2124 = vsel %vm459, %v2115, %v2117
      %v2125 = vsel %vm459, %v2117, %v2119
      %2132 = vst [vmem:[#allocation2 + $0x90] sm:$0xff] %v2120
      %2133 = vst [vmem:[#allocation2 + $0x98] sm:$0xff] %v2121
      %2134 = vst [vmem:[#allocation2 + $0xa0] sm:$0xff] %v2122
      %2135 = vst [vmem:[#allocation2 + $0xa8] sm:$0x7f] %v2123
      %2136 = vst [vmem:[#allocation2 + $0xb0] sm:$0x7f] %v2124
      %2137 = vst [vmem:[#allocation2 + $0xb8] sm:$0x7f] %v2125
      %v2138 = vld [vmem:[#allocation6] sm:$0xff]
      %v2139 = vld [vmem:[#allocation6 + $0x8] sm:$0xff]
      %v2140 = vld [vmem:[#allocation6 + $0x10] sm:$0xff]
      %v2141 = vld [vmem:[#allocation6 + $0x18] sm:$0xff]
      %v2142 = vld [vmem:[#allocation6 + $0x20] sm:$0x7f]
      %v2143 = vld [vmem:[#allocation6 + $0x28] sm:$0x7f]
      %v2144 = vld [vmem:[#allocation6 + $0x30] sm:$0x7f]
      %v2145 = vld [vmem:[#allocation6 + $0x38] sm:$0x7f]
      %2154 = vrot.lane.b32.xlu0 %v2138, 107
      %v2155 = vpop.permute.xlu0 %2154
      %2156 = vrot.lane.b32.xlu0 %v2139, 107
      %v2157 = vpop.permute.xlu0 %2156
      %2158 = vrot.lane.b32.xlu0 %v2140, 107
      %v2159 = vpop.permute.xlu0 %2158
      %2160 = vrot.lane.b32.xlu0 %v2141, 107
      %v2161 = vpop.permute.xlu0 %2160
      %2162 = vrot.lane.b32.xlu0 %v2142, 107
      %v2163 = vpop.permute.xlu0 %2162
      %2164 = vrot.lane.b32.xlu0 %v2143, 107
      %v2165 = vpop.permute.xlu0 %2164
      %2166 = vrot.lane.b32.xlu0 %v2144, 107
      %v2167 = vpop.permute.xlu0 %2166
      %2168 = vrot.lane.b32.xlu0 %v2145, 107
      %v2169 = vpop.permute.xlu0 %2168
      %v2170 = vsel %vm488, %v2155, %v2157
      %v2171 = vsel %vm488, %v2157, %v2159
      %v2172 = vsel %vm488, %v2159, %v2161
      %v2173 = vsel %vm488, %v2163, %v2165
      %v2174 = vsel %vm488, %v2165, %v2167
      %v2175 = vsel %vm488, %v2167, %v2169
      %2182 = vst [vmem:[#allocation2 + $0xc0] sm:$0xff] %v2170
      %2183 = vst [vmem:[#allocation2 + $0xc8] sm:$0xff] %v2171
      %2184 = vst [vmem:[#allocation2 + $0xd0] sm:$0xff] %v2172
      %2185 = vst [vmem:[#allocation2 + $0xd8] sm:$0x7f] %v2173
      %2186 = vst [vmem:[#allocation2 + $0xe0] sm:$0x7f] %v2174
      %2187 = vst [vmem:[#allocation2 + $0xe8] sm:$0x7f] %v2175
      %v2188 = vld [vmem:[#allocation6] sm:$0xff]
      %v2189 = vld [vmem:[#allocation6 + $0x8] sm:$0xff]
      %v2190 = vld [vmem:[#allocation6 + $0x10] sm:$0xff]
      %v2191 = vld [vmem:[#allocation6 + $0x18] sm:$0xff]
      %v2192 = vld [vmem:[#allocation6 + $0x20] sm:$0x7f]
      %v2193 = vld [vmem:[#allocation6 + $0x28] sm:$0x7f]
      %v2194 = vld [vmem:[#allocation6 + $0x30] sm:$0x7f]
      %v2195 = vld [vmem:[#allocation6 + $0x38] sm:$0x7f]
      %2204 = vrot.lane.b32.xlu0 %v2188, 106
      %v2205 = vpop.permute.xlu0 %2204
      %2206 = vrot.lane.b32.xlu0 %v2189, 106
      %v2207 = vpop.permute.xlu0 %2206
      %2208 = vrot.lane.b32.xlu0 %v2190, 106
      %v2209 = vpop.permute.xlu0 %2208
      %2210 = vrot.lane.b32.xlu0 %v2191, 106
      %v2211 = vpop.permute.xlu0 %2210
      %2212 = vrot.lane.b32.xlu0 %v2192, 106
      %v2213 = vpop.permute.xlu0 %2212
      %2214 = vrot.lane.b32.xlu0 %v2193, 106
      %v2215 = vpop.permute.xlu0 %2214
      %2216 = vrot.lane.b32.xlu0 %v2194, 106
      %v2217 = vpop.permute.xlu0 %2216
      %2218 = vrot.lane.b32.xlu0 %v2195, 106
      %v2219 = vpop.permute.xlu0 %2218
      %v2220 = vsel %vm517, %v2205, %v2207
      %v2221 = vsel %vm517, %v2207, %v2209
      %v2222 = vsel %vm517, %v2209, %v2211
      %v2223 = vsel %vm517, %v2213, %v2215
      %v2224 = vsel %vm517, %v2215, %v2217
      %v2225 = vsel %vm517, %v2217, %v2219
      %2232 = vst [vmem:[#allocation2 + $0xf0] sm:$0xff] %v2220
      %2233 = vst [vmem:[#allocation2 + $0xf8] sm:$0xff] %v2221
      %2234 = vst [vmem:[#allocation2 + $0x100] sm:$0xff] %v2222
      %2235 = vst [vmem:[#allocation2 + $0x108] sm:$0x7f] %v2223
      %2236 = vst [vmem:[#allocation2 + $0x110] sm:$0x7f] %v2224
      %2237 = vst [vmem:[#allocation2 + $0x118] sm:$0x7f] %v2225
      %v2238 = vld [vmem:[#allocation6] sm:$0xff]
      %v2239 = vld [vmem:[#allocation6 + $0x8] sm:$0xff]
      %v2240 = vld [vmem:[#allocation6 + $0x10] sm:$0xff]
      %v2241 = vld [vmem:[#allocation6 + $0x18] sm:$0xff]
      %v2242 = vld [vmem:[#allocation6 + $0x20] sm:$0x7f]
      %v2243 = vld [vmem:[#allocation6 + $0x28] sm:$0x7f]
      %v2244 = vld [vmem:[#allocation6 + $0x30] sm:$0x7f]
      %v2245 = vld [vmem:[#allocation6 + $0x38] sm:$0x7f]
      %2254 = vrot.lane.b32.xlu0 %v2238, 88
      %v2255 = vpop.permute.xlu0 %2254
      %2256 = vrot.lane.b32.xlu0 %v2239, 88
      %v2257 = vpop.permute.xlu0 %2256
      %2258 = vrot.lane.b32.xlu0 %v2240, 88
      %v2259 = vpop.permute.xlu0 %2258
      %2260 = vrot.lane.b32.xlu0 %v2241, 88
      %v2261 = vpop.permute.xlu0 %2260
      %2262 = vrot.lane.b32.xlu0 %v2242, 88
      %v2263 = vpop.permute.xlu0 %2262
      %2264 = vrot.lane.b32.xlu0 %v2243, 88
      %v2265 = vpop.permute.xlu0 %2264
      %2266 = vrot.lane.b32.xlu0 %v2244, 88
      %v2267 = vpop.permute.xlu0 %2266
      %2268 = vrot.lane.b32.xlu0 %v2245, 88
      %v2269 = vpop.permute.xlu0 %2268
      %v2270 = vsel %vm546, %v2255, %v2257
      %v2271 = vsel %vm546, %v2257, %v2259
      %v2272 = vsel %vm546, %v2259, %v2261
      %v2273 = vsel %vm546, %v2263, %v2265
      %v2274 = vsel %vm546, %v2265, %v2267
      %v2275 = vsel %vm546, %v2267, %v2269
      %2282 = vst [vmem:[#allocation2 + $0x120] sm:$0xff] %v2270
      %2283 = vst [vmem:[#allocation2 + $0x128] sm:$0xff] %v2271
      %2284 = vst [vmem:[#allocation2 + $0x130] sm:$0xff] %v2272
      %2285 = vst [vmem:[#allocation2 + $0x138] sm:$0x7f] %v2273
      %2286 = vst [vmem:[#allocation2 + $0x140] sm:$0x7f] %v2274
      %2287 = vst [vmem:[#allocation2 + $0x148] sm:$0x7f] %v2275
      %v2288 = vld [vmem:[#allocation6] sm:$0xff]
      %v2289 = vld [vmem:[#allocation6 + $0x8] sm:$0xff]
      %v2290 = vld [vmem:[#allocation6 + $0x10] sm:$0xff]
      %v2291 = vld [vmem:[#allocation6 + $0x18] sm:$0xff]
      %v2292 = vld [vmem:[#allocation6 + $0x20] sm:$0x7f]
      %v2293 = vld [vmem:[#allocation6 + $0x28] sm:$0x7f]
      %v2294 = vld [vmem:[#allocation6 + $0x30] sm:$0x7f]
      %v2295 = vld [vmem:[#allocation6 + $0x38] sm:$0x7f]
      %2304 = vrot.lane.b32.xlu0 %v2288, 87
      %v2305 = vpop.permute.xlu0 %2304
      %2306 = vrot.lane.b32.xlu0 %v2289, 87
      %v2307 = vpop.permute.xlu0 %2306
      %2308 = vrot.lane.b32.xlu0 %v2290, 87
      %v2309 = vpop.permute.xlu0 %2308
      %2310 = vrot.lane.b32.xlu0 %v2291, 87
      %v2311 = vpop.permute.xlu0 %2310
      %2312 = vrot.lane.b32.xlu0 %v2292, 87
      %v2313 = vpop.permute.xlu0 %2312
      %2314 = vrot.lane.b32.xlu0 %v2293, 87
      %v2315 = vpop.permute.xlu0 %2314
      %2316 = vrot.lane.b32.xlu0 %v2294, 87
      %v2317 = vpop.permute.xlu0 %2316
      %2318 = vrot.lane.b32.xlu0 %v2295, 87
      %v2319 = vpop.permute.xlu0 %2318
      %v2320 = vsel %vm575, %v2305, %v2307
      %v2321 = vsel %vm575, %v2307, %v2309
      %v2322 = vsel %vm575, %v2309, %v2311
      %v2323 = vsel %vm575, %v2313, %v2315
      %v2324 = vsel %vm575, %v2315, %v2317
      %v2325 = vsel %vm575, %v2317, %v2319
      %2332 = vst [vmem:[#allocation2 + $0x150] sm:$0xff] %v2320
      %2333 = vst [vmem:[#allocation2 + $0x158] sm:$0xff] %v2321
      %2334 = vst [vmem:[#allocation2 + $0x160] sm:$0xff] %v2322
      %2335 = vst [vmem:[#allocation2 + $0x168] sm:$0x7f] %v2323
      %2336 = vst [vmem:[#allocation2 + $0x170] sm:$0x7f] %v2324
      %2337 = vst [vmem:[#allocation2 + $0x178] sm:$0x7f] %v2325
      %v2338 = vld [vmem:[#allocation6] sm:$0xff]
      %v2339 = vld [vmem:[#allocation6 + $0x8] sm:$0xff]
      %v2340 = vld [vmem:[#allocation6 + $0x10] sm:$0xff]
      %v2341 = vld [vmem:[#allocation6 + $0x18] sm:$0xff]
      %v2342 = vld [vmem:[#allocation6 + $0x20] sm:$0x7f]
      %v2343 = vld [vmem:[#allocation6 + $0x28] sm:$0x7f]
      %v2344 = vld [vmem:[#allocation6 + $0x30] sm:$0x7f]
      %v2345 = vld [vmem:[#allocation6 + $0x38] sm:$0x7f]
      %2354 = vrot.lane.b32.xlu0 %v2338, 86
      %v2355 = vpop.permute.xlu0 %2354
      %2356 = vrot.lane.b32.xlu0 %v2339, 86
      %v2357 = vpop.permute.xlu0 %2356
      %2358 = vrot.lane.b32.xlu0 %v2340, 86
      %v2359 = vpop.permute.xlu0 %2358
      %2360 = vrot.lane.b32.xlu0 %v2341, 86
      %v2361 = vpop.permute.xlu0 %2360
      %2362 = vrot.lane.b32.xlu0 %v2342, 86
      %v2363 = vpop.permute.xlu0 %2362
      %2364 = vrot.lane.b32.xlu0 %v2343, 86
      %v2365 = vpop.permute.xlu0 %2364
      %2366 = vrot.lane.b32.xlu0 %v2344, 86
      %v2367 = vpop.permute.xlu0 %2366
      %2368 = vrot.lane.b32.xlu0 %v2345, 86
      %v2369 = vpop.permute.xlu0 %2368
      %v2370 = vsel %vm604, %v2355, %v2357
      %v2371 = vsel %vm604, %v2357, %v2359
      %v2372 = vsel %vm604, %v2359, %v2361
      %v2373 = vsel %vm604, %v2363, %v2365
      %v2374 = vsel %vm604, %v2365, %v2367
      %v2375 = vsel %vm604, %v2367, %v2369
      %2382 = vst [vmem:[#allocation2 + $0x180] sm:$0xff] %v2370
      %2383 = vst [vmem:[#allocation2 + $0x188] sm:$0xff] %v2371
      %2384 = vst [vmem:[#allocation2 + $0x190] sm:$0xff] %v2372
      %2385 = vst [vmem:[#allocation2 + $0x198] sm:$0x7f] %v2373
      %2386 = vst [vmem:[#allocation2 + $0x1a0] sm:$0x7f] %v2374
      %2387 = vst [vmem:[#allocation2 + $0x1a8] sm:$0x7f] %v2375
      %v2388 = vld [vmem:[%s5] sm:$0xff]
      %v2389 = vld [vmem:[%s5 + $0x8] sm:$0xff]
      %v2390 = vld [vmem:[%s5 + $0x10] sm:$0x3]
      %v2391 = vld [vmem:[%s5 + $0x18] sm:$0x3]
      %v2392 = vld [vmem:[#allocation2] sm:$0xff]
      %v2393 = vld [vmem:[#allocation2 + $0x8] sm:$0xff]
      %v2394 = vld [vmem:[#allocation2 + $0x10] sm:$0xff]
      %v2395 = vld [vmem:[#allocation2 + $0x18] sm:$0xff]
      %v2396 = vld [vmem:[#allocation2 + $0x20] sm:$0xff]
      %v2397 = vld [vmem:[#allocation2 + $0x28] sm:$0xff]
      %v2398 = vld [vmem:[#allocation2 + $0x30] sm:$0xff]
      %v2399 = vld [vmem:[#allocation2 + $0x38] sm:$0xff]
      %v2400 = vld [vmem:[#allocation2 + $0x40] sm:$0xff]
      %v2401 = vld [vmem:[#allocation2 + $0x48] sm:$0xff]
      %v2402 = vld [vmem:[#allocation2 + $0x50] sm:$0xff]
      %v2403 = vld [vmem:[#allocation2 + $0x58] sm:$0xff]
      %v2404 = vld [vmem:[#allocation2 + $0x60] sm:$0xff]
      %v2405 = vld [vmem:[#allocation2 + $0x68] sm:$0xff]
      %v2406 = vld [vmem:[#allocation2 + $0x70] sm:$0xff]
      %v2407 = vld [vmem:[#allocation2 + $0x78] sm:$0xff]
      %v2408 = vld [vmem:[#allocation2 + $0x80] sm:$0xff]
      %v2409 = vld [vmem:[#allocation2 + $0x88] sm:$0xff]
      %v2410 = vld [vmem:[#allocation2 + $0x90] sm:$0xff]
      %v2411 = vld [vmem:[#allocation2 + $0x98] sm:$0xff]
      %v2412 = vld [vmem:[#allocation2 + $0xa0] sm:$0xff]
      %v2413 = vld [vmem:[#allocation2 + $0xa8] sm:$0xff]
      %v2414 = vld [vmem:[#allocation2 + $0xb0] sm:$0xff]
      %v2415 = vld [vmem:[#allocation2 + $0xb8] sm:$0xff]
      %v2416 = vld [vmem:[#allocation2 + $0xc0] sm:$0xff]
      %v2417 = vld [vmem:[#allocation2 + $0xc8] sm:$0xff]
      %v2418 = vld [vmem:[#allocation2 + $0xd0] sm:$0xff]
      %v2419 = vld [vmem:[#allocation2 + $0xd8] sm:$0xff]
      %v2420 = vld [vmem:[#allocation2 + $0xe0] sm:$0xff]
      %v2421 = vld [vmem:[#allocation2 + $0xe8] sm:$0xff]
      %v2422 = vld [vmem:[#allocation2 + $0xf0] sm:$0xff]
      %v2423 = vld [vmem:[#allocation2 + $0xf8] sm:$0xff]
      %v2424 = vld [vmem:[#allocation2 + $0x100] sm:$0xff]
      %v2425 = vld [vmem:[#allocation2 + $0x108] sm:$0xff]
      %v2426 = vld [vmem:[#allocation2 + $0x110] sm:$0xff]
      %v2427 = vld [vmem:[#allocation2 + $0x118] sm:$0xff]
      %v2428 = vld [vmem:[#allocation2 + $0x120] sm:$0xff]
      %v2429 = vld [vmem:[#allocation2 + $0x128] sm:$0xff]
      %v2430 = vld [vmem:[#allocation2 + $0x130] sm:$0xff]
      %v2431 = vld [vmem:[#allocation2 + $0x138] sm:$0xff]
      %v2432 = vld [vmem:[#allocation2 + $0x140] sm:$0xff]
      %v2433 = vld [vmem:[#allocation2 + $0x148] sm:$0xff]
      %v2434 = vld [vmem:[#allocation2 + $0x150] sm:$0xff]
      %v2435 = vld [vmem:[#allocation2 + $0x158] sm:$0xff]
      %v2436 = vld [vmem:[#allocation2 + $0x160] sm:$0xff]
      %v2437 = vld [vmem:[#allocation2 + $0x168] sm:$0xff]
      %v2438 = vld [vmem:[#allocation2 + $0x170] sm:$0xff]
      %v2439 = vld [vmem:[#allocation2 + $0x178] sm:$0xff]
      %v2440 = vld [vmem:[#allocation2 + $0x180] sm:$0xff]
      %v2441 = vld [vmem:[#allocation2 + $0x188] sm:$0xff]
      %v2442 = vld [vmem:[#allocation2 + $0x190] sm:$0xff]
      %v2443 = vld [vmem:[#allocation2 + $0x198] sm:$0xff]
      %v2444 = vld [vmem:[#allocation2 + $0x1a0] sm:$0xff]
      %v2445 = vld [vmem:[#allocation2 + $0x1a8] sm:$0xff]
      %v2447 = vsel %vm1524, %v2389, 0
      %v2450 = vsel %vm1524, %v2391, 0
      %2452 = vmatpush.msra.mxu0 %v2437
      %2453 = vmatpush.msra.mxu0 %v2434
      %2454 = vmatpush.msra.mxu0 %v2431
      %2455 = vmatpush.msra.mxu0 %v2428
      %2456 = vmatpush.msra.mxu0 %v2425
      %2457 = vmatpush.msra.mxu0 %v2422
      %2458 = vmatpush.msra.mxu0 %v2419
      %2459 = vmatpush.msra.mxu0 %v2416
      %2460 = vmatpush.msra.mxu0 %v2413
      %2461 = vmatpush.msra.mxu0 %v2410
      %2462 = vmatpush.msra.mxu0 %v2407
      %2463 = vmatpush.msra.mxu0 %v2404
      %2464 = vmatpush.msra.mxu0 %v2401
      %2465 = vmatpush.msra.mxu0 %v2398
      %2466 = vmatpush.msra.mxu0 %v2395
      %2467 = vmatpush.msra.mxu0 %v2392
      %2468 = vmatmul.f32.gmra.mxu0 %v2388
      %v2469 = vpop.f32.mrf.mxu0
      %v2470 = vadd.f32 0.0, %v2469
      %2471 = vmatmul.f32.gmra.mxu0 %v2390
      %v2472 = vpop.f32.mrf.mxu0
      %v2473 = vadd.f32 0.0, %v2472
      %2474 = vdwg.mxu0
      %2475 = vmatpush.msra.mxu0 0.0
      %2476 = vmatpush.msra.mxu0 0.0
      %2477 = vmatpush.msra.mxu0 0.0
      %2478 = vmatpush.msra.mxu0 0.0
      %2479 = vmatpush.msra.mxu0 0.0
      %2480 = vmatpush.msra.mxu0 0.0
      %2481 = vmatpush.msra.mxu0 0.0
      %2482 = vmatpush.msra.mxu0 0.0
      %2483 = vmatpush.msra.mxu0 0.0
      %2484 = vmatpush.msra.mxu0 0.0
      %2485 = vmatpush.msra.mxu0 0.0
      %2486 = vmatpush.msra.mxu0 0.0
      %2487 = vmatpush.msra.mxu0 0.0
      %2488 = vmatpush.msra.mxu0 0.0
      %2489 = vmatpush.msra.mxu0 %v2443
      %2490 = vmatpush.msra.mxu0 %v2440
      %2491 = vmatmul.f32.gmra.mxu0 %v2447
      %v2492 = vpop.f32.mrf.mxu0
      %v2493 = vadd.f32 %v2470, %v2492
      %2494 = vmatmul.f32.gmra.mxu0 %v2450
      %v2495 = vpop.f32.mrf.mxu0
      %v2496 = vadd.f32 %v2473, %v2495
      %2497 = vdwg.mxu0
      %2498 = vmatpush.msra.mxu0 %v2438
      %2499 = vmatpush.msra.mxu0 %v2435
      %2500 = vmatpush.msra.mxu0 %v2432
      %2501 = vmatpush.msra.mxu0 %v2429
      %2502 = vmatpush.msra.mxu0 %v2426
      %2503 = vmatpush.msra.mxu0 %v2423
      %2504 = vmatpush.msra.mxu0 %v2420
      %2505 = vmatpush.msra.mxu0 %v2417
      %2506 = vmatpush.msra.mxu0 %v2414
      %2507 = vmatpush.msra.mxu0 %v2411
      %2508 = vmatpush.msra.mxu0 %v2408
      %2509 = vmatpush.msra.mxu0 %v2405
      %2510 = vmatpush.msra.mxu0 %v2402
      %2511 = vmatpush.msra.mxu0 %v2399
      %2512 = vmatpush.msra.mxu0 %v2396
      %2513 = vmatpush.msra.mxu0 %v2393
      %2514 = vmatmul.f32.gmra.mxu0 %v2388
      %v2515 = vpop.f32.mrf.mxu0
      %v2516 = vadd.f32 0.0, %v2515
      %2517 = vmatmul.f32.gmra.mxu0 %v2390
      %v2518 = vpop.f32.mrf.mxu0
      %v2519 = vadd.f32 0.0, %v2518
      %2520 = vdwg.mxu0
      %2521 = vmatpush.msra.mxu0 0.0
      %2522 = vmatpush.msra.mxu0 0.0
      %2523 = vmatpush.msra.mxu0 0.0
      %2524 = vmatpush.msra.mxu0 0.0
      %2525 = vmatpush.msra.mxu0 0.0
      %2526 = vmatpush.msra.mxu0 0.0
      %2527 = vmatpush.msra.mxu0 0.0
      %2528 = vmatpush.msra.mxu0 0.0
      %2529 = vmatpush.msra.mxu0 0.0
      %2530 = vmatpush.msra.mxu0 0.0
      %2531 = vmatpush.msra.mxu0 0.0
      %2532 = vmatpush.msra.mxu0 0.0
      %2533 = vmatpush.msra.mxu0 0.0
      %2534 = vmatpush.msra.mxu0 0.0
      %2535 = vmatpush.msra.mxu0 %v2444
      %2536 = vmatpush.msra.mxu0 %v2441
      %2537 = vmatmul.f32.gmra.mxu0 %v2447
      %v2538 = vpop.f32.mrf.mxu0
      %v2539 = vadd.f32 %v2516, %v2538
      %2540 = vmatmul.f32.gmra.mxu0 %v2450
      %v2541 = vpop.f32.mrf.mxu0
      %v2542 = vadd.f32 %v2519, %v2541
      %2543 = vdwg.mxu0
      %2544 = vmatpush.msra.mxu0 %v2439
      %2545 = vmatpush.msra.mxu0 %v2436
      %2546 = vmatpush.msra.mxu0 %v2433
      %2547 = vmatpush.msra.mxu0 %v2430
      %2548 = vmatpush.msra.mxu0 %v2427
      %2549 = vmatpush.msra.mxu0 %v2424
      %2550 = vmatpush.msra.mxu0 %v2421
      %2551 = vmatpush.msra.mxu0 %v2418
      %2552 = vmatpush.msra.mxu0 %v2415
      %2553 = vmatpush.msra.mxu0 %v2412
      %2554 = vmatpush.msra.mxu0 %v2409
      %2555 = vmatpush.msra.mxu0 %v2406
      %2556 = vmatpush.msra.mxu0 %v2403
      %2557 = vmatpush.msra.mxu0 %v2400
      %2558 = vmatpush.msra.mxu0 %v2397
      %2559 = vmatpush.msra.mxu0 %v2394
      %2560 = vmatmul.f32.gmra.mxu0 %v2388
      %v2561 = vpop.f32.mrf.mxu0
      %v2562 = vadd.f32 0.0, %v2561
      %2563 = vmatmul.f32.gmra.mxu0 %v2390
      %v2564 = vpop.f32.mrf.mxu0
      %v2565 = vadd.f32 0.0, %v2564
      %2566 = vdwg.mxu0
      %2567 = vmatpush.msra.mxu0 0.0
      %2568 = vmatpush.msra.mxu0 0.0
      %2569 = vmatpush.msra.mxu0 0.0
      %2570 = vmatpush.msra.mxu0 0.0
      %2571 = vmatpush.msra.mxu0 0.0
      %2572 = vmatpush.msra.mxu0 0.0
      %2573 = vmatpush.msra.mxu0 0.0
      %2574 = vmatpush.msra.mxu0 0.0
      %2575 = vmatpush.msra.mxu0 0.0
      %2576 = vmatpush.msra.mxu0 0.0
      %2577 = vmatpush.msra.mxu0 0.0
      %2578 = vmatpush.msra.mxu0 0.0
      %2579 = vmatpush.msra.mxu0 0.0
      %2580 = vmatpush.msra.mxu0 0.0
      %2581 = vmatpush.msra.mxu0 %v2445
      %2582 = vmatpush.msra.mxu0 %v2442
      %2583 = vmatmul.f32.gmra.mxu0 %v2447
      %v2584 = vpop.f32.mrf.mxu0
      %v2585 = vadd.f32 %v2562, %v2584
      %2586 = vmatmul.f32.gmra.mxu0 %v2450
      %v2587 = vpop.f32.mrf.mxu0
      %v2588 = vadd.f32 %v2565, %v2587
      %2589 = vdwg.mxu0
      %v2590 = vmax.f32 %v2493, 0.0
      %v2591 = vmax.f32 %v2539, 0.0
      %v2592 = vmax.f32 %v2585, 0.0
      %v2593 = vmax.f32 %v2496, 0.0
      %v2594 = vmax.f32 %v2542, 0.0
      %v2595 = vmax.f32 %v2588, 0.0
      %2596 = vst [vmem:[#allocation5] sm:$0xff] %v2590
      %2597 = vst [vmem:[#allocation5 + $0x8] sm:$0xff] %v2591
      %2598 = vst [vmem:[#allocation5 + $0x10] sm:$0xff] %v2592
      %2599 = vst [vmem:[#allocation5 + $0x20] sm:$0x3] %v2593
      %2600 = vst [vmem:[#allocation5 + $0x28] sm:$0x3] %v2594
      %2601 = vst [vmem:[#allocation5 + $0x30] sm:$0x3] %v2595
      %v2602 = vld [vmem:[#allocation5] sm:$0xff]
      %v2603 = vld [vmem:[#allocation5 + $0x8] sm:$0xff]
      %v2604 = vld [vmem:[#allocation5 + $0x10] sm:$0xff]
      %v2605 = vld [vmem:[#allocation5 + $0x20] sm:$0x3]
      %v2606 = vld [vmem:[#allocation5 + $0x28] sm:$0x3]
      %v2607 = vld [vmem:[#allocation5 + $0x30] sm:$0x3]
      %2608 = vst [vmem:[#allocation2] sm:$0xff] %v2602
      %2609 = vst [vmem:[#allocation2 + $0x8] sm:$0xff] %v2603
      %2610 = vst [vmem:[#allocation2 + $0x10] sm:$0xff] %v2604
      %2611 = vst [vmem:[#allocation2 + $0x18] sm:$0x3] %v2605
      %2612 = vst [vmem:[#allocation2 + $0x20] sm:$0x3] %v2606
      %2613 = vst [vmem:[#allocation2 + $0x28] sm:$0x3] %v2607
      %v2614 = vld [vmem:[#allocation5] sm:$0xff]
      %v2615 = vld [vmem:[#allocation5 + $0x8] sm:$0xff]
      %v2616 = vld [vmem:[#allocation5 + $0x10] sm:$0xff]
      %v2617 = vld [vmem:[#allocation5 + $0x18] sm:$0xff]
      %v2618 = vld [vmem:[#allocation5 + $0x20] sm:$0x3]
      %v2619 = vld [vmem:[#allocation5 + $0x28] sm:$0x3]
      %v2620 = vld [vmem:[#allocation5 + $0x30] sm:$0x3]
      %v2621 = vld [vmem:[#allocation5 + $0x38] sm:$0x3]
      %2630 = vrot.lane.b32.xlu0 %v2614, 127
      %v2631 = vpop.permute.xlu0 %2630
      %2632 = vrot.lane.b32.xlu0 %v2615, 127
      %v2633 = vpop.permute.xlu0 %2632
      %2634 = vrot.lane.b32.xlu0 %v2616, 127
      %v2635 = vpop.permute.xlu0 %2634
      %2636 = vrot.lane.b32.xlu0 %v2617, 127
      %v2637 = vpop.permute.xlu0 %2636
      %2638 = vrot.lane.b32.xlu0 %v2618, 127
      %v2639 = vpop.permute.xlu0 %2638
      %2640 = vrot.lane.b32.xlu0 %v2619, 127
      %v2641 = vpop.permute.xlu0 %2640
      %2642 = vrot.lane.b32.xlu0 %v2620, 127
      %v2643 = vpop.permute.xlu0 %2642
      %2644 = vrot.lane.b32.xlu0 %v2621, 127
      %v2645 = vpop.permute.xlu0 %2644
      %v2646 = vsel %vm401, %v2631, %v2633
      %v2647 = vsel %vm401, %v2633, %v2635
      %v2648 = vsel %vm401, %v2635, %v2637
      %v2649 = vsel %vm401, %v2639, %v2641
      %v2650 = vsel %vm401, %v2641, %v2643
      %v2651 = vsel %vm401, %v2643, %v2645
      %2658 = vst [vmem:[#allocation2 + $0x30] sm:$0xff] %v2646
      %2659 = vst [vmem:[#allocation2 + $0x38] sm:$0xff] %v2647
      %2660 = vst [vmem:[#allocation2 + $0x40] sm:$0xff] %v2648
      %2661 = vst [vmem:[#allocation2 + $0x48] sm:$0x3] %v2649
      %2662 = vst [vmem:[#allocation2 + $0x50] sm:$0x3] %v2650
      %2663 = vst [vmem:[#allocation2 + $0x58] sm:$0x3] %v2651
      %v2664 = vld [vmem:[#allocation5] sm:$0xff]
      %v2665 = vld [vmem:[#allocation5 + $0x8] sm:$0xff]
      %v2666 = vld [vmem:[#allocation5 + $0x10] sm:$0xff]
      %v2667 = vld [vmem:[#allocation5 + $0x18] sm:$0xff]
      %v2668 = vld [vmem:[#allocation5 + $0x20] sm:$0x3]
      %v2669 = vld [vmem:[#allocation5 + $0x28] sm:$0x3]
      %v2670 = vld [vmem:[#allocation5 + $0x30] sm:$0x3]
      %v2671 = vld [vmem:[#allocation5 + $0x38] sm:$0x3]
      %2680 = vrot.lane.b32.xlu0 %v2664, 126
      %v2681 = vpop.permute.xlu0 %2680
      %2682 = vrot.lane.b32.xlu0 %v2665, 126
      %v2683 = vpop.permute.xlu0 %2682
      %2684 = vrot.lane.b32.xlu0 %v2666, 126
      %v2685 = vpop.permute.xlu0 %2684
      %2686 = vrot.lane.b32.xlu0 %v2667, 126
      %v2687 = vpop.permute.xlu0 %2686
      %2688 = vrot.lane.b32.xlu0 %v2668, 126
      %v2689 = vpop.permute.xlu0 %2688
      %2690 = vrot.lane.b32.xlu0 %v2669, 126
      %v2691 = vpop.permute.xlu0 %2690
      %2692 = vrot.lane.b32.xlu0 %v2670, 126
      %v2693 = vpop.permute.xlu0 %2692
      %2694 = vrot.lane.b32.xlu0 %v2671, 126
      %v2695 = vpop.permute.xlu0 %2694
      %v2696 = vsel %vm430, %v2681, %v2683
      %v2697 = vsel %vm430, %v2683, %v2685
      %v2698 = vsel %vm430, %v2685, %v2687
      %v2699 = vsel %vm430, %v2689, %v2691
      %v2700 = vsel %vm430, %v2691, %v2693
      %v2701 = vsel %vm430, %v2693, %v2695
      %2708 = vst [vmem:[#allocation2 + $0x60] sm:$0xff] %v2696
      %2709 = vst [vmem:[#allocation2 + $0x68] sm:$0xff] %v2697
      %2710 = vst [vmem:[#allocation2 + $0x70] sm:$0xff] %v2698
      %2711 = vst [vmem:[#allocation2 + $0x78] sm:$0x3] %v2699
      %2712 = vst [vmem:[#allocation2 + $0x80] sm:$0x3] %v2700
      %2713 = vst [vmem:[#allocation2 + $0x88] sm:$0x3] %v2701
      %v2714 = vld [vmem:[#allocation5] sm:$0xff]
      %v2715 = vld [vmem:[#allocation5 + $0x8] sm:$0xff]
      %v2716 = vld [vmem:[#allocation5 + $0x10] sm:$0xff]
      %v2717 = vld [vmem:[#allocation5 + $0x18] sm:$0xff]
      %v2718 = vld [vmem:[#allocation5 + $0x20] sm:$0x3]
      %v2719 = vld [vmem:[#allocation5 + $0x28] sm:$0x3]
      %v2720 = vld [vmem:[#allocation5 + $0x30] sm:$0x3]
      %v2721 = vld [vmem:[#allocation5 + $0x38] sm:$0x3]
      %2730 = vrot.lane.b32.xlu0 %v2714, 108
      %v2731 = vpop.permute.xlu0 %2730
      %2732 = vrot.lane.b32.xlu0 %v2715, 108
      %v2733 = vpop.permute.xlu0 %2732
      %2734 = vrot.lane.b32.xlu0 %v2716, 108
      %v2735 = vpop.permute.xlu0 %2734
      %2736 = vrot.lane.b32.xlu0 %v2717, 108
      %v2737 = vpop.permute.xlu0 %2736
      %2738 = vrot.lane.b32.xlu0 %v2718, 108
      %v2739 = vpop.permute.xlu0 %2738
      %2740 = vrot.lane.b32.xlu0 %v2719, 108
      %v2741 = vpop.permute.xlu0 %2740
      %2742 = vrot.lane.b32.xlu0 %v2720, 108
      %v2743 = vpop.permute.xlu0 %2742
      %2744 = vrot.lane.b32.xlu0 %v2721, 108
      %v2745 = vpop.permute.xlu0 %2744
      %v2746 = vsel %vm459, %v2731, %v2733
      %v2747 = vsel %vm459, %v2733, %v2735
      %v2748 = vsel %vm459, %v2735, %v2737
      %v2749 = vsel %vm459, %v2739, %v2741
      %v2750 = vsel %vm459, %v2741, %v2743
      %v2751 = vsel %vm459, %v2743, %v2745
      %2758 = vst [vmem:[#allocation2 + $0x90] sm:$0xff] %v2746
      %2759 = vst [vmem:[#allocation2 + $0x98] sm:$0xff] %v2747
      %2760 = vst [vmem:[#allocation2 + $0xa0] sm:$0xff] %v2748
      %2761 = vst [vmem:[#allocation2 + $0xa8] sm:$0x3] %v2749
      %2762 = vst [vmem:[#allocation2 + $0xb0] sm:$0x3] %v2750
      %2763 = vst [vmem:[#allocation2 + $0xb8] sm:$0x3] %v2751
      %v2764 = vld [vmem:[#allocation5] sm:$0xff]
      %v2765 = vld [vmem:[#allocation5 + $0x8] sm:$0xff]
      %v2766 = vld [vmem:[#allocation5 + $0x10] sm:$0xff]
      %v2767 = vld [vmem:[#allocation5 + $0x18] sm:$0xff]
      %v2768 = vld [vmem:[#allocation5 + $0x20] sm:$0x3]
      %v2769 = vld [vmem:[#allocation5 + $0x28] sm:$0x3]
      %v2770 = vld [vmem:[#allocation5 + $0x30] sm:$0x3]
      %v2771 = vld [vmem:[#allocation5 + $0x38] sm:$0x3]
      %2780 = vrot.lane.b32.xlu0 %v2764, 107
      %v2781 = vpop.permute.xlu0 %2780
      %2782 = vrot.lane.b32.xlu0 %v2765, 107
      %v2783 = vpop.permute.xlu0 %2782
      %2784 = vrot.lane.b32.xlu0 %v2766, 107
      %v2785 = vpop.permute.xlu0 %2784
      %2786 = vrot.lane.b32.xlu0 %v2767, 107
      %v2787 = vpop.permute.xlu0 %2786
      %2788 = vrot.lane.b32.xlu0 %v2768, 107
      %v2789 = vpop.permute.xlu0 %2788
      %2790 = vrot.lane.b32.xlu0 %v2769, 107
      %v2791 = vpop.permute.xlu0 %2790
      %2792 = vrot.lane.b32.xlu0 %v2770, 107
      %v2793 = vpop.permute.xlu0 %2792
      %2794 = vrot.lane.b32.xlu0 %v2771, 107
      %v2795 = vpop.permute.xlu0 %2794
      %v2796 = vsel %vm488, %v2781, %v2783
      %v2797 = vsel %vm488, %v2783, %v2785
      %v2798 = vsel %vm488, %v2785, %v2787
      %v2799 = vsel %vm488, %v2789, %v2791
      %v2800 = vsel %vm488, %v2791, %v2793
      %v2801 = vsel %vm488, %v2793, %v2795
      %2808 = vst [vmem:[#allocation2 + $0xc0] sm:$0xff] %v2796
      %2809 = vst [vmem:[#allocation2 + $0xc8] sm:$0xff] %v2797
      %2810 = vst [vmem:[#allocation2 + $0xd0] sm:$0xff] %v2798
      %2811 = vst [vmem:[#allocation2 + $0xd8] sm:$0x3] %v2799
      %2812 = vst [vmem:[#allocation2 + $0xe0] sm:$0x3] %v2800
      %2813 = vst [vmem:[#allocation2 + $0xe8] sm:$0x3] %v2801
      %v2814 = vld [vmem:[#allocation5] sm:$0xff]
      %v2815 = vld [vmem:[#allocation5 + $0x8] sm:$0xff]
      %v2816 = vld [vmem:[#allocation5 + $0x10] sm:$0xff]
      %v2817 = vld [vmem:[#allocation5 + $0x18] sm:$0xff]
      %v2818 = vld [vmem:[#allocation5 + $0x20] sm:$0x3]
      %v2819 = vld [vmem:[#allocation5 + $0x28] sm:$0x3]
      %v2820 = vld [vmem:[#allocation5 + $0x30] sm:$0x3]
      %v2821 = vld [vmem:[#allocation5 + $0x38] sm:$0x3]
      %2830 = vrot.lane.b32.xlu0 %v2814, 106
      %v2831 = vpop.permute.xlu0 %2830
      %2832 = vrot.lane.b32.xlu0 %v2815, 106
      %v2833 = vpop.permute.xlu0 %2832
      %2834 = vrot.lane.b32.xlu0 %v2816, 106
      %v2835 = vpop.permute.xlu0 %2834
      %2836 = vrot.lane.b32.xlu0 %v2817, 106
      %v2837 = vpop.permute.xlu0 %2836
      %2838 = vrot.lane.b32.xlu0 %v2818, 106
      %v2839 = vpop.permute.xlu0 %2838
      %2840 = vrot.lane.b32.xlu0 %v2819, 106
      %v2841 = vpop.permute.xlu0 %2840
      %2842 = vrot.lane.b32.xlu0 %v2820, 106
      %v2843 = vpop.permute.xlu0 %2842
      %2844 = vrot.lane.b32.xlu0 %v2821, 106
      %v2845 = vpop.permute.xlu0 %2844
      %v2846 = vsel %vm517, %v2831, %v2833
      %v2847 = vsel %vm517, %v2833, %v2835
      %v2848 = vsel %vm517, %v2835, %v2837
      %v2849 = vsel %vm517, %v2839, %v2841
      %v2850 = vsel %vm517, %v2841, %v2843
      %v2851 = vsel %vm517, %v2843, %v2845
      %2858 = vst [vmem:[#allocation2 + $0xf0] sm:$0xff] %v2846
      %2859 = vst [vmem:[#allocation2 + $0xf8] sm:$0xff] %v2847
      %2860 = vst [vmem:[#allocation2 + $0x100] sm:$0xff] %v2848
      %2861 = vst [vmem:[#allocation2 + $0x108] sm:$0x3] %v2849
      %2862 = vst [vmem:[#allocation2 + $0x110] sm:$0x3] %v2850
      %2863 = vst [vmem:[#allocation2 + $0x118] sm:$0x3] %v2851
      %v2864 = vld [vmem:[#allocation5] sm:$0xff]
      %v2865 = vld [vmem:[#allocation5 + $0x8] sm:$0xff]
      %v2866 = vld [vmem:[#allocation5 + $0x10] sm:$0xff]
      %v2867 = vld [vmem:[#allocation5 + $0x18] sm:$0xff]
      %v2868 = vld [vmem:[#allocation5 + $0x20] sm:$0x3]
      %v2869 = vld [vmem:[#allocation5 + $0x28] sm:$0x3]
      %v2870 = vld [vmem:[#allocation5 + $0x30] sm:$0x3]
      %v2871 = vld [vmem:[#allocation5 + $0x38] sm:$0x3]
      %2880 = vrot.lane.b32.xlu0 %v2864, 88
      %v2881 = vpop.permute.xlu0 %2880
      %2882 = vrot.lane.b32.xlu0 %v2865, 88
      %v2883 = vpop.permute.xlu0 %2882
      %2884 = vrot.lane.b32.xlu0 %v2866, 88
      %v2885 = vpop.permute.xlu0 %2884
      %2886 = vrot.lane.b32.xlu0 %v2867, 88
      %v2887 = vpop.permute.xlu0 %2886
      %2888 = vrot.lane.b32.xlu0 %v2868, 88
      %v2889 = vpop.permute.xlu0 %2888
      %2890 = vrot.lane.b32.xlu0 %v2869, 88
      %v2891 = vpop.permute.xlu0 %2890
      %2892 = vrot.lane.b32.xlu0 %v2870, 88
      %v2893 = vpop.permute.xlu0 %2892
      %2894 = vrot.lane.b32.xlu0 %v2871, 88
      %v2895 = vpop.permute.xlu0 %2894
      %v2896 = vsel %vm546, %v2881, %v2883
      %v2897 = vsel %vm546, %v2883, %v2885
      %v2898 = vsel %vm546, %v2885, %v2887
      %v2899 = vsel %vm546, %v2889, %v2891
      %v2900 = vsel %vm546, %v2891, %v2893
      %v2901 = vsel %vm546, %v2893, %v2895
      %2908 = vst [vmem:[#allocation2 + $0x120] sm:$0xff] %v2896
      %2909 = vst [vmem:[#allocation2 + $0x128] sm:$0xff] %v2897
      %2910 = vst [vmem:[#allocation2 + $0x130] sm:$0xff] %v2898
      %2911 = vst [vmem:[#allocation2 + $0x138] sm:$0x3] %v2899
      %2912 = vst [vmem:[#allocation2 + $0x140] sm:$0x3] %v2900
      %2913 = vst [vmem:[#allocation2 + $0x148] sm:$0x3] %v2901
      %v2914 = vld [vmem:[#allocation5] sm:$0xff]
      %v2915 = vld [vmem:[#allocation5 + $0x8] sm:$0xff]
      %v2916 = vld [vmem:[#allocation5 + $0x10] sm:$0xff]
      %v2917 = vld [vmem:[#allocation5 + $0x18] sm:$0xff]
      %v2918 = vld [vmem:[#allocation5 + $0x20] sm:$0x3]
      %v2919 = vld [vmem:[#allocation5 + $0x28] sm:$0x3]
      %v2920 = vld [vmem:[#allocation5 + $0x30] sm:$0x3]
      %v2921 = vld [vmem:[#allocation5 + $0x38] sm:$0x3]
      %2930 = vrot.lane.b32.xlu0 %v2914, 87
      %v2931 = vpop.permute.xlu0 %2930
      %2932 = vrot.lane.b32.xlu0 %v2915, 87
      %v2933 = vpop.permute.xlu0 %2932
      %2934 = vrot.lane.b32.xlu0 %v2916, 87
      %v2935 = vpop.permute.xlu0 %2934
      %2936 = vrot.lane.b32.xlu0 %v2917, 87
      %v2937 = vpop.permute.xlu0 %2936
      %2938 = vrot.lane.b32.xlu0 %v2918, 87
      %v2939 = vpop.permute.xlu0 %2938
      %2940 = vrot.lane.b32.xlu0 %v2919, 87
      %v2941 = vpop.permute.xlu0 %2940
      %2942 = vrot.lane.b32.xlu0 %v2920, 87
      %v2943 = vpop.permute.xlu0 %2942
      %2944 = vrot.lane.b32.xlu0 %v2921, 87
      %v2945 = vpop.permute.xlu0 %2944
      %v2946 = vsel %vm575, %v2931, %v2933
      %v2947 = vsel %vm575, %v2933, %v2935
      %v2948 = vsel %vm575, %v2935, %v2937
      %v2949 = vsel %vm575, %v2939, %v2941
      %v2950 = vsel %vm575, %v2941, %v2943
      %v2951 = vsel %vm575, %v2943, %v2945
      %2958 = vst [vmem:[#allocation2 + $0x150] sm:$0xff] %v2946
      %2959 = vst [vmem:[#allocation2 + $0x158] sm:$0xff] %v2947
      %2960 = vst [vmem:[#allocation2 + $0x160] sm:$0xff] %v2948
      %2961 = vst [vmem:[#allocation2 + $0x168] sm:$0x3] %v2949
      %2962 = vst [vmem:[#allocation2 + $0x170] sm:$0x3] %v2950
      %2963 = vst [vmem:[#allocation2 + $0x178] sm:$0x3] %v2951
      %v2964 = vld [vmem:[#allocation5] sm:$0xff]
      %v2965 = vld [vmem:[#allocation5 + $0x8] sm:$0xff]
      %v2966 = vld [vmem:[#allocation5 + $0x10] sm:$0xff]
      %v2967 = vld [vmem:[#allocation5 + $0x18] sm:$0xff]
      %v2968 = vld [vmem:[#allocation5 + $0x20] sm:$0x3]
      %v2969 = vld [vmem:[#allocation5 + $0x28] sm:$0x3]
      %v2970 = vld [vmem:[#allocation5 + $0x30] sm:$0x3]
      %v2971 = vld [vmem:[#allocation5 + $0x38] sm:$0x3]
      %2980 = vrot.lane.b32.xlu0 %v2964, 86
      %v2981 = vpop.permute.xlu0 %2980
      %2982 = vrot.lane.b32.xlu0 %v2965, 86
      %v2983 = vpop.permute.xlu0 %2982
      %2984 = vrot.lane.b32.xlu0 %v2966, 86
      %v2985 = vpop.permute.xlu0 %2984
      %2986 = vrot.lane.b32.xlu0 %v2967, 86
      %v2987 = vpop.permute.xlu0 %2986
      %2988 = vrot.lane.b32.xlu0 %v2968, 86
      %v2989 = vpop.permute.xlu0 %2988
      %2990 = vrot.lane.b32.xlu0 %v2969, 86
      %v2991 = vpop.permute.xlu0 %2990
      %2992 = vrot.lane.b32.xlu0 %v2970, 86
      %v2993 = vpop.permute.xlu0 %2992
      %2994 = vrot.lane.b32.xlu0 %v2971, 86
      %v2995 = vpop.permute.xlu0 %2994
      %v2996 = vsel %vm604, %v2981, %v2983
      %v2997 = vsel %vm604, %v2983, %v2985
      %v2998 = vsel %vm604, %v2985, %v2987
      %v2999 = vsel %vm604, %v2989, %v2991
      %v3000 = vsel %vm604, %v2991, %v2993
      %v3001 = vsel %vm604, %v2993, %v2995
      %3008 = vst [vmem:[#allocation2 + $0x180] sm:$0xff] %v2996
      %3009 = vst [vmem:[#allocation2 + $0x188] sm:$0xff] %v2997
      %3010 = vst [vmem:[#allocation2 + $0x190] sm:$0xff] %v2998
      %3011 = vst [vmem:[#allocation2 + $0x198] sm:$0x3] %v2999
      %3012 = vst [vmem:[#allocation2 + $0x1a0] sm:$0x3] %v3000
      %3013 = vst [vmem:[#allocation2 + $0x1a8] sm:$0x3] %v3001
      %v3014 = vld [vmem:[%s6] sm:$0x1f]
      %v3015 = vld [vmem:[%s6 + $0x8] sm:$0x1f]
      %v3016 = vld [vmem:[#allocation2] sm:$0xff]
      %v3017 = vld [vmem:[#allocation2 + $0x8] sm:$0xff]
      %v3018 = vld [vmem:[#allocation2 + $0x10] sm:$0xff]
      %v3019 = vld [vmem:[#allocation2 + $0x18] sm:$0xff]
      %v3020 = vld [vmem:[#allocation2 + $0x20] sm:$0xff]
      %v3021 = vld [vmem:[#allocation2 + $0x28] sm:$0xff]
      %v3022 = vld [vmem:[#allocation2 + $0x30] sm:$0xff]
      %v3023 = vld [vmem:[#allocation2 + $0x38] sm:$0xff]
      %v3024 = vld [vmem:[#allocation2 + $0x40] sm:$0xff]
      %v3025 = vld [vmem:[#allocation2 + $0x48] sm:$0xff]
      %v3026 = vld [vmem:[#allocation2 + $0x50] sm:$0xff]
      %v3027 = vld [vmem:[#allocation2 + $0x58] sm:$0xff]
      %v3028 = vld [vmem:[#allocation2 + $0x60] sm:$0xff]
      %v3029 = vld [vmem:[#allocation2 + $0x68] sm:$0xff]
      %v3030 = vld [vmem:[#allocation2 + $0x70] sm:$0xff]
      %v3031 = vld [vmem:[#allocation2 + $0x78] sm:$0xff]
      %v3032 = vld [vmem:[#allocation2 + $0x80] sm:$0xff]
      %v3033 = vld [vmem:[#allocation2 + $0x88] sm:$0xff]
      %v3034 = vld [vmem:[#allocation2 + $0x90] sm:$0xff]
      %v3035 = vld [vmem:[#allocation2 + $0x98] sm:$0xff]
      %v3036 = vld [vmem:[#allocation2 + $0xa0] sm:$0xff]
      %v3037 = vld [vmem:[#allocation2 + $0xa8] sm:$0xff]
      %v3038 = vld [vmem:[#allocation2 + $0xb0] sm:$0xff]
      %v3039 = vld [vmem:[#allocation2 + $0xb8] sm:$0xff]
      %v3040 = vld [vmem:[#allocation2 + $0xc0] sm:$0xff]
      %v3041 = vld [vmem:[#allocation2 + $0xc8] sm:$0xff]
      %v3042 = vld [vmem:[#allocation2 + $0xd0] sm:$0xff]
      %v3043 = vld [vmem:[#allocation2 + $0xd8] sm:$0xff]
      %v3044 = vld [vmem:[#allocation2 + $0xe0] sm:$0xff]
      %v3045 = vld [vmem:[#allocation2 + $0xe8] sm:$0xff]
      %v3046 = vld [vmem:[#allocation2 + $0xf0] sm:$0xff]
      %v3047 = vld [vmem:[#allocation2 + $0xf8] sm:$0xff]
      %v3048 = vld [vmem:[#allocation2 + $0x100] sm:$0xff]
      %v3049 = vld [vmem:[#allocation2 + $0x108] sm:$0xff]
      %v3050 = vld [vmem:[#allocation2 + $0x110] sm:$0xff]
      %v3051 = vld [vmem:[#allocation2 + $0x118] sm:$0xff]
      %v3052 = vld [vmem:[#allocation2 + $0x120] sm:$0xff]
      %v3053 = vld [vmem:[#allocation2 + $0x128] sm:$0xff]
      %v3054 = vld [vmem:[#allocation2 + $0x130] sm:$0xff]
      %v3055 = vld [vmem:[#allocation2 + $0x138] sm:$0xff]
      %v3056 = vld [vmem:[#allocation2 + $0x140] sm:$0xff]
      %v3057 = vld [vmem:[#allocation2 + $0x148] sm:$0xff]
      %v3058 = vld [vmem:[#allocation2 + $0x150] sm:$0xff]
      %v3059 = vld [vmem:[#allocation2 + $0x158] sm:$0xff]
      %v3060 = vld [vmem:[#allocation2 + $0x160] sm:$0xff]
      %v3061 = vld [vmem:[#allocation2 + $0x168] sm:$0xff]
      %v3062 = vld [vmem:[#allocation2 + $0x170] sm:$0xff]
      %v3063 = vld [vmem:[#allocation2 + $0x178] sm:$0xff]
      %v3064 = vld [vmem:[#allocation2 + $0x180] sm:$0xff]
      %v3065 = vld [vmem:[#allocation2 + $0x188] sm:$0xff]
      %v3066 = vld [vmem:[#allocation2 + $0x190] sm:$0xff]
      %v3067 = vld [vmem:[#allocation2 + $0x198] sm:$0xff]
      %v3068 = vld [vmem:[#allocation2 + $0x1a0] sm:$0xff]
      %v3069 = vld [vmem:[#allocation2 + $0x1a8] sm:$0xff]
      %v3070 = vld [vmem:[#allocation4] sm:$0x1f]
      %v3071 = vld [vmem:[#allocation4 + $0x8] sm:$0x1f]
      %v3072 = vld [vmem:[#allocation4 + $0x10] sm:$0x1f]
      %v3073 = vld [vmem:[#allocation4 + $0x18] sm:$0x1f]
      %3078 = vrot.lane.b32.xlu0 %v3070, 65
      %v3079 = vpop.permute.xlu0 %3078
      %3080 = vrot.lane.b32.xlu0 %v3071, 65
      %v3081 = vpop.permute.xlu0 %3080
      %3082 = vrot.lane.b32.xlu0 %v3072, 65
      %v3083 = vpop.permute.xlu0 %3082
      %3084 = vrot.lane.b32.xlu0 %v3073, 65
      %v3085 = vpop.permute.xlu0 %3084
      %vm3086 = vcmask 531456
      %v3087 = vsel %vm3086, %v3079, %v3081
      %v3088 = vsel %vm3086, %v3081, %v3083
      %v3089 = vsel %vm3086, %v3083, %v3085
      %v3094 = vsel %vm1524, %v3015, 0
      %3096 = vmatpush.msra.mxu0 %v3061
      %3097 = vmatpush.msra.mxu0 %v3058
      %3098 = vmatpush.msra.mxu0 %v3055
      %3099 = vmatpush.msra.mxu0 %v3052
      %3100 = vmatpush.msra.mxu0 %v3049
      %3101 = vmatpush.msra.mxu0 %v3046
      %3102 = vmatpush.msra.mxu0 %v3043
      %3103 = vmatpush.msra.mxu0 %v3040
      %3104 = vmatpush.msra.mxu0 %v3037
      %3105 = vmatpush.msra.mxu0 %v3034
      %3106 = vmatpush.msra.mxu0 %v3031
      %3107 = vmatpush.msra.mxu0 %v3028
      %3108 = vmatpush.msra.mxu0 %v3025
      %3109 = vmatpush.msra.mxu0 %v3022
      %3110 = vmatpush.msra.mxu0 %v3019
      %3111 = vmatpush.msra.mxu0 %v3016
      %3112 = vmatmul.f32.gmra.mxu0 %v3014
      %v3113 = vpop.f32.mrf.mxu0
      %v3114 = vadd.f32 %v3087, %v3113
      %3115 = vdwg.mxu0
      %3116 = vmatpush.msra.mxu0 0.0
      %3117 = vmatpush.msra.mxu0 0.0
      %3118 = vmatpush.msra.mxu0 0.0
      %3119 = vmatpush.msra.mxu0 0.0
      %3120 = vmatpush.msra.mxu0 0.0
      %3121 = vmatpush.msra.mxu0 0.0
      %3122 = vmatpush.msra.mxu0 0.0
      %3123 = vmatpush.msra.mxu0 0.0
      %3124 = vmatpush.msra.mxu0 0.0
      %3125 = vmatpush.msra.mxu0 0.0
      %3126 = vmatpush.msra.mxu0 0.0
      %3127 = vmatpush.msra.mxu0 0.0
      %3128 = vmatpush.msra.mxu0 0.0
      %3129 = vmatpush.msra.mxu0 0.0
      %3130 = vmatpush.msra.mxu0 %v3067
      %3131 = vmatpush.msra.mxu0 %v3064
      %3132 = vmatmul.f32.gmra.mxu0 %v3094
      %v3133 = vpop.f32.mrf.mxu0
      %v3134 = vadd.f32 %v3114, %v3133
      %3135 = vdwg.mxu0
      %3136 = vmatpush.msra.mxu0 %v3062
      %3137 = vmatpush.msra.mxu0 %v3059
      %3138 = vmatpush.msra.mxu0 %v3056
      %3139 = vmatpush.msra.mxu0 %v3053
      %3140 = vmatpush.msra.mxu0 %v3050
      %3141 = vmatpush.msra.mxu0 %v3047
      %3142 = vmatpush.msra.mxu0 %v3044
      %3143 = vmatpush.msra.mxu0 %v3041
      %3144 = vmatpush.msra.mxu0 %v3038
      %3145 = vmatpush.msra.mxu0 %v3035
      %3146 = vmatpush.msra.mxu0 %v3032
      %3147 = vmatpush.msra.mxu0 %v3029
      %3148 = vmatpush.msra.mxu0 %v3026
      %3149 = vmatpush.msra.mxu0 %v3023
      %3150 = vmatpush.msra.mxu0 %v3020
      %3151 = vmatpush.msra.mxu0 %v3017
      %3152 = vmatmul.f32.gmra.mxu0 %v3014
      %v3153 = vpop.f32.mrf.mxu0
      %v3154 = vadd.f32 %v3088, %v3153
      %3155 = vdwg.mxu0
      %3156 = vmatpush.msra.mxu0 0.0
      %3157 = vmatpush.msra.mxu0 0.0
      %3158 = vmatpush.msra.mxu0 0.0
      %3159 = vmatpush.msra.mxu0 0.0
      %3160 = vmatpush.msra.mxu0 0.0
      %3161 = vmatpush.msra.mxu0 0.0
      %3162 = vmatpush.msra.mxu0 0.0
      %3163 = vmatpush.msra.mxu0 0.0
      %3164 = vmatpush.msra.mxu0 0.0
      %3165 = vmatpush.msra.mxu0 0.0
      %3166 = vmatpush.msra.mxu0 0.0
      %3167 = vmatpush.msra.mxu0 0.0
      %3168 = vmatpush.msra.mxu0 0.0
      %3169 = vmatpush.msra.mxu0 0.0
      %3170 = vmatpush.msra.mxu0 %v3068
      %3171 = vmatpush.msra.mxu0 %v3065
      %3172 = vmatmul.f32.gmra.mxu0 %v3094
      %v3173 = vpop.f32.mrf.mxu0
      %v3174 = vadd.f32 %v3154, %v3173
      %3175 = vdwg.mxu0
      %3176 = vmatpush.msra.mxu0 %v3063
      %3177 = vmatpush.msra.mxu0 %v3060
      %3178 = vmatpush.msra.mxu0 %v3057
      %3179 = vmatpush.msra.mxu0 %v3054
      %3180 = vmatpush.msra.mxu0 %v3051
      %3181 = vmatpush.msra.mxu0 %v3048
      %3182 = vmatpush.msra.mxu0 %v3045
      %3183 = vmatpush.msra.mxu0 %v3042
      %3184 = vmatpush.msra.mxu0 %v3039
      %3185 = vmatpush.msra.mxu0 %v3036
      %3186 = vmatpush.msra.mxu0 %v3033
      %3187 = vmatpush.msra.mxu0 %v3030
      %3188 = vmatpush.msra.mxu0 %v3027
      %3189 = vmatpush.msra.mxu0 %v3024
      %3190 = vmatpush.msra.mxu0 %v3021
      %3191 = vmatpush.msra.mxu0 %v3018
      %3192 = vmatmul.f32.gmra.mxu0 %v3014
      %v3193 = vpop.f32.mrf.mxu0
      %v3194 = vadd.f32 %v3089, %v3193
      %3195 = vdwg.mxu0
      %3196 = vmatpush.msra.mxu0 0.0
      %3197 = vmatpush.msra.mxu0 0.0
      %3198 = vmatpush.msra.mxu0 0.0
      %3199 = vmatpush.msra.mxu0 0.0
      %3200 = vmatpush.msra.mxu0 0.0
      %3201 = vmatpush.msra.mxu0 0.0
      %3202 = vmatpush.msra.mxu0 0.0
      %3203 = vmatpush.msra.mxu0 0.0
      %3204 = vmatpush.msra.mxu0 0.0
      %3205 = vmatpush.msra.mxu0 0.0
      %3206 = vmatpush.msra.mxu0 0.0
      %3207 = vmatpush.msra.mxu0 0.0
      %3208 = vmatpush.msra.mxu0 0.0
      %3209 = vmatpush.msra.mxu0 0.0
      %3210 = vmatpush.msra.mxu0 %v3069
      %3211 = vmatpush.msra.mxu0 %v3066
      %3212 = vmatmul.f32.gmra.mxu0 %v3094
      %v3213 = vpop.f32.mrf.mxu0
      %v3214 = vadd.f32 %v3194, %v3213
      %3215 = vdwg.mxu0
      %v3216 = vmax.f32 %v3134, 0.0
      %v3217 = vmax.f32 %v3174, 0.0
      %v3218 = vmax.f32 %v3214, 0.0
      %3219 = vst [vmem:[#allocation6] sm:$0x1f] %v3216
      %3220 = vst [vmem:[#allocation6 + $0x8] sm:$0x1f] %v3217
      %3221 = vst [vmem:[#allocation6 + $0x10] sm:$0x1f] %v3218
      %v3222 = vld [vmem:[%s7] sm:$0x7]
      %v3223 = vld [vmem:[#allocation6] sm:$0x1f]
      %v3224 = vld [vmem:[#allocation6 + $0x8] sm:$0x1f]
      %v3225 = vld [vmem:[#allocation6 + $0x10] sm:$0x1f]
      %vm3226 = vcmask 39936
      %v3228 = vsel %vm3226, %v3222, 0
      %vm3230 = vcmask 1044480
      %v3232 = vsel %vm3230, %v3223, 0
      %v3235 = vsel %vm3230, %v3224, 0
      %v3238 = vsel %vm3230, %v3225, 0
      %3240 = vmatpush.msra.mxu0 0.0
      %3241 = vmatpush.msra.mxu0 0.0
      %3242 = vmatpush.msra.mxu0 0.0
      %3243 = vmatpush.msra.mxu0 0.0
      %3244 = vmatpush.msra.mxu0 0.0
      %3245 = vmatpush.msra.mxu0 0.0
      %3246 = vmatpush.msra.mxu0 0.0
      %3247 = vmatpush.msra.mxu0 0.0
      %3248 = vmatpush.msra.mxu0 0.0
      %3249 = vmatpush.msra.mxu0 0.0
      %3250 = vmatpush.msra.mxu0 0.0
      %3251 = vmatpush.msra.mxu0 0.0
      %3252 = vmatpush.msra.mxu0 0.0
      %3253 = vmatpush.msra.mxu0 0.0
      %3254 = vmatpush.msra.mxu0 0.0
      %3255 = vmatpush.msra.mxu0 %v3232
      %3256 = vmatmul.f32.gmra.mxu0 %v3228
      %v3257 = vpop.f32.mrf.mxu0
      %v3258 = vadd.f32 0.0, %v3257
      %3259 = vdwg.mxu0
      %3260 = vmatpush.msra.mxu0 0.0
      %3261 = vmatpush.msra.mxu0 0.0
      %3262 = vmatpush.msra.mxu0 0.0
      %3263 = vmatpush.msra.mxu0 0.0
      %3264 = vmatpush.msra.mxu0 0.0
      %3265 = vmatpush.msra.mxu0 0.0
      %3266 = vmatpush.msra.mxu0 0.0
      %3267 = vmatpush.msra.mxu0 0.0
      %3268 = vmatpush.msra.mxu0 0.0
      %3269 = vmatpush.msra.mxu0 0.0
      %3270 = vmatpush.msra.mxu0 0.0
      %3271 = vmatpush.msra.mxu0 0.0
      %3272 = vmatpush.msra.mxu0 0.0
      %3273 = vmatpush.msra.mxu0 0.0
      %3274 = vmatpush.msra.mxu0 0.0
      %3275 = vmatpush.msra.mxu0 %v3235
      %3276 = vmatmul.f32.gmra.mxu0 %v3228
      %v3277 = vpop.f32.mrf.mxu0
      %v3278 = vadd.f32 0.0, %v3277
      %3279 = vdwg.mxu0
      %3280 = vmatpush.msra.mxu0 0.0
      %3281 = vmatpush.msra.mxu0 0.0
      %3282 = vmatpush.msra.mxu0 0.0
      %3283 = vmatpush.msra.mxu0 0.0
      %3284 = vmatpush.msra.mxu0 0.0
      %3285 = vmatpush.msra.mxu0 0.0
      %3286 = vmatpush.msra.mxu0 0.0
      %3287 = vmatpush.msra.mxu0 0.0
      %3288 = vmatpush.msra.mxu0 0.0
      %3289 = vmatpush.msra.mxu0 0.0
      %3290 = vmatpush.msra.mxu0 0.0
      %3291 = vmatpush.msra.mxu0 0.0
      %3292 = vmatpush.msra.mxu0 0.0
      %3293 = vmatpush.msra.mxu0 0.0
      %3294 = vmatpush.msra.mxu0 0.0
      %3295 = vmatpush.msra.mxu0 %v3238
      %3296 = vmatmul.f32.gmra.mxu0 %v3228
      %v3297 = vpop.f32.mrf.mxu0
      %v3298 = vadd.f32 0.0, %v3297
      %3299 = vdwg.mxu0
      %v3302 = vrot.slane %v3278, 4
      %vm3303 = vcmask 1043456
      %v3304 = vsel %vm3303, %v3258, %v3302
      %3306 = vst [vmem:[%s305] sm:$0x77] %v3304
      %3307 = vst [vmem:[%s305 + $0x8] sm:$0x7] %v3298
      %p3308 = scmp.lt.s32.totalorder %s19, 1
      %s3309 = scalar_select %p3308, %s19, 1
      %s3310 = smul.addr %s3309, 4
      %s3311 = smul.addr %s3310, 4
      %s3312 = scalar_lea.vmem %s8, %s3311
      // Predicated region
      $region53: #{simple_denoising_net.1} parent=51 // pred_check
        %p3313 = pneg %p210
      $region54: #{simple_denoising_net.1} parent=51 // pred_check_branch
        %3315 = sbr.rel (%p3313) target = $region56
      $region55: #{simple_denoising_net.1} parent=51 // pred_region
        _
      $region56: #{simple_denoising_net.1} parent=51 // pred_fallthru
        _
    $region52: #{simple_denoising_net.1} parent=5 // pred_fallthru
      _
    %p3316 = scmp.le.s32.totalorder 2, %s14
    // Predicated region
    $region57: #{simple_denoising_net.1} parent=5 // pred_check
      %p3317 = pneg %p3316
    $region58: #{simple_denoising_net.1} parent=5 // pred_check_branch
      %3319 = sbr.rel (%p3317) target = $region60
    $region59: #{simple_denoising_net.1} parent=5 // pred_region
      %s3320 = ssub.s32 %s14, 2
      // Predicated region
      $region61: #{simple_denoising_net.1} parent=59 // pred_check
        %p3321 = pneg %p216
      $region62: #{simple_denoising_net.1} parent=59 // pred_check_branch
        %3323 = sbr.rel (%p3321) target = $region64
      $region63: #{simple_denoising_net.1} parent=59 // pred_region
        %p3324 = scmp.lt.s32.totalorder %s20, 1
        %s3325 = scalar_select %p3324, %s20, 1
        %s3326 = smul.addr %s3325, 4
        %s3327 = smul.addr %s3326, 4
        %s3328 = scalar_lea.vmem %s8, %s3327
      $region64: #{simple_denoising_net.1} parent=59 // pred_fallthru
        _
    $region60: #{simple_denoising_net.1} parent=5 // pred_fallthru
      _
  $region6: #{simple_denoising_net.1} parent=0 // loop_footer
    %s18 = sadd.s32 1, %s14
  $region7: #{simple_denoising_net.1} parent=0 // loop_footer_branch
    %13 = sbr.rel target = $region3
  $region8: #{simple_denoising_net.1} parent=0 // loop_exit
    _

</llo_original>
